<compile_context>
chip_gen: v7x
topology: tpu7x:2x2x1
jax: 0.10.0
libtpu: 0.0.40
codegen_flags: <defaults>
</compile_context>

<pallas_src>
import functools
import math

import jax
import jax.numpy as jnp
from jax.experimental import pallas as pl
from jax.experimental.pallas import tpu as pltpu


# --------------------------------------------------------------------------- #
# Utilities                                                                    #
# --------------------------------------------------------------------------- #
def _round_up(x, m):
    return (x + m - 1) // m * m


def _vmem_capacity_bytes():
    # Per-generation physical VMEM (v5e/v6e: 128 MiB, v7x: 64 MiB per TensorCore).
    try:
        return int(pltpu.get_tpu_info().vmem_capacity_bytes)
    except Exception:
        return 64 << 20          # conservative default = v7x per-core VMEM


def _vmem_limit(need_bytes, cap):
    # Explicit scoped-VMEM limit: actual need + headroom, clamped below physical.
    return int(min(max(need_bytes + (8 << 20), 32 << 20), int(cap * 0.9)))


# --------------------------------------------------------------------------- #
# Generic linear:  y = x @ W + b   (bf16 MXU matmul, f32 accumulation)         #
# One kernel serves the fused QKV projection and the (unfused) Wo projection.  #
# --------------------------------------------------------------------------- #
def _linear_kernel(x_ref, w_ref, b_ref, o_ref):
    x = x_ref[...].astype(jnp.bfloat16)
    w = w_ref[...].astype(jnp.bfloat16)
    acc = jnp.dot(x, w, preferred_element_type=jnp.float32)
    acc = acc + b_ref[...].astype(jnp.float32)
    o_ref[...] = acc.astype(o_ref.dtype)


def _row_tile(rows, d_in, d_out, in_bytes, out_bytes, budget):
    # Largest row tile (mem-bound kernel -> bigger tiles approach the HBM
    # roofline) that divides `rows` and fits the double-buffered VMEM budget.
    for tm in (1024, 512, 256, 128):
        if rows % tm == 0:
            need = (2 * tm * (d_in * in_bytes + d_out * out_bytes)
                    + 2 * (d_in * d_out * 2 + d_out * 4))
            if need <= budget:
                return tm
    return 128 if rows % 128 == 0 else rows


def _linear(x2d, w, b, out_dtype=jnp.bfloat16):
    rows, d_in = x2d.shape
    d_out = w.shape[1]
    cap = _vmem_capacity_bytes()
    out_bytes = jnp.dtype(out_dtype).itemsize
    tm = _row_tile(rows, d_in, d_out, x2d.dtype.itemsize, out_bytes, int(cap * 0.8))
    need = (2 * tm * (d_in * x2d.dtype.itemsize + d_out * out_bytes)
            + 2 * (d_in * d_out * 2 + d_out * 4))
    # TODO(synk): for d_model >= ~2048 add a K-reduction grid axis (f32 VMEM
    #             accumulator, pl.when init/finalize) instead of keeping the
    #             full (d_in, d_out) weight resident in VMEM.
    return pl.pallas_call(
        _linear_kernel,
        out_shape=jax.ShapeDtypeStruct((rows, d_out), out_dtype),
        grid=(rows // tm,),
        in_specs=[
            pl.BlockSpec((tm, d_in), lambda i: (i, 0)),
            pl.BlockSpec((d_in, d_out), lambda i: (0, 0)),
            pl.BlockSpec((1, d_out), lambda i: (0, 0)),
        ],
        out_specs=pl.BlockSpec((tm, d_out), lambda i: (i, 0)),
        compiler_params=pltpu.CompilerParams(
            dimension_semantics=("parallel",),
            vmem_limit_bytes=_vmem_limit(need, cap),
        ),
    )(x2d, w, b)


# --------------------------------------------------------------------------- #
# Flash-style MHA core (merged-head layout) with fused output projection.     #
# --------------------------------------------------------------------------- #
def _flash_kernel(*refs, num_heads, dk, tk, kv_len, fuse_out):
    if fuse_out:
        q_ref, k_ref, v_ref, wo_ref, bo_ref, o_ref, m_ref, l_ref, acc_ref = refs
    else:
        q_ref, k_ref, v_ref, o_ref, m_ref, l_ref, acc_ref = refs

    kv_i = pl.program_id(2)

    @pl.when(kv_i == 0)
    def _():
        m_ref[...] = jnp.full_like(m_ref, -jnp.inf)
        l_ref[...] = jnp.zeros_like(l_ref)
        acc_ref[...] = jnp.zeros_like(acc_ref)

    q = q_ref[0]                       # (tq, D) bf16, pre-scaled by 1/sqrt(d_k)
    k = k_ref[0]                       # (tk, D) bf16
    v = v_ref[0]                       # (tk, D) bf16

    key_mask = None
    if kv_len % tk != 0:               # static: only traced when the kv axis is padded
        col = jax.lax.broadcasted_iota(jnp.int32, (1, tk), 1) + kv_i * tk
        key_mask = col < kv_len

    for h in range(num_heads):         # static unroll over heads
        sl = slice(h * dk, (h + 1) * dk)
        # NT matmul over this head's d_k lanes -> (tq, tk) f32 scores.
        s = jax.lax.dot_general(q[:, sl], k[:, sl], (((1,), (1,)), ((), ())),
                                preferred_element_type=jnp.float32)
        if key_mask is not None:
            s = jnp.where(key_mask, s, -1e30)
        m_prev = m_ref[h]
        m_new = jnp.maximum(m_prev, jnp.max(s, axis=-1, keepdims=True))
        alpha = jnp.exp(m_prev - m_new)
        p = jnp.exp(s - m_new)
        l_ref[h] = alpha * l_ref[h] + jnp.sum(p, axis=-1, keepdims=True)
        m_ref[h] = m_new
        pv = jnp.dot(p.astype(jnp.bfloat16), v[:, sl],
                     preferred_element_type=jnp.float32)           # (tq, dk)
        acc_ref[:, sl] = alpha * acc_ref[:, sl] + pv

    @pl.when(kv_i == pl.num_programs(2) - 1)
    def _():
        for h in range(num_heads):
            sl = slice(h * dk, (h + 1) * dk)
            acc_ref[:, sl] = acc_ref[:, sl] * pl.reciprocal(l_ref[h], approx=True)
        ctx = acc_ref[...]             # (tq, D) merged heads, lane-dense
        if fuse_out:
            out = jnp.dot(ctx.astype(jnp.bfloat16),
                          wo_ref[...].astype(jnp.bfloat16),
                          preferred_element_type=jnp.float32)
            o_ref[0] = (out + bo_ref[...]).astype(o_ref.dtype)
        else:
            o_ref[0] = ctx.astype(o_ref.dtype)


def _attn_vmem_bytes(tq, tk, num_heads, d_model, fuse_out):
    b = 2 * tq * d_model * 2                       # q tile (bf16, double-buffered)
    b += 2 * 2 * tk * d_model * 2                  # k + v tiles
    b += 2 * tq * d_model * 4                      # output tile
    if fuse_out:
        b += 2 * (d_model * d_model * 2 + d_model * 4)   # resident Wo + bias
    b += tq * d_model * 4 + 2 * num_heads * tq * 4       # acc + m/l scratch
    b += 2 * tq * tk * 4                           # live per-head score/prob values
    return b


def _attn_tiles(sq, skv, num_heads, d_model, budget, fuse_out):
    tq_cands = [t for t in (256, 128) if t <= sq] or [_round_up(sq, 8)]
    tk_cands = [t for t in (512, 256, 128) if t <= skv] or [_round_up(skv, 8)]
    for tq in tq_cands:
        for tk in tk_cands:
            if _attn_vmem_bytes(tq, tk, num_heads, d_model, fuse_out) <= budget:
                return tq, tk
    return tq_cands[-1], tk_cands[-1]


# --------------------------------------------------------------------------- #
# Full module forward                                                         #
# --------------------------------------------------------------------------- #
def multi_headed_attention(query, key, value, params, num_heads, mask=None):
    if mask is not None:
        # TODO(synk): masked attention path (scores.masked_fill) not implemented;
        # the module's default self-attention usage passes mask=None.
        raise NotImplementedError("mask is not supported")
    B, Sq, D = query.shape
    Skv = key.shape[1]
    assert D % num_heads == 0
    dk = D // num_heads
    scale = 1.0 / math.sqrt(dk)

    cap = _vmem_capacity_bytes()
    budget = int(cap * 0.8)
    # Fuse the output projection into the attention epilogue only while the
    # (double-buffered) Wo weight fits comfortably next to the attention tiles.
    fuse_out = (4 * D * D) <= budget // 2
    tq, tk = _attn_tiles(Sq, Skv, num_heads, D, budget, fuse_out)
    sq_pad, skv_pad = _round_up(Sq, tq), _round_up(Skv, tk)

    # Fold 1/sqrt(d_k) into the q projection -> score tiles never rescaled.
    wq = (params["wq"].astype(jnp.float32) * scale).astype(jnp.bfloat16)
    bq = params["bq"] * scale
    wk, bk, wv, bv = params["wk"], params["bk"], params["wv"], params["bv"]
    wo, bo = params["wo"], params["bo"].astype(jnp.float32)

    def pad_seq(x, s_pad):
        s = x.shape[1]
        return x if s == s_pad else jnp.pad(x, ((0, 0), (0, s_pad - s), (0, 0)))

    def project(x3d, w, b):
        bsz, s, _ = x3d.shape
        y = _linear(x3d.reshape(bsz * s, D), w, b, out_dtype=jnp.bfloat16)
        return y.reshape(bsz, s, w.shape[1])

    fused_view_ok = (D % 128 == 0)     # column-block views need a 128-aligned D

    if query is key and key is value and fused_view_ok:
        # Self-attention: one fused QKV projection; q/k/v are column views of it.
        s_pad = max(sq_pad, skv_pad)
        qkv = project(pad_seq(query, s_pad),
                      jnp.concatenate([wq, wk, wv], axis=1),
                      jnp.concatenate([bq, bk, bv], axis=1))
        srcs, cols = (qkv, qkv, qkv), (0, 1, 2)
    elif key is value and fused_view_ok:
        # Cross-attention: fused KV projection on the memory, separate Q.
        q_src = project(pad_seq(query, sq_pad), wq, bq)
        kv_src = project(pad_seq(key, skv_pad),
                         jnp.concatenate([wk, wv], axis=1),
                         jnp.concatenate([bk, bv], axis=1))
        srcs, cols = (q_src, kv_src, kv_src), (0, 0, 1)
    else:
        q_src = project(pad_seq(query, sq_pad), wq, bq)
        k_src = project(pad_seq(key, skv_pad), wk, bk)
        v_src = project(pad_seq(value, skv_pad), wv, bv)
        srcs, cols = (q_src, k_src, v_src), (0, 0, 0)

    def q_spec(col):
        return pl.BlockSpec((1, tq, D), lambda b, qi, ki: (b, qi, col))

    def kv_spec(col):
        return pl.BlockSpec((1, tk, D), lambda b, qi, ki: (b, ki, col))

    in_specs = [q_spec(cols[0]), kv_spec(cols[1]), kv_spec(cols[2])]
    args = list(srcs)
    if fuse_out:
        in_specs += [pl.BlockSpec((D, D), lambda b, qi, ki: (0, 0)),
                     pl.BlockSpec((1, D), lambda b, qi, ki: (0, 0))]
        args += [wo, bo]

    out_dtype = jnp.float32 if fuse_out else jnp.bfloat16
    need = _attn_vmem_bytes(tq, tk, num_heads, D, fuse_out)
    out = pl.pallas_call(
        functools.partial(_flash_kernel, num_heads=num_heads, dk=dk, tk=tk,
                          kv_len=Skv, fuse_out=fuse_out),
        out_shape=jax.ShapeDtypeStruct((B, sq_pad, D), out_dtype),
        grid=(B, sq_pad // tq, skv_pad // tk),
        in_specs=in_specs,
        out_specs=pl.BlockSpec((1, tq, D), lambda b, qi, ki: (b, qi, 0)),
        scratch_shapes=[
            pltpu.VMEM((num_heads, tq, 1), jnp.float32),   # running max (per head)
            pltpu.VMEM((num_heads, tq, 1), jnp.float32),   # running denom (per head)
            pltpu.VMEM((tq, D), jnp.float32),              # merged-head accumulator
        ],
        compiler_params=pltpu.CompilerParams(
            dimension_semantics=("parallel", "parallel", "arbitrary"),
            vmem_limit_bytes=_vmem_limit(need, cap),
        ),
    )(*args)

    if not fuse_out:
        # D too large to keep Wo resident: separate output-projection kernel.
        out = _linear(out.reshape(B * sq_pad, D), wo, bo,
                      out_dtype=jnp.float32).reshape(B, sq_pad, D)

    return out[:, :Sq, :] if sq_pad != Sq else out


# --------------------------------------------------------------------------- #
# Plain-JAX reference (mirrors the PyTorch forward, eval-mode dropout)        #
# --------------------------------------------------------------------------- #
def reference_mha(query, key, value, p, num_heads):
    B, Sq, D = query.shape
    Skv = key.shape[1]
    dk = D // num_heads
    f32 = lambda a: a.astype(jnp.float32)

    q = (query @ f32(p["wq"]) + p["bq"]).reshape(B, Sq, num_heads, dk).transpose(0, 2, 1, 3)
    k = (key @ f32(p["wk"]) + p["bk"]).reshape(B, Skv, num_heads, dk).transpose(0, 2, 1, 3)
    v = (value @ f32(p["wv"]) + p["bv"]).reshape(B, Skv, num_heads, dk).transpose(0, 2, 1, 3)
    s = jnp.einsum("bhqd,bhkd->bhqk", q, k) / jnp.sqrt(jnp.float32(dk))
    p_attn = jax.nn.softmax(s, axis=-1)
    x = jnp.einsum("bhqk,bhkd->bhqd", p_attn, v).transpose(0, 2, 1, 3).reshape(B, Sq, D)
    return x @ f32(p["wo"]) + p["bo"]


def init_params(key, d_model):
    ks = jax.random.split(key, 8)
    n = lambda k, shape: jax.random.normal(k, shape, jnp.float32) * 0.1
    # Weights stored in bf16 (native MXU dtype); biases kept in f32.
    return {
        "wq": n(ks[0], (d_model, d_model)).astype(jnp.bfloat16), "bq": n(ks[1], (1, d_model)),
        "wk": n(ks[2], (d_model, d_model)).astype(jnp.bfloat16), "bk": n(ks[3], (1, d_model)),
        "wv": n(ks[4], (d_model, d_model)).astype(jnp.bfloat16), "bv": n(ks[5], (1, d_model)),
        "wo": n(ks[6], (d_model, d_model)).astype(jnp.bfloat16), "bo": n(ks[7], (1, d_model)),
    }


if __name__ == "__main__":
    # Self-attention (query = key = value) so the fused QKV path is exercised;
    # S=1024 / tk=512 exercises the multi-step online-softmax accumulation.
    B, S, D, H = 2, 1024, 128, 4     # d_k = 32

    root = jax.random.PRNGKey(0)
    kx, kp = jax.random.split(root, 2)
    x = jax.random.normal(kx, (B, S, D), jnp.float32)
    params = init_params(kp, D)

    out = multi_headed_attention(x, x, x, params, num_heads=H)
    out = jax.block_until_ready(out)

    ref = reference_mha(x, x, x, params, num_heads=H)
    assert out.shape == (B, S, D)
    max_err = float(jnp.max(jnp.abs(out - ref)))
    # bf16 MXU matmuls (f32 accumulation) + approx reciprocal => relaxed tolerance.
    assert jnp.allclose(out, ref, rtol=2e-2, atol=2e-2), f"mismatch vs reference: {max_err}"

    print("KERNEL_OK")
</pallas_src>

<mosaic_0001>
module attributes {stable_mosaic.version = 11 : i64} {
  func.func @_linear_kernel(%arg0: i32, %arg1: memref<1024x128xf32, #tpu.memory_space<vmem>>, %arg2: memref<128x384xbf16, #tpu.memory_space<vmem>>, %arg3: memref<1x384xf32, #tpu.memory_space<vmem>>, %arg4: memref<1024x384xbf16, #tpu.memory_space<vmem>>) attributes {dimension_semantics = [#tpu.dimension_semantics<parallel>], iteration_bounds = array<i64: 2>, scalar_prefetch = 0 : i64, scratch_operands = 0 : i64, tpu.core_type = #tpu.core_type<tc>, window_params = [{transform_indices = @transform_0, window_bounds = array<i64: 1024, 128>}, {pipeline_mode = #tpu.pipeline_mode<synchronous>, transform_indices = @transform_1, window_bounds = array<i64: 128, 384>}, {pipeline_mode = #tpu.pipeline_mode<synchronous>, transform_indices = @transform_2, window_bounds = array<i64: 1, 384>}, {transform_indices = @transform_3, window_bounds = array<i64: 1024, 384>}]} {
    %c0 = arith.constant 0 : index
    %c0_0 = arith.constant 0 : index
    %0 = vector.load %arg1[%c0, %c0_0] : memref<1024x128xf32, #tpu.memory_space<vmem>>, vector<1024x128xf32>
    %1 = arith.truncf %0 : vector<1024x128xf32> to vector<1024x128xbf16>
    %c0_1 = arith.constant 0 : index
    %c0_2 = arith.constant 0 : index
    %2 = vector.load %arg2[%c0_1, %c0_2] : memref<128x384xbf16, #tpu.memory_space<vmem>>, vector<128x384xbf16>
    %cst = arith.constant dense<0.000000e+00> : vector<1024x384xf32>
    %3 = tpu.matmul %1, %2, %cst {dimension_numbers = #tpu.dot_dimension_numbers<[1], [0], [0], [1], [0, 0, 1, 1], [], []>} : vector<1024x128xbf16>, vector<128x384xbf16>, vector<1024x384xf32> -> vector<1024x384xf32>
    %c0_3 = arith.constant 0 : index
    %c0_4 = arith.constant 0 : index
    %4 = vector.load %arg3[%c0_3, %c0_4] : memref<1x384xf32, #tpu.memory_space<vmem>>, vector<1x384xf32>
    %5 = vector.broadcast %4 : vector<1x384xf32> to vector<1024x384xf32>
    %6 = arith.addf %3, %5 : vector<1024x384xf32>
    %7 = arith.truncf %6 : vector<1024x384xf32> to vector<1024x384xbf16>
    %c0_5 = arith.constant 0 : index
    %c0_6 = arith.constant 0 : index
    %8 = vector.load %arg4[%c0_5, %c0_6] : memref<1024x384xbf16, #tpu.memory_space<vmem>>, vector<1024x384xbf16>
    tpu.vector_store %arg4[%c0_5, %c0_6], %7 {strides = array<i32>} : memref<1024x384xbf16, #tpu.memory_space<vmem>>, vector<1024x384xbf16>,
    return
  }
  func.func @transform_0(%arg0: i32) -> (i32, i32) {
    %c0_i32 = arith.constant 0 : i32
    %c0_i32_0 = arith.constant 0 : i32
    return %arg0, %c0_i32 : i32, i32
  }
  func.func @transform_1(%arg0: i32) -> (i32, i32) {
    %c0_i32 = arith.constant 0 : i32
    %c0_i32_0 = arith.constant 0 : i32
    %c0_i32_1 = arith.constant 0 : i32
    return %c0_i32, %c0_i32_0 : i32, i32
  }
  func.func @transform_2(%arg0: i32) -> (i32, i32) {
    %c0_i32 = arith.constant 0 : i32
    %c0_i32_0 = arith.constant 0 : i32
    %c0_i32_1 = arith.constant 0 : i32
    return %c0_i32, %c0_i32_0 : i32, i32
  }
  func.func @transform_3(%arg0: i32) -> (i32, i32) {
    %c0_i32 = arith.constant 0 : i32
    %c0_i32_0 = arith.constant 0 : i32
    return %arg0, %c0_i32 : i32, i32
  }
}

</mosaic_0001>

<llo_original>
// kernel: tpu_custom_call.1
$region0: #{tpu_custom_call.1}
  #allocation0 [shape = 'u32[]', space=smem, size = 0x4, offset = 0x4, fixed_abs, tag = 'smem constant byte address 0x4 - core index']
  #allocation1 [shape = 'u32[144,128]{1,0:T(1,128)}', space=vmem, size = 0x12000, scoped, tag = 'internal scratch']
  %s0 = inlined_call_operand.hbm [shape: f32[2048,128], index: 0, kind: input, shape index: {}]
  %s1 = inlined_call_operand.hbm [shape: bf16[128,384], index: 1, kind: input, shape index: {}]
  %s2 = inlined_call_operand.hbm [shape: f32[1,384], index: 2, kind: input, shape index: {}]
  %s3 = inlined_call_operand.hbm [shape: bf16[2048,384], index: 3, kind: output, shape index: {}]
  %s4 = sld [smem:[#allocation0]]
  $region57: #{tpu_custom_call.1} parent=0
    _
  %s6 = ssub.s32 1, %s4
  %s7 = scalar_select 0, %s6, %s4
  $region1: #{tpu_custom_call.1} parent=0
    #allocation2 [shape = 'u8[1048576]{0}', space=vmem, size = 0x100000, scoped, tag = 'input window, operand 0']
    #allocation3 [shape = 's32[2]{0}', space=sflag, size = 0x8, scoped, tag = 'scoped memory for tpu_custom_call.1']
    #allocation4 [shape = 's32[2]{0}', space=sflag, size = 0x8, scoped, tag = 'scoped memory for tpu_custom_call.1']
    #allocation5 [shape = 'u8[98304]{0}', space=vmem, size = 0x18000, scoped, tag = 'input window, operand 1, single buffered']
    #allocation6 [shape = 's32[1]{0}', space=sflag, size = 0x4, scoped, tag = 'scoped memory for tpu_custom_call.1']
    #allocation7 [shape = 'u8[1536]{0}', space=vmem, size = 0x800, scoped, tag = 'input window, operand 2, single buffered']
    #allocation8 [shape = 'u8[1572864]{0}', space=vmem, size = 0x180000, scoped, tag = 'output window, operand 0']
    %8 = vsyncpa [#allocation3], 0
    %s9 = scalar_lea.sflag [#allocation3], 1
    %10 = vsyncpa %s9, 0
    %11 = vsyncpa [#allocation6], 0
    %12 = vsyncpa [#allocation4], 0
    %s13 = scalar_lea.sflag [#allocation4], 1
    %14 = vsyncpa %s13, 0
    loop: start=0, step=1, limit=4
    $region2: #{tpu_custom_call.1} parent=1 // loop_pre_header
      _
    $region3: #{tpu_custom_call.1} parent=1 // loop_header
      %s16 = sphi 0, %s20
      %p17 = scmp.ge.s32.totalorder %s16, 4
      %s26 = sphi 0, %s28
      %s29 = sphi 0, %s26
      %s30 = sphi 0, %s29
      %s46 = sphi 0, %s30
      %s50 = sphi 0, %s50
      %s52 = sphi 0, %s50
      %s53 = sphi 0, %s52
      %s67 = sphi 0, %s53
      %s71 = sphi 0, %s71
      %s73 = sphi 0, %s71
      %s74 = sphi 0, %s73
      %s88 = sphi 0, %s74
      %s94 = sphi 0, %s96
      %s97 = sphi 0, %s94
      %s98 = sphi 0, %s97
      %s114 = sphi 0, %s98
    $region4: #{tpu_custom_call.1} parent=1 // loop_header_branch
      %19 = sbr.rel (%p17) target = $region8
    $region5: #{tpu_custom_call.1} parent=1 // loop_body
      %s21 = ssub.s32 %s16, 1
      %s22 = ssub.s32 %s16, 2
      %s23 = sadd.s32 %s16, 1
      %s24 = ssub.s32 %s16, %s23
      %p25 = scmp.eq.s32.totalorder %s24, 0
      %s27 = sadd.s32 %s26, 1
      %s28 = scalar_select %p25, %s26, %s27
      %p31 = pneg %p25
      %p32 = scmp.eq.s32.totalorder %s16, 1
      %p33 = por %p31, %p32
      %p34 = scmp.ne.s32.totalorder %s26, %s29
      %p35 = scmp.eq.s32.totalorder %s16, 0
      %p36 = por %p34, %p35
      %p37 = scmp.ne.s32.totalorder %s26, %s29
      %p38 = scmp.eq.s32.totalorder %s21, 1
      %p39 = por %p37, %p38
      %p40 = scmp.ne.s32.totalorder %s29, %s30
      %p41 = scmp.eq.s32.totalorder %s21, 0
      %p42 = por %p40, %p41
      %p43 = scmp.ne.s32.totalorder %s29, %s30
      %p44 = scmp.eq.s32.totalorder %s22, 1
      %p45 = por %p43, %p44
      %p47 = scmp.ne.s32.totalorder %s30, %s46
      %p48 = scmp.eq.s32.totalorder %s22, 0
      %p49 = por %p47, %p48
      %s51 = sadd.s32 %s50, 1
      %p54 = scmp.eq.s32.totalorder %s16, 1
      %p55 = scmp.ne.s32.totalorder %s50, %s52
      %p56 = scmp.eq.s32.totalorder %s16, 0
      %p57 = por %p55, %p56
      %p58 = scmp.ne.s32.totalorder %s50, %s52
      %p59 = scmp.eq.s32.totalorder %s21, 1
      %p60 = por %p58, %p59
      %p61 = scmp.ne.s32.totalorder %s52, %s53
      %p62 = scmp.eq.s32.totalorder %s21, 0
      %p63 = por %p61, %p62
      %p64 = scmp.ne.s32.totalorder %s52, %s53
      %p65 = scmp.eq.s32.totalorder %s22, 1
      %p66 = por %p64, %p65
      %p68 = scmp.ne.s32.totalorder %s53, %s67
      %p69 = scmp.eq.s32.totalorder %s22, 0
      %p70 = por %p68, %p69
      %s72 = sadd.s32 %s71, 1
      %p75 = scmp.eq.s32.totalorder %s16, 1
      %p76 = scmp.ne.s32.totalorder %s71, %s73
      %p77 = scmp.eq.s32.totalorder %s16, 0
      %p78 = por %p76, %p77
      %p79 = scmp.ne.s32.totalorder %s71, %s73
      %p80 = scmp.eq.s32.totalorder %s21, 1
      %p81 = por %p79, %p80
      %p82 = scmp.ne.s32.totalorder %s73, %s74
      %p83 = scmp.eq.s32.totalorder %s21, 0
      %p84 = por %p82, %p83
      %p85 = scmp.ne.s32.totalorder %s73, %s74
      %p86 = scmp.eq.s32.totalorder %s22, 1
      %p87 = por %p85, %p86
      %p89 = scmp.ne.s32.totalorder %s74, %s88
      %p90 = scmp.eq.s32.totalorder %s22, 0
      %p91 = por %p89, %p90
      %s92 = ssub.s32 %s16, %s23
      %p93 = scmp.eq.s32.totalorder %s92, 0
      %s95 = sadd.s32 %s94, 1
      %s96 = scalar_select %p93, %s94, %s95
      %p99 = pneg %p93
      %p100 = scmp.eq.s32.totalorder %s16, 1
      %p101 = por %p99, %p100
      %p102 = scmp.ne.s32.totalorder %s94, %s97
      %p103 = scmp.eq.s32.totalorder %s16, 0
      %p104 = por %p102, %p103
      %p105 = scmp.ne.s32.totalorder %s94, %s97
      %p106 = scmp.eq.s32.totalorder %s21, 1
      %p107 = por %p105, %p106
      %p108 = scmp.ne.s32.totalorder %s97, %s98
      %p109 = scmp.eq.s32.totalorder %s21, 0
      %p110 = por %p108, %p109
      %p111 = scmp.ne.s32.totalorder %s97, %s98
      %p112 = scmp.eq.s32.totalorder %s22, 1
      %p113 = por %p111, %p112
      %p115 = scmp.ne.s32.totalorder %s98, %s114
      %p116 = scmp.eq.s32.totalorder %s22, 0
      %p117 = por %p115, %p116
      %p118 = scmp.le.s32.totalorder 1, %s16
      %p119 = scmp.lt.s32.totalorder %s16, 3
      %p120 = pnand %p118, %p119
      %p121 = pneg %p120
      // Predicated region
      $region9: #{tpu_custom_call.1} parent=5 // pred_check
        _
      $region10: #{tpu_custom_call.1} parent=5 // pred_check_branch
        %123 = sbr.rel (%p120) target = $region12
      $region11: #{tpu_custom_call.1} parent=5 // pred_region
        %s124 = ssub.s32 %s16, 1
        // Predicated region
        $region13: #{tpu_custom_call.1} parent=11 // pred_check
          %p125 = pneg %p63
        $region14: #{tpu_custom_call.1} parent=11 // pred_check_branch
          %127 = sbr.rel (%p125) target = $region16
        $region15: #{tpu_custom_call.1} parent=11 // pred_region
          %s129 = ssub.s32 3072, 3072
          %130 = vsyncadd [#allocation6], %s129
          %s131 = sshll.u32 [#allocation5], 4
          %s132 = int_to_ptr.vmem [resolvable:$true] %s131
          %137 = dma.hbm_to_vmem [thread:$0]  %s1, 3072, %s132, [#allocation6], 192, 192, 12
        $region16: #{tpu_custom_call.1} parent=11 // pred_fallthru
          _
        // Predicated region
        $region17: #{tpu_custom_call.1} parent=11 // pred_check
          %p138 = pneg %p84
        $region18: #{tpu_custom_call.1} parent=11 // pred_check_branch
          %140 = sbr.rel (%p138) target = $region20
        $region19: #{tpu_custom_call.1} parent=11 // pred_region
          %s142 = ssub.s32 48, 48
          %143 = vsyncadd [#allocation6], %s142
          %s145 = sshll.u32 [#allocation7], 4
          %s146 = int_to_ptr.vmem [resolvable:$true] %s145
          %148 = dma.hbm_to_vmem [thread:$0]  %s2, 48, %s146, [#allocation6]
        $region20: #{tpu_custom_call.1} parent=11 // pred_fallthru
          _
      $region12: #{tpu_custom_call.1} parent=5 // pred_fallthru
        _
      %p149 = scmp.lt.s32.totalorder %s16, 2
      // Predicated region
      $region21: #{tpu_custom_call.1} parent=5 // pred_check
        %p150 = pneg %p149
      $region22: #{tpu_custom_call.1} parent=5 // pred_check_branch
        %152 = sbr.rel (%p150) target = $region24
      $region23: #{tpu_custom_call.1} parent=5 // pred_region
        // Predicated region
        $region25: #{tpu_custom_call.1} parent=23 // pred_check
          %p153 = pneg %p36
        $region26: #{tpu_custom_call.1} parent=23 // pred_check_branch
          %155 = sbr.rel (%p153) target = $region28
        $region27: #{tpu_custom_call.1} parent=23 // pred_region
          %s156 = sand.u32 %s26, 1
          %s157 = scalar_lea.sflag [#allocation3], %s156
          %s158 = sand.u32 %s26, 1
          %s159 = smul.addr %s158, 1024
          %s160 = scalar_lea.vmem [#allocation2], %s159
          %s161 = smul.u32 128, %s16
          %s163 = ssub.s32 16384, 16384
          %164 = vsyncadd %s157, %s163
          %s165 = smul.addr %s161, 128
          %s166 = scalar_lea.hbm %s0, %s165
          %s167 = sshll.u32 %s160, 4
          %s168 = int_to_ptr.vmem [resolvable:$true] %s167
          %173 = dma.hbm_to_vmem [thread:$0]  %s166, 16384, %s168, %s157, 128, 128, 8
        $region28: #{tpu_custom_call.1} parent=23 // pred_fallthru
          _
      $region24: #{tpu_custom_call.1} parent=5 // pred_fallthru
        _
      %p174 = scmp.le.s32.totalorder 1, %s16
      %p175 = scmp.lt.s32.totalorder %s16, 3
      %p176 = pnand %p174, %p175
      %p177 = pneg %p176
      // Predicated region
      $region29: #{tpu_custom_call.1} parent=5 // pred_check
        _
      $region30: #{tpu_custom_call.1} parent=5 // pred_check_branch
        %179 = sbr.rel (%p176) target = $region32
      $region31: #{tpu_custom_call.1} parent=5 // pred_region
        %s180 = ssub.s32 %s16, 1
        %s181 = sand.u32 %s29, 1
        %s182 = scalar_lea.sflag [#allocation3], %s181
        %s183 = sand.u32 %s29, 1
        %s184 = smul.addr %s183, 1024
        %s185 = scalar_lea.vmem [#allocation2], %s184
        // Predicated region
        $region33: #{tpu_custom_call.1} parent=31 // pred_check
          %p186 = pneg %p42
        $region34: #{tpu_custom_call.1} parent=31 // pred_check_branch
          %188 = sbr.rel (%p186) target = $region36
        $region35: #{tpu_custom_call.1} parent=31 // pred_region
          %189 = dma.done %s182, 16384
        $region36: #{tpu_custom_call.1} parent=31 // pred_fallthru
          _
        // Predicated region
        $region37: #{tpu_custom_call.1} parent=31 // pred_check
          %p190 = pneg %p63
        $region38: #{tpu_custom_call.1} parent=31 // pred_check_branch
          %192 = sbr.rel (%p190) target = $region40
        $region39: #{tpu_custom_call.1} parent=31 // pred_region
          %193 = dma.done [#allocation6], 3072
        $region40: #{tpu_custom_call.1} parent=31 // pred_fallthru
          _
        // Predicated region
        $region41: #{tpu_custom_call.1} parent=31 // pred_check
          %p194 = pneg %p84
        $region42: #{tpu_custom_call.1} parent=31 // pred_check_branch
          %196 = sbr.rel (%p194) target = $region44
        $region43: #{tpu_custom_call.1} parent=31 // pred_region
          %197 = dma.done [#allocation6], 48
        $region44: #{tpu_custom_call.1} parent=31 // pred_fallthru
          _
        %s198 = sand.u32 %s29, 1
        %s199 = scalar_lea.sflag [#allocation3], %s198
        %s200 = sand.u32 %s29, 1
        %s201 = smul.addr %s200, 1024
        %s202 = scalar_lea.vmem [#allocation2], %s201
        %p203 = pneg %p42
        %p204 = pneg %p39
        %p205 = pneg %p63
        %p206 = pneg %p60
        %p207 = pneg %p84
        %p208 = pneg %p81
        %p209 = pneg %p110
        %p210 = pneg %p107
        %s211 = sand.u32 %s97, 1
        %s212 = scalar_lea.sflag [#allocation4], %s211
        %s213 = sand.u32 %s97, 1
        %s214 = smul.addr %s213, 1536
        %s215 = scalar_lea.vmem [#allocation8], %s214
        %s216 = smul.u32 128, %s21
        %s217 = smul.u32 128, %s21
        %v219 = vld [vmem:[%s185] sm:$0xff]
        %v220 = vld [vmem:[%s185 + $0x8] sm:$0xff]
        %v221 = vld [vmem:[%s185 + $0x10] sm:$0xff]
        %v222 = vld [vmem:[%s185 + $0x18] sm:$0xff]
        %v223 = vld [vmem:[%s185 + $0x20] sm:$0xff]
        %v224 = vld [vmem:[%s185 + $0x28] sm:$0xff]
        %v225 = vld [vmem:[%s185 + $0x30] sm:$0xff]
        %v226 = vld [vmem:[%s185 + $0x38] sm:$0xff]
        %v227 = vld [vmem:[%s185 + $0x40] sm:$0xff]
        %v228 = vld [vmem:[%s185 + $0x48] sm:$0xff]
        %v229 = vld [vmem:[%s185 + $0x50] sm:$0xff]
        %v230 = vld [vmem:[%s185 + $0x58] sm:$0xff]
        %v231 = vld [vmem:[%s185 + $0x60] sm:$0xff]
        %v232 = vld [vmem:[%s185 + $0x68] sm:$0xff]
        %v233 = vld [vmem:[%s185 + $0x70] sm:$0xff]
        %v234 = vld [vmem:[%s185 + $0x78] sm:$0xff]
        %v235 = vld [vmem:[%s185 + $0x80] sm:$0xff]
        %v236 = vld [vmem:[%s185 + $0x88] sm:$0xff]
        %v237 = vld [vmem:[%s185 + $0x90] sm:$0xff]
        %v238 = vld [vmem:[%s185 + $0x98] sm:$0xff]
        %v239 = vld [vmem:[%s185 + $0xa0] sm:$0xff]
        %v240 = vld [vmem:[%s185 + $0xa8] sm:$0xff]
        %v241 = vld [vmem:[%s185 + $0xb0] sm:$0xff]
        %v242 = vld [vmem:[%s185 + $0xb8] sm:$0xff]
        %v243 = vld [vmem:[%s185 + $0xc0] sm:$0xff]
        %v244 = vld [vmem:[%s185 + $0xc8] sm:$0xff]
        %v245 = vld [vmem:[%s185 + $0xd0] sm:$0xff]
        %v246 = vld [vmem:[%s185 + $0xd8] sm:$0xff]
        %v247 = vld [vmem:[%s185 + $0xe0] sm:$0xff]
        %v248 = vld [vmem:[%s185 + $0xe8] sm:$0xff]
        %v249 = vld [vmem:[%s185 + $0xf0] sm:$0xff]
        %v250 = vld [vmem:[%s185 + $0xf8] sm:$0xff]
        %v251 = vld [vmem:[%s185 + $0x100] sm:$0xff]
        %v252 = vld [vmem:[%s185 + $0x108] sm:$0xff]
        %v253 = vld [vmem:[%s185 + $0x110] sm:$0xff]
        %v254 = vld [vmem:[%s185 + $0x118] sm:$0xff]
        %v255 = vld [vmem:[%s185 + $0x120] sm:$0xff]
        %v256 = vld [vmem:[%s185 + $0x128] sm:$0xff]
        %v257 = vld [vmem:[%s185 + $0x130] sm:$0xff]
        %v258 = vld [vmem:[%s185 + $0x138] sm:$0xff]
        %v259 = vld [vmem:[%s185 + $0x140] sm:$0xff]
        %v260 = vld [vmem:[%s185 + $0x148] sm:$0xff]
        %v261 = vld [vmem:[%s185 + $0x150] sm:$0xff]
        %v262 = vld [vmem:[%s185 + $0x158] sm:$0xff]
        %v263 = vld [vmem:[%s185 + $0x160] sm:$0xff]
        %v264 = vld [vmem:[%s185 + $0x168] sm:$0xff]
        %v265 = vld [vmem:[%s185 + $0x170] sm:$0xff]
        %v266 = vld [vmem:[%s185 + $0x178] sm:$0xff]
        %v267 = vld [vmem:[%s185 + $0x180] sm:$0xff]
        %v268 = vld [vmem:[%s185 + $0x188] sm:$0xff]
        %v269 = vld [vmem:[%s185 + $0x190] sm:$0xff]
        %v270 = vld [vmem:[%s185 + $0x198] sm:$0xff]
        %v271 = vld [vmem:[%s185 + $0x1a0] sm:$0xff]
        %v272 = vld [vmem:[%s185 + $0x1a8] sm:$0xff]
        %v273 = vld [vmem:[%s185 + $0x1b0] sm:$0xff]
        %v274 = vld [vmem:[%s185 + $0x1b8] sm:$0xff]
        %v275 = vld [vmem:[%s185 + $0x1c0] sm:$0xff]
        %v276 = vld [vmem:[%s185 + $0x1c8] sm:$0xff]
        %v277 = vld [vmem:[%s185 + $0x1d0] sm:$0xff]
        %v278 = vld [vmem:[%s185 + $0x1d8] sm:$0xff]
        %v279 = vld [vmem:[%s185 + $0x1e0] sm:$0xff]
        %v280 = vld [vmem:[%s185 + $0x1e8] sm:$0xff]
        %v281 = vld [vmem:[%s185 + $0x1f0] sm:$0xff]
        %v282 = vld [vmem:[%s185 + $0x1f8] sm:$0xff]
        %v283 = vld [vmem:[%s185 + $0x200] sm:$0xff]
        %v284 = vld [vmem:[%s185 + $0x208] sm:$0xff]
        %v285 = vld [vmem:[%s185 + $0x210] sm:$0xff]
        %v286 = vld [vmem:[%s185 + $0x218] sm:$0xff]
        %v287 = vld [vmem:[%s185 + $0x220] sm:$0xff]
        %v288 = vld [vmem:[%s185 + $0x228] sm:$0xff]
        %v289 = vld [vmem:[%s185 + $0x230] sm:$0xff]
        %v290 = vld [vmem:[%s185 + $0x238] sm:$0xff]
        %v291 = vld [vmem:[%s185 + $0x240] sm:$0xff]
        %v292 = vld [vmem:[%s185 + $0x248] sm:$0xff]
        %v293 = vld [vmem:[%s185 + $0x250] sm:$0xff]
        %v294 = vld [vmem:[%s185 + $0x258] sm:$0xff]
        %v295 = vld [vmem:[%s185 + $0x260] sm:$0xff]
        %v296 = vld [vmem:[%s185 + $0x268] sm:$0xff]
        %v297 = vld [vmem:[%s185 + $0x270] sm:$0xff]
        %v298 = vld [vmem:[%s185 + $0x278] sm:$0xff]
        %v299 = vld [vmem:[%s185 + $0x280] sm:$0xff]
        %v300 = vld [vmem:[%s185 + $0x288] sm:$0xff]
        %v301 = vld [vmem:[%s185 + $0x290] sm:$0xff]
        %v302 = vld [vmem:[%s185 + $0x298] sm:$0xff]
        %v303 = vld [vmem:[%s185 + $0x2a0] sm:$0xff]
        %v304 = vld [vmem:[%s185 + $0x2a8] sm:$0xff]
        %v305 = vld [vmem:[%s185 + $0x2b0] sm:$0xff]
        %v306 = vld [vmem:[%s185 + $0x2b8] sm:$0xff]
        %v307 = vld [vmem:[%s185 + $0x2c0] sm:$0xff]
        %v308 = vld [vmem:[%s185 + $0x2c8] sm:$0xff]
        %v309 = vld [vmem:[%s185 + $0x2d0] sm:$0xff]
        %v310 = vld [vmem:[%s185 + $0x2d8] sm:$0xff]
        %v311 = vld [vmem:[%s185 + $0x2e0] sm:$0xff]
        %v312 = vld [vmem:[%s185 + $0x2e8] sm:$0xff]
        %v313 = vld [vmem:[%s185 + $0x2f0] sm:$0xff]
        %v314 = vld [vmem:[%s185 + $0x2f8] sm:$0xff]
        %v315 = vld [vmem:[%s185 + $0x300] sm:$0xff]
        %v316 = vld [vmem:[%s185 + $0x308] sm:$0xff]
        %v317 = vld [vmem:[%s185 + $0x310] sm:$0xff]
        %v318 = vld [vmem:[%s185 + $0x318] sm:$0xff]
        %v319 = vld [vmem:[%s185 + $0x320] sm:$0xff]
        %v320 = vld [vmem:[%s185 + $0x328] sm:$0xff]
        %v321 = vld [vmem:[%s185 + $0x330] sm:$0xff]
        %v322 = vld [vmem:[%s185 + $0x338] sm:$0xff]
        %v323 = vld [vmem:[%s185 + $0x340] sm:$0xff]
        %v324 = vld [vmem:[%s185 + $0x348] sm:$0xff]
        %v325 = vld [vmem:[%s185 + $0x350] sm:$0xff]
        %v326 = vld [vmem:[%s185 + $0x358] sm:$0xff]
        %v327 = vld [vmem:[%s185 + $0x360] sm:$0xff]
        %v328 = vld [vmem:[%s185 + $0x368] sm:$0xff]
        %v329 = vld [vmem:[%s185 + $0x370] sm:$0xff]
        %v330 = vld [vmem:[%s185 + $0x378] sm:$0xff]
        %v331 = vld [vmem:[%s185 + $0x380] sm:$0xff]
        %v332 = vld [vmem:[%s185 + $0x388] sm:$0xff]
        %v333 = vld [vmem:[%s185 + $0x390] sm:$0xff]
        %v334 = vld [vmem:[%s185 + $0x398] sm:$0xff]
        %v335 = vld [vmem:[%s185 + $0x3a0] sm:$0xff]
        %v336 = vld [vmem:[%s185 + $0x3a8] sm:$0xff]
        %v337 = vld [vmem:[%s185 + $0x3b0] sm:$0xff]
        %v338 = vld [vmem:[%s185 + $0x3b8] sm:$0xff]
        %v339 = vld [vmem:[%s185 + $0x3c0] sm:$0xff]
        %v340 = vld [vmem:[%s185 + $0x3c8] sm:$0xff]
        %v341 = vld [vmem:[%s185 + $0x3d0] sm:$0xff]
        %v342 = vld [vmem:[%s185 + $0x3d8] sm:$0xff]
        %v343 = vld [vmem:[%s185 + $0x3e0] sm:$0xff]
        %v344 = vld [vmem:[%s185 + $0x3e8] sm:$0xff]
        %v345 = vld [vmem:[%s185 + $0x3f0] sm:$0xff]
        %v346 = vld [vmem:[%s185 + $0x3f8] sm:$0xff]
        %v347 = vpack.c.bf16 %v220, %v219
        %v348 = vpack.c.bf16 %v222, %v221
        %v349 = vpack.c.bf16 %v224, %v223
        %v350 = vpack.c.bf16 %v226, %v225
        %v351 = vpack.c.bf16 %v228, %v227
        %v352 = vpack.c.bf16 %v230, %v229
        %v353 = vpack.c.bf16 %v232, %v231
        %v354 = vpack.c.bf16 %v234, %v233
        %v355 = vpack.c.bf16 %v236, %v235
        %v356 = vpack.c.bf16 %v238, %v237
        %v357 = vpack.c.bf16 %v240, %v239
        %v358 = vpack.c.bf16 %v242, %v241
        %v359 = vpack.c.bf16 %v244, %v243
        %v360 = vpack.c.bf16 %v246, %v245
        %v361 = vpack.c.bf16 %v248, %v247
        %v362 = vpack.c.bf16 %v250, %v249
        %v363 = vpack.c.bf16 %v252, %v251
        %v364 = vpack.c.bf16 %v254, %v253
        %v365 = vpack.c.bf16 %v256, %v255
        %v366 = vpack.c.bf16 %v258, %v257
        %v367 = vpack.c.bf16 %v260, %v259
        %v368 = vpack.c.bf16 %v262, %v261
        %v369 = vpack.c.bf16 %v264, %v263
        %v370 = vpack.c.bf16 %v266, %v265
        %v371 = vpack.c.bf16 %v268, %v267
        %v372 = vpack.c.bf16 %v270, %v269
        %v373 = vpack.c.bf16 %v272, %v271
        %v374 = vpack.c.bf16 %v274, %v273
        %v375 = vpack.c.bf16 %v276, %v275
        %v376 = vpack.c.bf16 %v278, %v277
        %v377 = vpack.c.bf16 %v280, %v279
        %v378 = vpack.c.bf16 %v282, %v281
        %v379 = vpack.c.bf16 %v284, %v283
        %v380 = vpack.c.bf16 %v286, %v285
        %v381 = vpack.c.bf16 %v288, %v287
        %v382 = vpack.c.bf16 %v290, %v289
        %v383 = vpack.c.bf16 %v292, %v291
        %v384 = vpack.c.bf16 %v294, %v293
        %v385 = vpack.c.bf16 %v296, %v295
        %v386 = vpack.c.bf16 %v298, %v297
        %v387 = vpack.c.bf16 %v300, %v299
        %v388 = vpack.c.bf16 %v302, %v301
        %v389 = vpack.c.bf16 %v304, %v303
        %v390 = vpack.c.bf16 %v306, %v305
        %v391 = vpack.c.bf16 %v308, %v307
        %v392 = vpack.c.bf16 %v310, %v309
        %v393 = vpack.c.bf16 %v312, %v311
        %v394 = vpack.c.bf16 %v314, %v313
        %v395 = vpack.c.bf16 %v316, %v315
        %v396 = vpack.c.bf16 %v318, %v317
        %v397 = vpack.c.bf16 %v320, %v319
        %v398 = vpack.c.bf16 %v322, %v321
        %v399 = vpack.c.bf16 %v324, %v323
        %v400 = vpack.c.bf16 %v326, %v325
        %v401 = vpack.c.bf16 %v328, %v327
        %v402 = vpack.c.bf16 %v330, %v329
        %v403 = vpack.c.bf16 %v332, %v331
        %v404 = vpack.c.bf16 %v334, %v333
        %v405 = vpack.c.bf16 %v336, %v335
        %v406 = vpack.c.bf16 %v338, %v337
        %v407 = vpack.c.bf16 %v340, %v339
        %v408 = vpack.c.bf16 %v342, %v341
        %v409 = vpack.c.bf16 %v344, %v343
        %v410 = vpack.c.bf16 %v346, %v345
        %v411 = vld [vmem:[#allocation5] sm:$0xff]
        %v412 = vld [vmem:[#allocation5 + $0x8] sm:$0xf]
        %v413 = vld [vmem:[#allocation5 + $0xc] sm:$0xff]
        %v414 = vld [vmem:[#allocation5 + $0x14] sm:$0xf]
        %v415 = vld [vmem:[#allocation5 + $0x18] sm:$0xff]
        %v416 = vld [vmem:[#allocation5 + $0x20] sm:$0xf]
        %v417 = vld [vmem:[#allocation5 + $0x24] sm:$0xff]
        %v418 = vld [vmem:[#allocation5 + $0x2c] sm:$0xf]
        %v419 = vld [vmem:[#allocation5 + $0x30] sm:$0xff]
        %v420 = vld [vmem:[#allocation5 + $0x38] sm:$0xf]
        %v421 = vld [vmem:[#allocation5 + $0x3c] sm:$0xff]
        %v422 = vld [vmem:[#allocation5 + $0x44] sm:$0xf]
        %v423 = vld [vmem:[#allocation5 + $0x48] sm:$0xff]
        %v424 = vld [vmem:[#allocation5 + $0x50] sm:$0xf]
        %v425 = vld [vmem:[#allocation5 + $0x54] sm:$0xff]
        %v426 = vld [vmem:[#allocation5 + $0x5c] sm:$0xf]
        %v427 = vld [vmem:[#allocation5 + $0x60] sm:$0xff]
        %v428 = vld [vmem:[#allocation5 + $0x68] sm:$0xf]
        %v429 = vld [vmem:[#allocation5 + $0x6c] sm:$0xff]
        %v430 = vld [vmem:[#allocation5 + $0x74] sm:$0xf]
        %v431 = vld [vmem:[#allocation5 + $0x78] sm:$0xff]
        %v432 = vld [vmem:[#allocation5 + $0x80] sm:$0xf]
        %v433 = vld [vmem:[#allocation5 + $0x84] sm:$0xff]
        %v434 = vld [vmem:[#allocation5 + $0x8c] sm:$0xf]
        %v435 = vld [vmem:[#allocation5 + $0x90] sm:$0xff]
        %v436 = vld [vmem:[#allocation5 + $0x98] sm:$0xf]
        %v437 = vld [vmem:[#allocation5 + $0x9c] sm:$0xff]
        %v438 = vld [vmem:[#allocation5 + $0xa4] sm:$0xf]
        %v439 = vld [vmem:[#allocation5 + $0xa8] sm:$0xff]
        %v440 = vld [vmem:[#allocation5 + $0xb0] sm:$0xf]
        %v441 = vld [vmem:[#allocation5 + $0xb4] sm:$0xff]
        %v442 = vld [vmem:[#allocation5 + $0xbc] sm:$0xf]
        %v443 = vld [vmem:[#allocation7] sm:$0x7]
        %v445 = vlaneseq
        %v446 = vshrl.u32 %v445, 7
        %v447 = vsub.s32 0, %v446
        %v448 = vrot.slane %v443, %v447
        %v449 = vlaneseq
        %v450 = vshrl.u32 %v449, 7
        %v451 = vsub.s32 1, %v450
        %v452 = vrot.slane %v443, %v451
        %v453 = vlaneseq
        %v454 = vshrl.u32 %v453, 7
        %v455 = vsub.s32 2, %v454
        %v456 = vrot.slane %v443, %v455
        %v492 = vunpack.c.l.b16 %v411
        %v493 = vunpack.c.h.b16 %v411
        %v494 = vunpack.c.l.b16 %v412
        %v495 = vunpack.c.l.b16 %v413
        %v496 = vunpack.c.h.b16 %v413
        %v497 = vunpack.c.l.b16 %v414
        %v498 = vunpack.c.l.b16 %v415
        %v499 = vunpack.c.h.b16 %v415
        %v500 = vunpack.c.l.b16 %v416
        %v501 = vunpack.c.l.b16 %v417
        %v502 = vunpack.c.h.b16 %v417
        %v503 = vunpack.c.l.b16 %v418
        %v504 = vunpack.c.l.b16 %v419
        %v505 = vunpack.c.h.b16 %v419
        %v506 = vunpack.c.l.b16 %v420
        %v507 = vunpack.c.l.b16 %v421
        %v508 = vunpack.c.h.b16 %v421
        %v509 = vunpack.c.l.b16 %v422
        %v510 = vunpack.c.l.b16 %v423
        %v511 = vunpack.c.h.b16 %v423
        %v512 = vunpack.c.l.b16 %v424
        %v513 = vunpack.c.l.b16 %v425
        %v514 = vunpack.c.h.b16 %v425
        %v515 = vunpack.c.l.b16 %v426
        %v516 = vunpack.c.l.b16 %v427
        %v517 = vunpack.c.h.b16 %v427
        %v518 = vunpack.c.l.b16 %v428
        %v519 = vunpack.c.l.b16 %v429
        %v520 = vunpack.c.h.b16 %v429
        %v521 = vunpack.c.l.b16 %v430
        %v522 = vunpack.c.l.b16 %v431
        %v523 = vunpack.c.h.b16 %v431
        %v524 = vunpack.c.l.b16 %v432
        %v525 = vunpack.c.l.b16 %v433
        %v526 = vunpack.c.h.b16 %v433
        %v527 = vunpack.c.l.b16 %v434
        %v528 = vunpack.c.l.b16 %v435
        %v529 = vunpack.c.h.b16 %v435
        %v530 = vunpack.c.l.b16 %v436
        %v531 = vunpack.c.l.b16 %v437
        %v532 = vunpack.c.h.b16 %v437
        %v533 = vunpack.c.l.b16 %v438
        %v534 = vunpack.c.l.b16 %v439
        %v535 = vunpack.c.h.b16 %v439
        %v536 = vunpack.c.l.b16 %v440
        %v537 = vunpack.c.l.b16 %v441
        %v538 = vunpack.c.h.b16 %v441
        %v539 = vunpack.c.l.b16 %v442
        %v540 = vpack.c.b16 %v495, %v492
        %v541 = vpack.c.b16 %v496, %v493
        %v542 = vpack.c.b16 %v497, %v494
        %v543 = vpack.c.b16 %v501, %v498
        %v544 = vpack.c.b16 %v502, %v499
        %v545 = vpack.c.b16 %v503, %v500
        %v546 = vpack.c.b16 %v507, %v504
        %v547 = vpack.c.b16 %v508, %v505
        %v548 = vpack.c.b16 %v509, %v506
        %v549 = vpack.c.b16 %v513, %v510
        %v550 = vpack.c.b16 %v514, %v511
        %v551 = vpack.c.b16 %v515, %v512
        %v552 = vpack.c.b16 %v519, %v516
        %v553 = vpack.c.b16 %v520, %v517
        %v554 = vpack.c.b16 %v521, %v518
        %v555 = vpack.c.b16 %v525, %v522
        %v556 = vpack.c.b16 %v526, %v523
        %v557 = vpack.c.b16 %v527, %v524
        %v558 = vpack.c.b16 %v531, %v528
        %v559 = vpack.c.b16 %v532, %v529
        %v560 = vpack.c.b16 %v533, %v530
        %v561 = vpack.c.b16 %v537, %v534
        %v562 = vpack.c.b16 %v538, %v535
        %v563 = vpack.c.b16 %v539, %v536
        %588 = vmatprep.subr.bf16.mxu0 %v541
        %589 = vmatpush1.bf16.msra.mxu0 %v540
        %590 = vmatprep.subr.bf16.mxu0 %v544
        %591 = vmatpush1.bf16.msra.mxu0 %v543
        %592 = vmatprep.subr.bf16.mxu0 %v547
        %593 = vmatpush1.bf16.msra.mxu0 %v546
        %594 = vmatprep.subr.bf16.mxu0 %v550
        %595 = vmatpush1.bf16.msra.mxu0 %v549
        %596 = vmatprep.subr.bf16.mxu0 %v553
        %597 = vmatpush1.bf16.msra.mxu0 %v552
        %598 = vmatprep.subr.bf16.mxu0 %v556
        %599 = vmatpush1.bf16.msra.mxu0 %v555
        %600 = vmatprep.subr.bf16.mxu0 %v559
        %601 = vmatpush1.bf16.msra.mxu0 %v558
        %602 = vmatprep.subr.bf16.mxu0 %v562
        %603 = vmatpush1.bf16.msra.mxu0 %v561
        %604 = vmatprep.subr.bf16.mxu0 0
        %605 = vmatpush1.bf16.msra.mxu0 0
        %606 = vmatprep.subr.bf16.mxu0 0
        %607 = vmatpush1.bf16.msra.mxu0 0
        %608 = vmatprep.subr.bf16.mxu0 0
        %609 = vmatpush1.bf16.msra.mxu0 0
        %610 = vmatprep.subr.bf16.mxu0 0
        %611 = vmatpush1.bf16.msra.mxu0 0
        %612 = vmatprep.subr.bf16.mxu0 0
        %613 = vmatpush1.bf16.msra.mxu0 0
        %614 = vmatprep.subr.bf16.mxu0 0
        %615 = vmatpush1.bf16.msra.mxu0 0
        %616 = vmatprep.subr.bf16.mxu0 0
        %617 = vmatpush1.bf16.msra.mxu0 0
        %618 = vmatprep.subr.bf16.mxu0 0
        %619 = vmatpush1.bf16.msra.mxu0 0
        %620 = vmatprep.mubr.bf16.mxu0 0
        %621 = vmatmul.mubr.bf16.gmra.mrb[0].mxu0 %v347
        %v622 = vpop.f32.mrb[0].mxu0
        %v623 = vadd.f32 %v448, %v622
        %v624 = vpop.f32.mrb[0].mxu0
        %v625 = vadd.f32 %v452, %v624
        %v626 = vpop.f32.mrb[0].mxu0
        %v627 = vadd.f32 %v448, %v626
        %v628 = vpop.f32.mrb[0].mxu0
        %v629 = vadd.f32 %v452, %v628
        %630 = vmatprep.mubr.bf16.mxu0 0
        %631 = vmatmul.mubr.bf16.gmra.mrb[0].mxu0 %v348
        %v632 = vpop.f32.mrb[0].mxu0
        %v633 = vadd.f32 %v448, %v632
        %v634 = vpop.f32.mrb[0].mxu0
        %v635 = vadd.f32 %v452, %v634
        %v636 = vpop.f32.mrb[0].mxu0
        %v637 = vadd.f32 %v448, %v636
        %v638 = vpop.f32.mrb[0].mxu0
        %v639 = vadd.f32 %v452, %v638
        %640 = vmatprep.mubr.bf16.mxu0 0
        %641 = vmatmul.mubr.bf16.gmra.mrb[0].mxu0 %v349
        %v642 = vpop.f32.mrb[0].mxu0
        %v643 = vadd.f32 %v448, %v642
        %v644 = vpop.f32.mrb[0].mxu0
        %v645 = vadd.f32 %v452, %v644
        %v646 = vpop.f32.mrb[0].mxu0
        %v647 = vadd.f32 %v448, %v646
        %v648 = vpop.f32.mrb[0].mxu0
        %v649 = vadd.f32 %v452, %v648
        %650 = vmatprep.mubr.bf16.mxu0 0
        %651 = vmatmul.mubr.bf16.gmra.mrb[0].mxu0 %v350
        %v652 = vpop.f32.mrb[0].mxu0
        %v653 = vadd.f32 %v448, %v652
        %v654 = vpop.f32.mrb[0].mxu0
        %v655 = vadd.f32 %v452, %v654
        %v656 = vpop.f32.mrb[0].mxu0
        %v657 = vadd.f32 %v448, %v656
        %v658 = vpop.f32.mrb[0].mxu0
        %v659 = vadd.f32 %v452, %v658
        %660 = vmatprep.mubr.bf16.mxu0 0
        %661 = vmatmul.mubr.bf16.gmra.mrb[0].mxu0 %v351
        %v662 = vpop.f32.mrb[0].mxu0
        %v663 = vadd.f32 %v448, %v662
        %v664 = vpop.f32.mrb[0].mxu0
        %v665 = vadd.f32 %v452, %v664
        %v666 = vpop.f32.mrb[0].mxu0
        %v667 = vadd.f32 %v448, %v666
        %v668 = vpop.f32.mrb[0].mxu0
        %v669 = vadd.f32 %v452, %v668
        %670 = vmatprep.mubr.bf16.mxu0 0
        %671 = vmatmul.mubr.bf16.gmra.mrb[0].mxu0 %v352
        %v672 = vpop.f32.mrb[0].mxu0
        %v673 = vadd.f32 %v448, %v672
        %v674 = vpop.f32.mrb[0].mxu0
        %v675 = vadd.f32 %v452, %v674
        %v676 = vpop.f32.mrb[0].mxu0
        %v677 = vadd.f32 %v448, %v676
        %v678 = vpop.f32.mrb[0].mxu0
        %v679 = vadd.f32 %v452, %v678
        %680 = vmatprep.mubr.bf16.mxu0 0
        %681 = vmatmul.mubr.bf16.gmra.mrb[0].mxu0 %v353
        %v682 = vpop.f32.mrb[0].mxu0
        %v683 = vadd.f32 %v448, %v682
        %v684 = vpop.f32.mrb[0].mxu0
        %v685 = vadd.f32 %v452, %v684
        %v686 = vpop.f32.mrb[0].mxu0
        %v687 = vadd.f32 %v448, %v686
        %v688 = vpop.f32.mrb[0].mxu0
        %v689 = vadd.f32 %v452, %v688
        %690 = vmatprep.mubr.bf16.mxu0 0
        %691 = vmatmul.mubr.bf16.gmra.mrb[0].mxu0 %v354
        %v692 = vpop.f32.mrb[0].mxu0
        %v693 = vadd.f32 %v448, %v692
        %v694 = vpop.f32.mrb[0].mxu0
        %v695 = vadd.f32 %v452, %v694
        %v696 = vpop.f32.mrb[0].mxu0
        %v697 = vadd.f32 %v448, %v696
        %v698 = vpop.f32.mrb[0].mxu0
        %v699 = vadd.f32 %v452, %v698
        %700 = vmatprep.mubr.bf16.mxu0 0
        %701 = vmatmul.mubr.bf16.gmra.mrb[0].mxu0 %v355
        %v702 = vpop.f32.mrb[0].mxu0
        %v703 = vadd.f32 %v448, %v702
        %v704 = vpop.f32.mrb[0].mxu0
        %v705 = vadd.f32 %v452, %v704
        %v706 = vpop.f32.mrb[0].mxu0
        %v707 = vadd.f32 %v448, %v706
        %v708 = vpop.f32.mrb[0].mxu0
        %v709 = vadd.f32 %v452, %v708
        %710 = vmatprep.mubr.bf16.mxu0 0
        %711 = vmatmul.mubr.bf16.gmra.mrb[0].mxu0 %v356
        %v712 = vpop.f32.mrb[0].mxu0
        %v713 = vadd.f32 %v448, %v712
        %v714 = vpop.f32.mrb[0].mxu0
        %v715 = vadd.f32 %v452, %v714
        %v716 = vpop.f32.mrb[0].mxu0
        %v717 = vadd.f32 %v448, %v716
        %v718 = vpop.f32.mrb[0].mxu0
        %v719 = vadd.f32 %v452, %v718
        %720 = vmatprep.mubr.bf16.mxu0 0
        %721 = vmatmul.mubr.bf16.gmra.mrb[0].mxu0 %v357
        %v722 = vpop.f32.mrb[0].mxu0
        %v723 = vadd.f32 %v448, %v722
        %v724 = vpop.f32.mrb[0].mxu0
        %v725 = vadd.f32 %v452, %v724
        %v726 = vpop.f32.mrb[0].mxu0
        %v727 = vadd.f32 %v448, %v726
        %v728 = vpop.f32.mrb[0].mxu0
        %v729 = vadd.f32 %v452, %v728
        %730 = vmatprep.mubr.bf16.mxu0 0
        %731 = vmatmul.mubr.bf16.gmra.mrb[0].mxu0 %v358
        %v732 = vpop.f32.mrb[0].mxu0
        %v733 = vadd.f32 %v448, %v732
        %v734 = vpop.f32.mrb[0].mxu0
        %v735 = vadd.f32 %v452, %v734
        %v736 = vpop.f32.mrb[0].mxu0
        %v737 = vadd.f32 %v448, %v736
        %v738 = vpop.f32.mrb[0].mxu0
        %v739 = vadd.f32 %v452, %v738
        %740 = vmatprep.mubr.bf16.mxu0 0
        %741 = vmatmul.mubr.bf16.gmra.mrb[0].mxu0 %v359
        %v742 = vpop.f32.mrb[0].mxu0
        %v743 = vadd.f32 %v448, %v742
        %v744 = vpop.f32.mrb[0].mxu0
        %v745 = vadd.f32 %v452, %v744
        %v746 = vpop.f32.mrb[0].mxu0
        %v747 = vadd.f32 %v448, %v746
        %v748 = vpop.f32.mrb[0].mxu0
        %v749 = vadd.f32 %v452, %v748
        %750 = vmatprep.mubr.bf16.mxu0 0
        %751 = vmatmul.mubr.bf16.gmra.mrb[0].mxu0 %v360
        %v752 = vpop.f32.mrb[0].mxu0
        %v753 = vadd.f32 %v448, %v752
        %v754 = vpop.f32.mrb[0].mxu0
        %v755 = vadd.f32 %v452, %v754
        %v756 = vpop.f32.mrb[0].mxu0
        %v757 = vadd.f32 %v448, %v756
        %v758 = vpop.f32.mrb[0].mxu0
        %v759 = vadd.f32 %v452, %v758
        %760 = vmatprep.mubr.bf16.mxu0 0
        %761 = vmatmul.mubr.bf16.gmra.mrb[0].mxu0 %v361
        %v762 = vpop.f32.mrb[0].mxu0
        %v763 = vadd.f32 %v448, %v762
        %v764 = vpop.f32.mrb[0].mxu0
        %v765 = vadd.f32 %v452, %v764
        %v766 = vpop.f32.mrb[0].mxu0
        %v767 = vadd.f32 %v448, %v766
        %v768 = vpop.f32.mrb[0].mxu0
        %v769 = vadd.f32 %v452, %v768
        %770 = vmatprep.mubr.bf16.mxu0 0
        %771 = vmatmul.mubr.bf16.gmra.mrb[0].mxu0 %v362
        %v772 = vpop.f32.mrb[0].mxu0
        %v773 = vadd.f32 %v448, %v772
        %v774 = vpop.f32.mrb[0].mxu0
        %v775 = vadd.f32 %v452, %v774
        %v776 = vpop.f32.mrb[0].mxu0
        %v777 = vadd.f32 %v448, %v776
        %v778 = vpop.f32.mrb[0].mxu0
        %v779 = vadd.f32 %v452, %v778
        %780 = vmatprep.mubr.bf16.mxu0 0
        %781 = vmatmul.mubr.bf16.gmra.mrb[0].mxu0 %v363
        %v782 = vpop.f32.mrb[0].mxu0
        %v783 = vadd.f32 %v448, %v782
        %v784 = vpop.f32.mrb[0].mxu0
        %v785 = vadd.f32 %v452, %v784
        %v786 = vpop.f32.mrb[0].mxu0
        %v787 = vadd.f32 %v448, %v786
        %v788 = vpop.f32.mrb[0].mxu0
        %v789 = vadd.f32 %v452, %v788
        %790 = vmatprep.mubr.bf16.mxu0 0
        %791 = vmatmul.mubr.bf16.gmra.mrb[0].mxu0 %v364
        %v792 = vpop.f32.mrb[0].mxu0
        %v793 = vadd.f32 %v448, %v792
        %v794 = vpop.f32.mrb[0].mxu0
        %v795 = vadd.f32 %v452, %v794
        %v796 = vpop.f32.mrb[0].mxu0
        %v797 = vadd.f32 %v448, %v796
        %v798 = vpop.f32.mrb[0].mxu0
        %v799 = vadd.f32 %v452, %v798
        %800 = vmatprep.mubr.bf16.mxu0 0
        %801 = vmatmul.mubr.bf16.gmra.mrb[0].mxu0 %v365
        %v802 = vpop.f32.mrb[0].mxu0
        %v803 = vadd.f32 %v448, %v802
        %v804 = vpop.f32.mrb[0].mxu0
        %v805 = vadd.f32 %v452, %v804
        %v806 = vpop.f32.mrb[0].mxu0
        %v807 = vadd.f32 %v448, %v806
        %v808 = vpop.f32.mrb[0].mxu0
        %v809 = vadd.f32 %v452, %v808
        %810 = vmatprep.mubr.bf16.mxu0 0
        %811 = vmatmul.mubr.bf16.gmra.mrb[0].mxu0 %v366
        %v812 = vpop.f32.mrb[0].mxu0
        %v813 = vadd.f32 %v448, %v812
        %v814 = vpop.f32.mrb[0].mxu0
        %v815 = vadd.f32 %v452, %v814
        %v816 = vpop.f32.mrb[0].mxu0
        %v817 = vadd.f32 %v448, %v816
        %v818 = vpop.f32.mrb[0].mxu0
        %v819 = vadd.f32 %v452, %v818
        %820 = vmatprep.mubr.bf16.mxu0 0
        %821 = vmatmul.mubr.bf16.gmra.mrb[0].mxu0 %v367
        %v822 = vpop.f32.mrb[0].mxu0
        %v823 = vadd.f32 %v448, %v822
        %v824 = vpop.f32.mrb[0].mxu0
        %v825 = vadd.f32 %v452, %v824
        %v826 = vpop.f32.mrb[0].mxu0
        %v827 = vadd.f32 %v448, %v826
        %v828 = vpop.f32.mrb[0].mxu0
        %v829 = vadd.f32 %v452, %v828
        %830 = vmatprep.mubr.bf16.mxu0 0
        %831 = vmatmul.mubr.bf16.gmra.mrb[0].mxu0 %v368
        %v832 = vpop.f32.mrb[0].mxu0
        %v833 = vadd.f32 %v448, %v832
        %v834 = vpop.f32.mrb[0].mxu0
        %v835 = vadd.f32 %v452, %v834
        %v836 = vpop.f32.mrb[0].mxu0
        %v837 = vadd.f32 %v448, %v836
        %v838 = vpop.f32.mrb[0].mxu0
        %v839 = vadd.f32 %v452, %v838
        %840 = vmatprep.mubr.bf16.mxu0 0
        %841 = vmatmul.mubr.bf16.gmra.mrb[0].mxu0 %v369
        %v842 = vpop.f32.mrb[0].mxu0
        %v843 = vadd.f32 %v448, %v842
        %v844 = vpop.f32.mrb[0].mxu0
        %v845 = vadd.f32 %v452, %v844
        %v846 = vpop.f32.mrb[0].mxu0
        %v847 = vadd.f32 %v448, %v846
        %v848 = vpop.f32.mrb[0].mxu0
        %v849 = vadd.f32 %v452, %v848
        %850 = vmatprep.mubr.bf16.mxu0 0
        %851 = vmatmul.mubr.bf16.gmra.mrb[0].mxu0 %v370
        %v852 = vpop.f32.mrb[0].mxu0
        %v853 = vadd.f32 %v448, %v852
        %v854 = vpop.f32.mrb[0].mxu0
        %v855 = vadd.f32 %v452, %v854
        %v856 = vpop.f32.mrb[0].mxu0
        %v857 = vadd.f32 %v448, %v856
        %v858 = vpop.f32.mrb[0].mxu0
        %v859 = vadd.f32 %v452, %v858
        %860 = vmatprep.mubr.bf16.mxu0 0
        %861 = vmatmul.mubr.bf16.gmra.mrb[0].mxu0 %v371
        %v862 = vpop.f32.mrb[0].mxu0
        %v863 = vadd.f32 %v448, %v862
        %v864 = vpop.f32.mrb[0].mxu0
        %v865 = vadd.f32 %v452, %v864
        %v866 = vpop.f32.mrb[0].mxu0
        %v867 = vadd.f32 %v448, %v866
        %v868 = vpop.f32.mrb[0].mxu0
        %v869 = vadd.f32 %v452, %v868
        %870 = vmatprep.mubr.bf16.mxu0 0
        %871 = vmatmul.mubr.bf16.gmra.mrb[0].mxu0 %v372
        %v872 = vpop.f32.mrb[0].mxu0
        %v873 = vadd.f32 %v448, %v872
        %v874 = vpop.f32.mrb[0].mxu0
        %v875 = vadd.f32 %v452, %v874
        %v876 = vpop.f32.mrb[0].mxu0
        %v877 = vadd.f32 %v448, %v876
        %v878 = vpop.f32.mrb[0].mxu0
        %v879 = vadd.f32 %v452, %v878
        %880 = vmatprep.mubr.bf16.mxu0 0
        %881 = vmatmul.mubr.bf16.gmra.mrb[0].mxu0 %v373
        %v882 = vpop.f32.mrb[0].mxu0
        %v883 = vadd.f32 %v448, %v882
        %v884 = vpop.f32.mrb[0].mxu0
        %v885 = vadd.f32 %v452, %v884
        %v886 = vpop.f32.mrb[0].mxu0
        %v887 = vadd.f32 %v448, %v886
        %v888 = vpop.f32.mrb[0].mxu0
        %v889 = vadd.f32 %v452, %v888
        %890 = vmatprep.mubr.bf16.mxu0 0
        %891 = vmatmul.mubr.bf16.gmra.mrb[0].mxu0 %v374
        %v892 = vpop.f32.mrb[0].mxu0
        %v893 = vadd.f32 %v448, %v892
        %v894 = vpop.f32.mrb[0].mxu0
        %v895 = vadd.f32 %v452, %v894
        %v896 = vpop.f32.mrb[0].mxu0
        %v897 = vadd.f32 %v448, %v896
        %v898 = vpop.f32.mrb[0].mxu0
        %v899 = vadd.f32 %v452, %v898
        %900 = vmatprep.mubr.bf16.mxu0 0
        %901 = vmatmul.mubr.bf16.gmra.mrb[0].mxu0 %v375
        %v902 = vpop.f32.mrb[0].mxu0
        %v903 = vadd.f32 %v448, %v902
        %v904 = vpop.f32.mrb[0].mxu0
        %v905 = vadd.f32 %v452, %v904
        %v906 = vpop.f32.mrb[0].mxu0
        %v907 = vadd.f32 %v448, %v906
        %v908 = vpop.f32.mrb[0].mxu0
        %v909 = vadd.f32 %v452, %v908
        %910 = vmatprep.mubr.bf16.mxu0 0
        %911 = vmatmul.mubr.bf16.gmra.mrb[0].mxu0 %v376
        %v912 = vpop.f32.mrb[0].mxu0
        %v913 = vadd.f32 %v448, %v912
        %v914 = vpop.f32.mrb[0].mxu0
        %v915 = vadd.f32 %v452, %v914
        %v916 = vpop.f32.mrb[0].mxu0
        %v917 = vadd.f32 %v448, %v916
        %v918 = vpop.f32.mrb[0].mxu0
        %v919 = vadd.f32 %v452, %v918
        %920 = vmatprep.mubr.bf16.mxu0 0
        %921 = vmatmul.mubr.bf16.gmra.mrb[0].mxu0 %v377
        %v922 = vpop.f32.mrb[0].mxu0
        %v923 = vadd.f32 %v448, %v922
        %v924 = vpop.f32.mrb[0].mxu0
        %v925 = vadd.f32 %v452, %v924
        %v926 = vpop.f32.mrb[0].mxu0
        %v927 = vadd.f32 %v448, %v926
        %v928 = vpop.f32.mrb[0].mxu0
        %v929 = vadd.f32 %v452, %v928
        %930 = vmatprep.mubr.bf16.mxu0 0
        %931 = vmatmul.mubr.bf16.gmra.mrb[0].mxu0 %v378
        %v932 = vpop.f32.mrb[0].mxu0
        %v933 = vadd.f32 %v448, %v932
        %v934 = vpop.f32.mrb[0].mxu0
        %v935 = vadd.f32 %v452, %v934
        %v936 = vpop.f32.mrb[0].mxu0
        %v937 = vadd.f32 %v448, %v936
        %v938 = vpop.f32.mrb[0].mxu0
        %v939 = vadd.f32 %v452, %v938
        %940 = vmatprep.mubr.bf16.mxu0 0
        %941 = vmatmul.mubr.bf16.gmra.mrb[0].mxu0 %v379
        %v942 = vpop.f32.mrb[0].mxu0
        %v943 = vadd.f32 %v448, %v942
        %v944 = vpop.f32.mrb[0].mxu0
        %v945 = vadd.f32 %v452, %v944
        %v946 = vpop.f32.mrb[0].mxu0
        %v947 = vadd.f32 %v448, %v946
        %v948 = vpop.f32.mrb[0].mxu0
        %v949 = vadd.f32 %v452, %v948
        %950 = vmatprep.mubr.bf16.mxu0 0
        %951 = vmatmul.mubr.bf16.gmra.mrb[0].mxu0 %v380
        %v952 = vpop.f32.mrb[0].mxu0
        %v953 = vadd.f32 %v448, %v952
        %v954 = vpop.f32.mrb[0].mxu0
        %v955 = vadd.f32 %v452, %v954
        %v956 = vpop.f32.mrb[0].mxu0
        %v957 = vadd.f32 %v448, %v956
        %v958 = vpop.f32.mrb[0].mxu0
        %v959 = vadd.f32 %v452, %v958
        %960 = vmatprep.mubr.bf16.mxu0 0
        %961 = vmatmul.mubr.bf16.gmra.mrb[0].mxu0 %v381
        %v962 = vpop.f32.mrb[0].mxu0
        %v963 = vadd.f32 %v448, %v962
        %v964 = vpop.f32.mrb[0].mxu0
        %v965 = vadd.f32 %v452, %v964
        %v966 = vpop.f32.mrb[0].mxu0
        %v967 = vadd.f32 %v448, %v966
        %v968 = vpop.f32.mrb[0].mxu0
        %v969 = vadd.f32 %v452, %v968
        %970 = vmatprep.mubr.bf16.mxu0 0
        %971 = vmatmul.mubr.bf16.gmra.mrb[0].mxu0 %v382
        %v972 = vpop.f32.mrb[0].mxu0
        %v973 = vadd.f32 %v448, %v972
        %v974 = vpop.f32.mrb[0].mxu0
        %v975 = vadd.f32 %v452, %v974
        %v976 = vpop.f32.mrb[0].mxu0
        %v977 = vadd.f32 %v448, %v976
        %v978 = vpop.f32.mrb[0].mxu0
        %v979 = vadd.f32 %v452, %v978
        %980 = vmatprep.mubr.bf16.mxu0 0
        %981 = vmatmul.mubr.bf16.gmra.mrb[0].mxu0 %v383
        %v982 = vpop.f32.mrb[0].mxu0
        %v983 = vadd.f32 %v448, %v982
        %v984 = vpop.f32.mrb[0].mxu0
        %v985 = vadd.f32 %v452, %v984
        %v986 = vpop.f32.mrb[0].mxu0
        %v987 = vadd.f32 %v448, %v986
        %v988 = vpop.f32.mrb[0].mxu0
        %v989 = vadd.f32 %v452, %v988
        %990 = vmatprep.mubr.bf16.mxu0 0
        %991 = vmatmul.mubr.bf16.gmra.mrb[0].mxu0 %v384
        %v992 = vpop.f32.mrb[0].mxu0
        %v993 = vadd.f32 %v448, %v992
        %v994 = vpop.f32.mrb[0].mxu0
        %v995 = vadd.f32 %v452, %v994
        %v996 = vpop.f32.mrb[0].mxu0
        %v997 = vadd.f32 %v448, %v996
        %v998 = vpop.f32.mrb[0].mxu0
        %v999 = vadd.f32 %v452, %v998
        %1000 = vmatprep.mubr.bf16.mxu0 0
        %1001 = vmatmul.mubr.bf16.gmra.mrb[0].mxu0 %v385
        %v1002 = vpop.f32.mrb[0].mxu0
        %v1003 = vadd.f32 %v448, %v1002
        %v1004 = vpop.f32.mrb[0].mxu0
        %v1005 = vadd.f32 %v452, %v1004
        %v1006 = vpop.f32.mrb[0].mxu0
        %v1007 = vadd.f32 %v448, %v1006
        %v1008 = vpop.f32.mrb[0].mxu0
        %v1009 = vadd.f32 %v452, %v1008
        %1010 = vmatprep.mubr.bf16.mxu0 0
        %1011 = vmatmul.mubr.bf16.gmra.mrb[0].mxu0 %v386
        %v1012 = vpop.f32.mrb[0].mxu0
        %v1013 = vadd.f32 %v448, %v1012
        %v1014 = vpop.f32.mrb[0].mxu0
        %v1015 = vadd.f32 %v452, %v1014
        %v1016 = vpop.f32.mrb[0].mxu0
        %v1017 = vadd.f32 %v448, %v1016
        %v1018 = vpop.f32.mrb[0].mxu0
        %v1019 = vadd.f32 %v452, %v1018
        %1020 = vmatprep.mubr.bf16.mxu0 0
        %1021 = vmatmul.mubr.bf16.gmra.mrb[0].mxu0 %v387
        %v1022 = vpop.f32.mrb[0].mxu0
        %v1023 = vadd.f32 %v448, %v1022
        %v1024 = vpop.f32.mrb[0].mxu0
        %v1025 = vadd.f32 %v452, %v1024
        %v1026 = vpop.f32.mrb[0].mxu0
        %v1027 = vadd.f32 %v448, %v1026
        %v1028 = vpop.f32.mrb[0].mxu0
        %v1029 = vadd.f32 %v452, %v1028
        %1030 = vmatprep.mubr.bf16.mxu0 0
        %1031 = vmatmul.mubr.bf16.gmra.mrb[0].mxu0 %v388
        %v1032 = vpop.f32.mrb[0].mxu0
        %v1033 = vadd.f32 %v448, %v1032
        %v1034 = vpop.f32.mrb[0].mxu0
        %v1035 = vadd.f32 %v452, %v1034
        %v1036 = vpop.f32.mrb[0].mxu0
        %v1037 = vadd.f32 %v448, %v1036
        %v1038 = vpop.f32.mrb[0].mxu0
        %v1039 = vadd.f32 %v452, %v1038
        %1040 = vmatprep.mubr.bf16.mxu0 0
        %1041 = vmatmul.mubr.bf16.gmra.mrb[0].mxu0 %v389
        %v1042 = vpop.f32.mrb[0].mxu0
        %v1043 = vadd.f32 %v448, %v1042
        %v1044 = vpop.f32.mrb[0].mxu0
        %v1045 = vadd.f32 %v452, %v1044
        %v1046 = vpop.f32.mrb[0].mxu0
        %v1047 = vadd.f32 %v448, %v1046
        %v1048 = vpop.f32.mrb[0].mxu0
        %v1049 = vadd.f32 %v452, %v1048
        %1050 = vmatprep.mubr.bf16.mxu0 0
        %1051 = vmatmul.mubr.bf16.gmra.mrb[0].mxu0 %v390
        %v1052 = vpop.f32.mrb[0].mxu0
        %v1053 = vadd.f32 %v448, %v1052
        %v1054 = vpop.f32.mrb[0].mxu0
        %v1055 = vadd.f32 %v452, %v1054
        %v1056 = vpop.f32.mrb[0].mxu0
        %v1057 = vadd.f32 %v448, %v1056
        %v1058 = vpop.f32.mrb[0].mxu0
        %v1059 = vadd.f32 %v452, %v1058
        %1060 = vmatprep.mubr.bf16.mxu0 0
        %1061 = vmatmul.mubr.bf16.gmra.mrb[0].mxu0 %v391
        %v1062 = vpop.f32.mrb[0].mxu0
        %v1063 = vadd.f32 %v448, %v1062
        %v1064 = vpop.f32.mrb[0].mxu0
        %v1065 = vadd.f32 %v452, %v1064
        %v1066 = vpop.f32.mrb[0].mxu0
        %v1067 = vadd.f32 %v448, %v1066
        %v1068 = vpop.f32.mrb[0].mxu0
        %v1069 = vadd.f32 %v452, %v1068
        %1070 = vmatprep.mubr.bf16.mxu0 0
        %1071 = vmatmul.mubr.bf16.gmra.mrb[0].mxu0 %v392
        %v1072 = vpop.f32.mrb[0].mxu0
        %v1073 = vadd.f32 %v448, %v1072
        %v1074 = vpop.f32.mrb[0].mxu0
        %v1075 = vadd.f32 %v452, %v1074
        %v1076 = vpop.f32.mrb[0].mxu0
        %v1077 = vadd.f32 %v448, %v1076
        %v1078 = vpop.f32.mrb[0].mxu0
        %v1079 = vadd.f32 %v452, %v1078
        %1080 = vmatprep.mubr.bf16.mxu0 0
        %1081 = vmatmul.mubr.bf16.gmra.mrb[0].mxu0 %v393
        %v1082 = vpop.f32.mrb[0].mxu0
        %v1083 = vadd.f32 %v448, %v1082
        %v1084 = vpop.f32.mrb[0].mxu0
        %v1085 = vadd.f32 %v452, %v1084
        %v1086 = vpop.f32.mrb[0].mxu0
        %v1087 = vadd.f32 %v448, %v1086
        %v1088 = vpop.f32.mrb[0].mxu0
        %v1089 = vadd.f32 %v452, %v1088
        %1090 = vmatprep.mubr.bf16.mxu0 0
        %1091 = vmatmul.mubr.bf16.gmra.mrb[0].mxu0 %v394
        %v1092 = vpop.f32.mrb[0].mxu0
        %v1093 = vadd.f32 %v448, %v1092
        %v1094 = vpop.f32.mrb[0].mxu0
        %v1095 = vadd.f32 %v452, %v1094
        %v1096 = vpop.f32.mrb[0].mxu0
        %v1097 = vadd.f32 %v448, %v1096
        %v1098 = vpop.f32.mrb[0].mxu0
        %v1099 = vadd.f32 %v452, %v1098
        %1100 = vmatprep.mubr.bf16.mxu0 0
        %1101 = vmatmul.mubr.bf16.gmra.mrb[0].mxu0 %v395
        %v1102 = vpop.f32.mrb[0].mxu0
        %v1103 = vadd.f32 %v448, %v1102
        %v1104 = vpop.f32.mrb[0].mxu0
        %v1105 = vadd.f32 %v452, %v1104
        %v1106 = vpop.f32.mrb[0].mxu0
        %v1107 = vadd.f32 %v448, %v1106
        %v1108 = vpop.f32.mrb[0].mxu0
        %v1109 = vadd.f32 %v452, %v1108
        %1110 = vmatprep.mubr.bf16.mxu0 0
        %1111 = vmatmul.mubr.bf16.gmra.mrb[0].mxu0 %v396
        %v1112 = vpop.f32.mrb[0].mxu0
        %v1113 = vadd.f32 %v448, %v1112
        %v1114 = vpop.f32.mrb[0].mxu0
        %v1115 = vadd.f32 %v452, %v1114
        %v1116 = vpop.f32.mrb[0].mxu0
        %v1117 = vadd.f32 %v448, %v1116
        %v1118 = vpop.f32.mrb[0].mxu0
        %v1119 = vadd.f32 %v452, %v1118
        %1120 = vmatprep.mubr.bf16.mxu0 0
        %1121 = vmatmul.mubr.bf16.gmra.mrb[0].mxu0 %v397
        %v1122 = vpop.f32.mrb[0].mxu0
        %v1123 = vadd.f32 %v448, %v1122
        %v1124 = vpop.f32.mrb[0].mxu0
        %v1125 = vadd.f32 %v452, %v1124
        %v1126 = vpop.f32.mrb[0].mxu0
        %v1127 = vadd.f32 %v448, %v1126
        %v1128 = vpop.f32.mrb[0].mxu0
        %v1129 = vadd.f32 %v452, %v1128
        %1130 = vmatprep.mubr.bf16.mxu0 0
        %1131 = vmatmul.mubr.bf16.gmra.mrb[0].mxu0 %v398
        %v1132 = vpop.f32.mrb[0].mxu0
        %v1133 = vadd.f32 %v448, %v1132
        %v1134 = vpop.f32.mrb[0].mxu0
        %v1135 = vadd.f32 %v452, %v1134
        %v1136 = vpop.f32.mrb[0].mxu0
        %v1137 = vadd.f32 %v448, %v1136
        %v1138 = vpop.f32.mrb[0].mxu0
        %v1139 = vadd.f32 %v452, %v1138
        %1140 = vmatprep.mubr.bf16.mxu0 0
        %1141 = vmatmul.mubr.bf16.gmra.mrb[0].mxu0 %v399
        %v1142 = vpop.f32.mrb[0].mxu0
        %v1143 = vadd.f32 %v448, %v1142
        %v1144 = vpop.f32.mrb[0].mxu0
        %v1145 = vadd.f32 %v452, %v1144
        %v1146 = vpop.f32.mrb[0].mxu0
        %v1147 = vadd.f32 %v448, %v1146
        %v1148 = vpop.f32.mrb[0].mxu0
        %v1149 = vadd.f32 %v452, %v1148
        %1150 = vmatprep.mubr.bf16.mxu0 0
        %1151 = vmatmul.mubr.bf16.gmra.mrb[0].mxu0 %v400
        %v1152 = vpop.f32.mrb[0].mxu0
        %v1153 = vadd.f32 %v448, %v1152
        %v1154 = vpop.f32.mrb[0].mxu0
        %v1155 = vadd.f32 %v452, %v1154
        %v1156 = vpop.f32.mrb[0].mxu0
        %v1157 = vadd.f32 %v448, %v1156
        %v1158 = vpop.f32.mrb[0].mxu0
        %v1159 = vadd.f32 %v452, %v1158
        %1160 = vmatprep.mubr.bf16.mxu0 0
        %1161 = vmatmul.mubr.bf16.gmra.mrb[0].mxu0 %v401
        %v1162 = vpop.f32.mrb[0].mxu0
        %v1163 = vadd.f32 %v448, %v1162
        %v1164 = vpop.f32.mrb[0].mxu0
        %v1165 = vadd.f32 %v452, %v1164
        %v1166 = vpop.f32.mrb[0].mxu0
        %v1167 = vadd.f32 %v448, %v1166
        %v1168 = vpop.f32.mrb[0].mxu0
        %v1169 = vadd.f32 %v452, %v1168
        %1170 = vmatprep.mubr.bf16.mxu0 0
        %1171 = vmatmul.mubr.bf16.gmra.mrb[0].mxu0 %v402
        %v1172 = vpop.f32.mrb[0].mxu0
        %v1173 = vadd.f32 %v448, %v1172
        %v1174 = vpop.f32.mrb[0].mxu0
        %v1175 = vadd.f32 %v452, %v1174
        %v1176 = vpop.f32.mrb[0].mxu0
        %v1177 = vadd.f32 %v448, %v1176
        %v1178 = vpop.f32.mrb[0].mxu0
        %v1179 = vadd.f32 %v452, %v1178
        %1180 = vmatprep.mubr.bf16.mxu0 0
        %1181 = vmatmul.mubr.bf16.gmra.mrb[0].mxu0 %v403
        %v1182 = vpop.f32.mrb[0].mxu0
        %v1183 = vadd.f32 %v448, %v1182
        %v1184 = vpop.f32.mrb[0].mxu0
        %v1185 = vadd.f32 %v452, %v1184
        %v1186 = vpop.f32.mrb[0].mxu0
        %v1187 = vadd.f32 %v448, %v1186
        %v1188 = vpop.f32.mrb[0].mxu0
        %v1189 = vadd.f32 %v452, %v1188
        %1190 = vmatprep.mubr.bf16.mxu0 0
        %1191 = vmatmul.mubr.bf16.gmra.mrb[0].mxu0 %v404
        %v1192 = vpop.f32.mrb[0].mxu0
        %v1193 = vadd.f32 %v448, %v1192
        %v1194 = vpop.f32.mrb[0].mxu0
        %v1195 = vadd.f32 %v452, %v1194
        %v1196 = vpop.f32.mrb[0].mxu0
        %v1197 = vadd.f32 %v448, %v1196
        %v1198 = vpop.f32.mrb[0].mxu0
        %v1199 = vadd.f32 %v452, %v1198
        %1200 = vmatprep.mubr.bf16.mxu0 0
        %1201 = vmatmul.mubr.bf16.gmra.mrb[0].mxu0 %v405
        %v1202 = vpop.f32.mrb[0].mxu0
        %v1203 = vadd.f32 %v448, %v1202
        %v1204 = vpop.f32.mrb[0].mxu0
        %v1205 = vadd.f32 %v452, %v1204
        %v1206 = vpop.f32.mrb[0].mxu0
        %v1207 = vadd.f32 %v448, %v1206
        %v1208 = vpop.f32.mrb[0].mxu0
        %v1209 = vadd.f32 %v452, %v1208
        %1210 = vmatprep.mubr.bf16.mxu0 0
        %1211 = vmatmul.mubr.bf16.gmra.mrb[0].mxu0 %v406
        %v1212 = vpop.f32.mrb[0].mxu0
        %v1213 = vadd.f32 %v448, %v1212
        %v1214 = vpop.f32.mrb[0].mxu0
        %v1215 = vadd.f32 %v452, %v1214
        %v1216 = vpop.f32.mrb[0].mxu0
        %v1217 = vadd.f32 %v448, %v1216
        %v1218 = vpop.f32.mrb[0].mxu0
        %v1219 = vadd.f32 %v452, %v1218
        %1220 = vmatprep.mubr.bf16.mxu0 0
        %1221 = vmatmul.mubr.bf16.gmra.mrb[0].mxu0 %v407
        %v1222 = vpop.f32.mrb[0].mxu0
        %v1223 = vadd.f32 %v448, %v1222
        %v1224 = vpop.f32.mrb[0].mxu0
        %v1225 = vadd.f32 %v452, %v1224
        %v1226 = vpop.f32.mrb[0].mxu0
        %v1227 = vadd.f32 %v448, %v1226
        %v1228 = vpop.f32.mrb[0].mxu0
        %v1229 = vadd.f32 %v452, %v1228
        %1230 = vmatprep.mubr.bf16.mxu0 0
        %1231 = vmatmul.mubr.bf16.gmra.mrb[0].mxu0 %v408
        %v1232 = vpop.f32.mrb[0].mxu0
        %v1233 = vadd.f32 %v448, %v1232
        %v1234 = vpop.f32.mrb[0].mxu0
        %v1235 = vadd.f32 %v452, %v1234
        %v1236 = vpop.f32.mrb[0].mxu0
        %v1237 = vadd.f32 %v448, %v1236
        %v1238 = vpop.f32.mrb[0].mxu0
        %v1239 = vadd.f32 %v452, %v1238
        %1240 = vmatprep.mubr.bf16.mxu0 0
        %1241 = vmatmul.mubr.bf16.gmra.mrb[0].mxu0 %v409
        %v1242 = vpop.f32.mrb[0].mxu0
        %v1243 = vadd.f32 %v448, %v1242
        %v1244 = vpop.f32.mrb[0].mxu0
        %v1245 = vadd.f32 %v452, %v1244
        %v1246 = vpop.f32.mrb[0].mxu0
        %v1247 = vadd.f32 %v448, %v1246
        %v1248 = vpop.f32.mrb[0].mxu0
        %v1249 = vadd.f32 %v452, %v1248
        %1250 = vmatprep.mubr.bf16.mxu0 0
        %1251 = vmatmul.mubr.bf16.gmra.mrb[0].mxu0 %v410
        %v1252 = vpop.f32.mrb[0].mxu0
        %v1253 = vadd.f32 %v448, %v1252
        %v1254 = vpop.f32.mrb[0].mxu0
        %v1255 = vadd.f32 %v452, %v1254
        %v1256 = vpop.f32.mrb[0].mxu0
        %v1257 = vadd.f32 %v448, %v1256
        %v1258 = vpop.f32.mrb[0].mxu0
        %v1259 = vadd.f32 %v452, %v1258
        %1260 = vdwg.mxu0
        %1261 = vmatprep.subr.bf16.mxu0 0
        %1262 = vmatpush1.bf16.msra.mxu0 %v542
        %1263 = vmatprep.subr.bf16.mxu0 0
        %1264 = vmatpush1.bf16.msra.mxu0 %v545
        %1265 = vmatprep.subr.bf16.mxu0 0
        %1266 = vmatpush1.bf16.msra.mxu0 %v548
        %1267 = vmatprep.subr.bf16.mxu0 0
        %1268 = vmatpush1.bf16.msra.mxu0 %v551
        %1269 = vmatprep.subr.bf16.mxu0 0
        %1270 = vmatpush1.bf16.msra.mxu0 %v554
        %1271 = vmatprep.subr.bf16.mxu0 0
        %1272 = vmatpush1.bf16.msra.mxu0 %v557
        %1273 = vmatprep.subr.bf16.mxu0 0
        %1274 = vmatpush1.bf16.msra.mxu0 %v560
        %1275 = vmatprep.subr.bf16.mxu0 0
        %1276 = vmatpush1.bf16.msra.mxu0 %v563
        %1277 = vmatprep.subr.bf16.mxu0 0
        %1278 = vmatpush1.bf16.msra.mxu0 0
        %1279 = vmatprep.subr.bf16.mxu0 0
        %1280 = vmatpush1.bf16.msra.mxu0 0
        %1281 = vmatprep.subr.bf16.mxu0 0
        %1282 = vmatpush1.bf16.msra.mxu0 0
        %1283 = vmatprep.subr.bf16.mxu0 0
        %1284 = vmatpush1.bf16.msra.mxu0 0
        %1285 = vmatprep.subr.bf16.mxu0 0
        %1286 = vmatpush1.bf16.msra.mxu0 0
        %1287 = vmatprep.subr.bf16.mxu0 0
        %1288 = vmatpush1.bf16.msra.mxu0 0
        %1289 = vmatprep.subr.bf16.mxu0 0
        %1290 = vmatpush1.bf16.msra.mxu0 0
        %1291 = vmatprep.subr.bf16.mxu0 0
        %1292 = vmatpush1.bf16.msra.mxu0 0
        %1293 = vmatprep.mubr.bf16.mxu0 0
        %1294 = vmatmul.mubr.bf16.gmra.mrb[0].mxu0 %v347
        %v1295 = vpop.f32.mrb[0].mxu0
        %v1296 = vadd.f32 %v456, %v1295
        %v1297 = vpop.f32.mrb[0].mxu0
        %v1298 = vpop.f32.mrb[0].mxu0
        %v1299 = vadd.f32 %v456, %v1298
        %v1300 = vpop.f32.mrb[0].mxu0
        %1301 = vmatprep.mubr.bf16.mxu0 0
        %1302 = vmatmul.mubr.bf16.gmra.mrb[0].mxu0 %v348
        %v1303 = vpop.f32.mrb[0].mxu0
        %v1304 = vadd.f32 %v456, %v1303
        %v1305 = vpop.f32.mrb[0].mxu0
        %v1306 = vpop.f32.mrb[0].mxu0
        %v1307 = vadd.f32 %v456, %v1306
        %v1308 = vpop.f32.mrb[0].mxu0
        %1309 = vmatprep.mubr.bf16.mxu0 0
        %1310 = vmatmul.mubr.bf16.gmra.mrb[0].mxu0 %v349
        %v1311 = vpop.f32.mrb[0].mxu0
        %v1312 = vadd.f32 %v456, %v1311
        %v1313 = vpop.f32.mrb[0].mxu0
        %v1314 = vpop.f32.mrb[0].mxu0
        %v1315 = vadd.f32 %v456, %v1314
        %v1316 = vpop.f32.mrb[0].mxu0
        %1317 = vmatprep.mubr.bf16.mxu0 0
        %1318 = vmatmul.mubr.bf16.gmra.mrb[0].mxu0 %v350
        %v1319 = vpop.f32.mrb[0].mxu0
        %v1320 = vadd.f32 %v456, %v1319
        %v1321 = vpop.f32.mrb[0].mxu0
        %v1322 = vpop.f32.mrb[0].mxu0
        %v1323 = vadd.f32 %v456, %v1322
        %v1324 = vpop.f32.mrb[0].mxu0
        %1325 = vmatprep.mubr.bf16.mxu0 0
        %1326 = vmatmul.mubr.bf16.gmra.mrb[0].mxu0 %v351
        %v1327 = vpop.f32.mrb[0].mxu0
        %v1328 = vadd.f32 %v456, %v1327
        %v1329 = vpop.f32.mrb[0].mxu0
        %v1330 = vpop.f32.mrb[0].mxu0
        %v1331 = vadd.f32 %v456, %v1330
        %v1332 = vpop.f32.mrb[0].mxu0
        %1333 = vmatprep.mubr.bf16.mxu0 0
        %1334 = vmatmul.mubr.bf16.gmra.mrb[0].mxu0 %v352
        %v1335 = vpop.f32.mrb[0].mxu0
        %v1336 = vadd.f32 %v456, %v1335
        %v1337 = vpop.f32.mrb[0].mxu0
        %v1338 = vpop.f32.mrb[0].mxu0
        %v1339 = vadd.f32 %v456, %v1338
        %v1340 = vpop.f32.mrb[0].mxu0
        %1341 = vmatprep.mubr.bf16.mxu0 0
        %1342 = vmatmul.mubr.bf16.gmra.mrb[0].mxu0 %v353
        %v1343 = vpop.f32.mrb[0].mxu0
        %v1344 = vadd.f32 %v456, %v1343
        %v1345 = vpop.f32.mrb[0].mxu0
        %v1346 = vpop.f32.mrb[0].mxu0
        %v1347 = vadd.f32 %v456, %v1346
        %v1348 = vpop.f32.mrb[0].mxu0
        %1349 = vmatprep.mubr.bf16.mxu0 0
        %1350 = vmatmul.mubr.bf16.gmra.mrb[0].mxu0 %v354
        %v1351 = vpop.f32.mrb[0].mxu0
        %v1352 = vadd.f32 %v456, %v1351
        %v1353 = vpop.f32.mrb[0].mxu0
        %v1354 = vpop.f32.mrb[0].mxu0
        %v1355 = vadd.f32 %v456, %v1354
        %v1356 = vpop.f32.mrb[0].mxu0
        %1357 = vmatprep.mubr.bf16.mxu0 0
        %1358 = vmatmul.mubr.bf16.gmra.mrb[0].mxu0 %v355
        %v1359 = vpop.f32.mrb[0].mxu0
        %v1360 = vadd.f32 %v456, %v1359
        %v1361 = vpop.f32.mrb[0].mxu0
        %v1362 = vpop.f32.mrb[0].mxu0
        %v1363 = vadd.f32 %v456, %v1362
        %v1364 = vpop.f32.mrb[0].mxu0
        %1365 = vmatprep.mubr.bf16.mxu0 0
        %1366 = vmatmul.mubr.bf16.gmra.mrb[0].mxu0 %v356
        %v1367 = vpop.f32.mrb[0].mxu0
        %v1368 = vadd.f32 %v456, %v1367
        %v1369 = vpop.f32.mrb[0].mxu0
        %v1370 = vpop.f32.mrb[0].mxu0
        %v1371 = vadd.f32 %v456, %v1370
        %v1372 = vpop.f32.mrb[0].mxu0
        %1373 = vmatprep.mubr.bf16.mxu0 0
        %1374 = vmatmul.mubr.bf16.gmra.mrb[0].mxu0 %v357
        %v1375 = vpop.f32.mrb[0].mxu0
        %v1376 = vadd.f32 %v456, %v1375
        %v1377 = vpop.f32.mrb[0].mxu0
        %v1378 = vpop.f32.mrb[0].mxu0
        %v1379 = vadd.f32 %v456, %v1378
        %v1380 = vpop.f32.mrb[0].mxu0
        %1381 = vmatprep.mubr.bf16.mxu0 0
        %1382 = vmatmul.mubr.bf16.gmra.mrb[0].mxu0 %v358
        %v1383 = vpop.f32.mrb[0].mxu0
        %v1384 = vadd.f32 %v456, %v1383
        %v1385 = vpop.f32.mrb[0].mxu0
        %v1386 = vpop.f32.mrb[0].mxu0
        %v1387 = vadd.f32 %v456, %v1386
        %v1388 = vpop.f32.mrb[0].mxu0
        %1389 = vmatprep.mubr.bf16.mxu0 0
        %1390 = vmatmul.mubr.bf16.gmra.mrb[0].mxu0 %v359
        %v1391 = vpop.f32.mrb[0].mxu0
        %v1392 = vadd.f32 %v456, %v1391
        %v1393 = vpop.f32.mrb[0].mxu0
        %v1394 = vpop.f32.mrb[0].mxu0
        %v1395 = vadd.f32 %v456, %v1394
        %v1396 = vpop.f32.mrb[0].mxu0
        %1397 = vmatprep.mubr.bf16.mxu0 0
        %1398 = vmatmul.mubr.bf16.gmra.mrb[0].mxu0 %v360
        %v1399 = vpop.f32.mrb[0].mxu0
        %v1400 = vadd.f32 %v456, %v1399
        %v1401 = vpop.f32.mrb[0].mxu0
        %v1402 = vpop.f32.mrb[0].mxu0
        %v1403 = vadd.f32 %v456, %v1402
        %v1404 = vpop.f32.mrb[0].mxu0
        %1405 = vmatprep.mubr.bf16.mxu0 0
        %1406 = vmatmul.mubr.bf16.gmra.mrb[0].mxu0 %v361
        %v1407 = vpop.f32.mrb[0].mxu0
        %v1408 = vadd.f32 %v456, %v1407
        %v1409 = vpop.f32.mrb[0].mxu0
        %v1410 = vpop.f32.mrb[0].mxu0
        %v1411 = vadd.f32 %v456, %v1410
        %v1412 = vpop.f32.mrb[0].mxu0
        %1413 = vmatprep.mubr.bf16.mxu0 0
        %1414 = vmatmul.mubr.bf16.gmra.mrb[0].mxu0 %v362
        %v1415 = vpop.f32.mrb[0].mxu0
        %v1416 = vadd.f32 %v456, %v1415
        %v1417 = vpop.f32.mrb[0].mxu0
        %v1418 = vpop.f32.mrb[0].mxu0
        %v1419 = vadd.f32 %v456, %v1418
        %v1420 = vpop.f32.mrb[0].mxu0
        %1421 = vmatprep.mubr.bf16.mxu0 0
        %1422 = vmatmul.mubr.bf16.gmra.mrb[0].mxu0 %v363
        %v1423 = vpop.f32.mrb[0].mxu0
        %v1424 = vadd.f32 %v456, %v1423
        %v1425 = vpop.f32.mrb[0].mxu0
        %v1426 = vpop.f32.mrb[0].mxu0
        %v1427 = vadd.f32 %v456, %v1426
        %v1428 = vpop.f32.mrb[0].mxu0
        %1429 = vmatprep.mubr.bf16.mxu0 0
        %1430 = vmatmul.mubr.bf16.gmra.mrb[0].mxu0 %v364
        %v1431 = vpop.f32.mrb[0].mxu0
        %v1432 = vadd.f32 %v456, %v1431
        %v1433 = vpop.f32.mrb[0].mxu0
        %v1434 = vpop.f32.mrb[0].mxu0
        %v1435 = vadd.f32 %v456, %v1434
        %v1436 = vpop.f32.mrb[0].mxu0
        %1437 = vmatprep.mubr.bf16.mxu0 0
        %1438 = vmatmul.mubr.bf16.gmra.mrb[0].mxu0 %v365
        %v1439 = vpop.f32.mrb[0].mxu0
        %v1440 = vadd.f32 %v456, %v1439
        %v1441 = vpop.f32.mrb[0].mxu0
        %v1442 = vpop.f32.mrb[0].mxu0
        %v1443 = vadd.f32 %v456, %v1442
        %v1444 = vpop.f32.mrb[0].mxu0
        %1445 = vmatprep.mubr.bf16.mxu0 0
        %1446 = vmatmul.mubr.bf16.gmra.mrb[0].mxu0 %v366
        %v1447 = vpop.f32.mrb[0].mxu0
        %v1448 = vadd.f32 %v456, %v1447
        %v1449 = vpop.f32.mrb[0].mxu0
        %v1450 = vpop.f32.mrb[0].mxu0
        %v1451 = vadd.f32 %v456, %v1450
        %v1452 = vpop.f32.mrb[0].mxu0
        %1453 = vmatprep.mubr.bf16.mxu0 0
        %1454 = vmatmul.mubr.bf16.gmra.mrb[0].mxu0 %v367
        %v1455 = vpop.f32.mrb[0].mxu0
        %v1456 = vadd.f32 %v456, %v1455
        %v1457 = vpop.f32.mrb[0].mxu0
        %v1458 = vpop.f32.mrb[0].mxu0
        %v1459 = vadd.f32 %v456, %v1458
        %v1460 = vpop.f32.mrb[0].mxu0
        %1461 = vmatprep.mubr.bf16.mxu0 0
        %1462 = vmatmul.mubr.bf16.gmra.mrb[0].mxu0 %v368
        %v1463 = vpop.f32.mrb[0].mxu0
        %v1464 = vadd.f32 %v456, %v1463
        %v1465 = vpop.f32.mrb[0].mxu0
        %v1466 = vpop.f32.mrb[0].mxu0
        %v1467 = vadd.f32 %v456, %v1466
        %v1468 = vpop.f32.mrb[0].mxu0
        %1469 = vmatprep.mubr.bf16.mxu0 0
        %1470 = vmatmul.mubr.bf16.gmra.mrb[0].mxu0 %v369
        %v1471 = vpop.f32.mrb[0].mxu0
        %v1472 = vadd.f32 %v456, %v1471
        %v1473 = vpop.f32.mrb[0].mxu0
        %v1474 = vpop.f32.mrb[0].mxu0
        %v1475 = vadd.f32 %v456, %v1474
        %v1476 = vpop.f32.mrb[0].mxu0
        %1477 = vmatprep.mubr.bf16.mxu0 0
        %1478 = vmatmul.mubr.bf16.gmra.mrb[0].mxu0 %v370
        %v1479 = vpop.f32.mrb[0].mxu0
        %v1480 = vadd.f32 %v456, %v1479
        %v1481 = vpop.f32.mrb[0].mxu0
        %v1482 = vpop.f32.mrb[0].mxu0
        %v1483 = vadd.f32 %v456, %v1482
        %v1484 = vpop.f32.mrb[0].mxu0
        %1485 = vmatprep.mubr.bf16.mxu0 0
        %1486 = vmatmul.mubr.bf16.gmra.mrb[0].mxu0 %v371
        %v1487 = vpop.f32.mrb[0].mxu0
        %v1488 = vadd.f32 %v456, %v1487
        %v1489 = vpop.f32.mrb[0].mxu0
        %v1490 = vpop.f32.mrb[0].mxu0
        %v1491 = vadd.f32 %v456, %v1490
        %v1492 = vpop.f32.mrb[0].mxu0
        %1493 = vmatprep.mubr.bf16.mxu0 0
        %1494 = vmatmul.mubr.bf16.gmra.mrb[0].mxu0 %v372
        %v1495 = vpop.f32.mrb[0].mxu0
        %v1496 = vadd.f32 %v456, %v1495
        %v1497 = vpop.f32.mrb[0].mxu0
        %v1498 = vpop.f32.mrb[0].mxu0
        %v1499 = vadd.f32 %v456, %v1498
        %v1500 = vpop.f32.mrb[0].mxu0
        %1501 = vmatprep.mubr.bf16.mxu0 0
        %1502 = vmatmul.mubr.bf16.gmra.mrb[0].mxu0 %v373
        %v1503 = vpop.f32.mrb[0].mxu0
        %v1504 = vadd.f32 %v456, %v1503
        %v1505 = vpop.f32.mrb[0].mxu0
        %v1506 = vpop.f32.mrb[0].mxu0
        %v1507 = vadd.f32 %v456, %v1506
        %v1508 = vpop.f32.mrb[0].mxu0
        %1509 = vmatprep.mubr.bf16.mxu0 0
        %1510 = vmatmul.mubr.bf16.gmra.mrb[0].mxu0 %v374
        %v1511 = vpop.f32.mrb[0].mxu0
        %v1512 = vadd.f32 %v456, %v1511
        %v1513 = vpop.f32.mrb[0].mxu0
        %v1514 = vpop.f32.mrb[0].mxu0
        %v1515 = vadd.f32 %v456, %v1514
        %v1516 = vpop.f32.mrb[0].mxu0
        %1517 = vmatprep.mubr.bf16.mxu0 0
        %1518 = vmatmul.mubr.bf16.gmra.mrb[0].mxu0 %v375
        %v1519 = vpop.f32.mrb[0].mxu0
        %v1520 = vadd.f32 %v456, %v1519
        %v1521 = vpop.f32.mrb[0].mxu0
        %v1522 = vpop.f32.mrb[0].mxu0
        %v1523 = vadd.f32 %v456, %v1522
        %v1524 = vpop.f32.mrb[0].mxu0
        %1525 = vmatprep.mubr.bf16.mxu0 0
        %1526 = vmatmul.mubr.bf16.gmra.mrb[0].mxu0 %v376
        %v1527 = vpop.f32.mrb[0].mxu0
        %v1528 = vadd.f32 %v456, %v1527
        %v1529 = vpop.f32.mrb[0].mxu0
        %v1530 = vpop.f32.mrb[0].mxu0
        %v1531 = vadd.f32 %v456, %v1530
        %v1532 = vpop.f32.mrb[0].mxu0
        %1533 = vmatprep.mubr.bf16.mxu0 0
        %1534 = vmatmul.mubr.bf16.gmra.mrb[0].mxu0 %v377
        %v1535 = vpop.f32.mrb[0].mxu0
        %v1536 = vadd.f32 %v456, %v1535
        %v1537 = vpop.f32.mrb[0].mxu0
        %v1538 = vpop.f32.mrb[0].mxu0
        %v1539 = vadd.f32 %v456, %v1538
        %v1540 = vpop.f32.mrb[0].mxu0
        %1541 = vmatprep.mubr.bf16.mxu0 0
        %1542 = vmatmul.mubr.bf16.gmra.mrb[0].mxu0 %v378
        %v1543 = vpop.f32.mrb[0].mxu0
        %v1544 = vadd.f32 %v456, %v1543
        %v1545 = vpop.f32.mrb[0].mxu0
        %v1546 = vpop.f32.mrb[0].mxu0
        %v1547 = vadd.f32 %v456, %v1546
        %v1548 = vpop.f32.mrb[0].mxu0
        %1549 = vmatprep.mubr.bf16.mxu0 0
        %1550 = vmatmul.mubr.bf16.gmra.mrb[0].mxu0 %v379
        %v1551 = vpop.f32.mrb[0].mxu0
        %v1552 = vadd.f32 %v456, %v1551
        %v1553 = vpop.f32.mrb[0].mxu0
        %v1554 = vpop.f32.mrb[0].mxu0
        %v1555 = vadd.f32 %v456, %v1554
        %v1556 = vpop.f32.mrb[0].mxu0
        %1557 = vmatprep.mubr.bf16.mxu0 0
        %1558 = vmatmul.mubr.bf16.gmra.mrb[0].mxu0 %v380
        %v1559 = vpop.f32.mrb[0].mxu0
        %v1560 = vadd.f32 %v456, %v1559
        %v1561 = vpop.f32.mrb[0].mxu0
        %v1562 = vpop.f32.mrb[0].mxu0
        %v1563 = vadd.f32 %v456, %v1562
        %v1564 = vpop.f32.mrb[0].mxu0
        %1565 = vmatprep.mubr.bf16.mxu0 0
        %1566 = vmatmul.mubr.bf16.gmra.mrb[0].mxu0 %v381
        %v1567 = vpop.f32.mrb[0].mxu0
        %v1568 = vadd.f32 %v456, %v1567
        %v1569 = vpop.f32.mrb[0].mxu0
        %v1570 = vpop.f32.mrb[0].mxu0
        %v1571 = vadd.f32 %v456, %v1570
        %v1572 = vpop.f32.mrb[0].mxu0
        %1573 = vmatprep.mubr.bf16.mxu0 0
        %1574 = vmatmul.mubr.bf16.gmra.mrb[0].mxu0 %v382
        %v1575 = vpop.f32.mrb[0].mxu0
        %v1576 = vadd.f32 %v456, %v1575
        %v1577 = vpop.f32.mrb[0].mxu0
        %v1578 = vpop.f32.mrb[0].mxu0
        %v1579 = vadd.f32 %v456, %v1578
        %v1580 = vpop.f32.mrb[0].mxu0
        %1581 = vmatprep.mubr.bf16.mxu0 0
        %1582 = vmatmul.mubr.bf16.gmra.mrb[0].mxu0 %v383
        %v1583 = vpop.f32.mrb[0].mxu0
        %v1584 = vadd.f32 %v456, %v1583
        %v1585 = vpop.f32.mrb[0].mxu0
        %v1586 = vpop.f32.mrb[0].mxu0
        %v1587 = vadd.f32 %v456, %v1586
        %v1588 = vpop.f32.mrb[0].mxu0
        %1589 = vmatprep.mubr.bf16.mxu0 0
        %1590 = vmatmul.mubr.bf16.gmra.mrb[0].mxu0 %v384
        %v1591 = vpop.f32.mrb[0].mxu0
        %v1592 = vadd.f32 %v456, %v1591
        %v1593 = vpop.f32.mrb[0].mxu0
        %v1594 = vpop.f32.mrb[0].mxu0
        %v1595 = vadd.f32 %v456, %v1594
        %v1596 = vpop.f32.mrb[0].mxu0
        %1597 = vmatprep.mubr.bf16.mxu0 0
        %1598 = vmatmul.mubr.bf16.gmra.mrb[0].mxu0 %v385
        %v1599 = vpop.f32.mrb[0].mxu0
        %v1600 = vadd.f32 %v456, %v1599
        %v1601 = vpop.f32.mrb[0].mxu0
        %v1602 = vpop.f32.mrb[0].mxu0
        %v1603 = vadd.f32 %v456, %v1602
        %v1604 = vpop.f32.mrb[0].mxu0
        %1605 = vmatprep.mubr.bf16.mxu0 0
        %1606 = vmatmul.mubr.bf16.gmra.mrb[0].mxu0 %v386
        %v1607 = vpop.f32.mrb[0].mxu0
        %v1608 = vadd.f32 %v456, %v1607
        %v1609 = vpop.f32.mrb[0].mxu0
        %v1610 = vpop.f32.mrb[0].mxu0
        %v1611 = vadd.f32 %v456, %v1610
        %v1612 = vpop.f32.mrb[0].mxu0
        %1613 = vmatprep.mubr.bf16.mxu0 0
        %1614 = vmatmul.mubr.bf16.gmra.mrb[0].mxu0 %v387
        %v1615 = vpop.f32.mrb[0].mxu0
        %v1616 = vadd.f32 %v456, %v1615
        %v1617 = vpop.f32.mrb[0].mxu0
        %v1618 = vpop.f32.mrb[0].mxu0
        %v1619 = vadd.f32 %v456, %v1618
        %v1620 = vpop.f32.mrb[0].mxu0
        %1621 = vmatprep.mubr.bf16.mxu0 0
        %1622 = vmatmul.mubr.bf16.gmra.mrb[0].mxu0 %v388
        %v1623 = vpop.f32.mrb[0].mxu0
        %v1624 = vadd.f32 %v456, %v1623
        %v1625 = vpop.f32.mrb[0].mxu0
        %v1626 = vpop.f32.mrb[0].mxu0
        %v1627 = vadd.f32 %v456, %v1626
        %v1628 = vpop.f32.mrb[0].mxu0
        %1629 = vmatprep.mubr.bf16.mxu0 0
        %1630 = vmatmul.mubr.bf16.gmra.mrb[0].mxu0 %v389
        %v1631 = vpop.f32.mrb[0].mxu0
        %v1632 = vadd.f32 %v456, %v1631
        %v1633 = vpop.f32.mrb[0].mxu0
        %v1634 = vpop.f32.mrb[0].mxu0
        %v1635 = vadd.f32 %v456, %v1634
        %v1636 = vpop.f32.mrb[0].mxu0
        %1637 = vmatprep.mubr.bf16.mxu0 0
        %1638 = vmatmul.mubr.bf16.gmra.mrb[0].mxu0 %v390
        %v1639 = vpop.f32.mrb[0].mxu0
        %v1640 = vadd.f32 %v456, %v1639
        %v1641 = vpop.f32.mrb[0].mxu0
        %v1642 = vpop.f32.mrb[0].mxu0
        %v1643 = vadd.f32 %v456, %v1642
        %v1644 = vpop.f32.mrb[0].mxu0
        %1645 = vmatprep.mubr.bf16.mxu0 0
        %1646 = vmatmul.mubr.bf16.gmra.mrb[0].mxu0 %v391
        %v1647 = vpop.f32.mrb[0].mxu0
        %v1648 = vadd.f32 %v456, %v1647
        %v1649 = vpop.f32.mrb[0].mxu0
        %v1650 = vpop.f32.mrb[0].mxu0
        %v1651 = vadd.f32 %v456, %v1650
        %v1652 = vpop.f32.mrb[0].mxu0
        %1653 = vmatprep.mubr.bf16.mxu0 0
        %1654 = vmatmul.mubr.bf16.gmra.mrb[0].mxu0 %v392
        %v1655 = vpop.f32.mrb[0].mxu0
        %v1656 = vadd.f32 %v456, %v1655
        %v1657 = vpop.f32.mrb[0].mxu0
        %v1658 = vpop.f32.mrb[0].mxu0
        %v1659 = vadd.f32 %v456, %v1658
        %v1660 = vpop.f32.mrb[0].mxu0
        %1661 = vmatprep.mubr.bf16.mxu0 0
        %1662 = vmatmul.mubr.bf16.gmra.mrb[0].mxu0 %v393
        %v1663 = vpop.f32.mrb[0].mxu0
        %v1664 = vadd.f32 %v456, %v1663
        %v1665 = vpop.f32.mrb[0].mxu0
        %v1666 = vpop.f32.mrb[0].mxu0
        %v1667 = vadd.f32 %v456, %v1666
        %v1668 = vpop.f32.mrb[0].mxu0
        %1669 = vmatprep.mubr.bf16.mxu0 0
        %1670 = vmatmul.mubr.bf16.gmra.mrb[0].mxu0 %v394
        %v1671 = vpop.f32.mrb[0].mxu0
        %v1672 = vadd.f32 %v456, %v1671
        %v1673 = vpop.f32.mrb[0].mxu0
        %v1674 = vpop.f32.mrb[0].mxu0
        %v1675 = vadd.f32 %v456, %v1674
        %v1676 = vpop.f32.mrb[0].mxu0
        %1677 = vmatprep.mubr.bf16.mxu0 0
        %1678 = vmatmul.mubr.bf16.gmra.mrb[0].mxu0 %v395
        %v1679 = vpop.f32.mrb[0].mxu0
        %v1680 = vadd.f32 %v456, %v1679
        %v1681 = vpop.f32.mrb[0].mxu0
        %v1682 = vpop.f32.mrb[0].mxu0
        %v1683 = vadd.f32 %v456, %v1682
        %v1684 = vpop.f32.mrb[0].mxu0
        %1685 = vmatprep.mubr.bf16.mxu0 0
        %1686 = vmatmul.mubr.bf16.gmra.mrb[0].mxu0 %v396
        %v1687 = vpop.f32.mrb[0].mxu0
        %v1688 = vadd.f32 %v456, %v1687
        %v1689 = vpop.f32.mrb[0].mxu0
        %v1690 = vpop.f32.mrb[0].mxu0
        %v1691 = vadd.f32 %v456, %v1690
        %v1692 = vpop.f32.mrb[0].mxu0
        %1693 = vmatprep.mubr.bf16.mxu0 0
        %1694 = vmatmul.mubr.bf16.gmra.mrb[0].mxu0 %v397
        %v1695 = vpop.f32.mrb[0].mxu0
        %v1696 = vadd.f32 %v456, %v1695
        %v1697 = vpop.f32.mrb[0].mxu0
        %v1698 = vpop.f32.mrb[0].mxu0
        %v1699 = vadd.f32 %v456, %v1698
        %v1700 = vpop.f32.mrb[0].mxu0
        %1701 = vmatprep.mubr.bf16.mxu0 0
        %1702 = vmatmul.mubr.bf16.gmra.mrb[0].mxu0 %v398
        %v1703 = vpop.f32.mrb[0].mxu0
        %v1704 = vadd.f32 %v456, %v1703
        %v1705 = vpop.f32.mrb[0].mxu0
        %v1706 = vpop.f32.mrb[0].mxu0
        %v1707 = vadd.f32 %v456, %v1706
        %v1708 = vpop.f32.mrb[0].mxu0
        %1709 = vmatprep.mubr.bf16.mxu0 0
        %1710 = vmatmul.mubr.bf16.gmra.mrb[0].mxu0 %v399
        %v1711 = vpop.f32.mrb[0].mxu0
        %v1712 = vadd.f32 %v456, %v1711
        %v1713 = vpop.f32.mrb[0].mxu0
        %v1714 = vpop.f32.mrb[0].mxu0
        %v1715 = vadd.f32 %v456, %v1714
        %v1716 = vpop.f32.mrb[0].mxu0
        %1717 = vmatprep.mubr.bf16.mxu0 0
        %1718 = vmatmul.mubr.bf16.gmra.mrb[0].mxu0 %v400
        %v1719 = vpop.f32.mrb[0].mxu0
        %v1720 = vadd.f32 %v456, %v1719
        %v1721 = vpop.f32.mrb[0].mxu0
        %v1722 = vpop.f32.mrb[0].mxu0
        %v1723 = vadd.f32 %v456, %v1722
        %v1724 = vpop.f32.mrb[0].mxu0
        %1725 = vmatprep.mubr.bf16.mxu0 0
        %1726 = vmatmul.mubr.bf16.gmra.mrb[0].mxu0 %v401
        %v1727 = vpop.f32.mrb[0].mxu0
        %v1728 = vadd.f32 %v456, %v1727
        %v1729 = vpop.f32.mrb[0].mxu0
        %v1730 = vpop.f32.mrb[0].mxu0
        %v1731 = vadd.f32 %v456, %v1730
        %v1732 = vpop.f32.mrb[0].mxu0
        %1733 = vmatprep.mubr.bf16.mxu0 0
        %1734 = vmatmul.mubr.bf16.gmra.mrb[0].mxu0 %v402
        %v1735 = vpop.f32.mrb[0].mxu0
        %v1736 = vadd.f32 %v456, %v1735
        %v1737 = vpop.f32.mrb[0].mxu0
        %v1738 = vpop.f32.mrb[0].mxu0
        %v1739 = vadd.f32 %v456, %v1738
        %v1740 = vpop.f32.mrb[0].mxu0
        %1741 = vmatprep.mubr.bf16.mxu0 0
        %1742 = vmatmul.mubr.bf16.gmra.mrb[0].mxu0 %v403
        %v1743 = vpop.f32.mrb[0].mxu0
        %v1744 = vadd.f32 %v456, %v1743
        %v1745 = vpop.f32.mrb[0].mxu0
        %v1746 = vpop.f32.mrb[0].mxu0
        %v1747 = vadd.f32 %v456, %v1746
        %v1748 = vpop.f32.mrb[0].mxu0
        %1749 = vmatprep.mubr.bf16.mxu0 0
        %1750 = vmatmul.mubr.bf16.gmra.mrb[0].mxu0 %v404
        %v1751 = vpop.f32.mrb[0].mxu0
        %v1752 = vadd.f32 %v456, %v1751
        %v1753 = vpop.f32.mrb[0].mxu0
        %v1754 = vpop.f32.mrb[0].mxu0
        %v1755 = vadd.f32 %v456, %v1754
        %v1756 = vpop.f32.mrb[0].mxu0
        %1757 = vmatprep.mubr.bf16.mxu0 0
        %1758 = vmatmul.mubr.bf16.gmra.mrb[0].mxu0 %v405
        %v1759 = vpop.f32.mrb[0].mxu0
        %v1760 = vadd.f32 %v456, %v1759
        %v1761 = vpop.f32.mrb[0].mxu0
        %v1762 = vpop.f32.mrb[0].mxu0
        %v1763 = vadd.f32 %v456, %v1762
        %v1764 = vpop.f32.mrb[0].mxu0
        %1765 = vmatprep.mubr.bf16.mxu0 0
        %1766 = vmatmul.mubr.bf16.gmra.mrb[0].mxu0 %v406
        %v1767 = vpop.f32.mrb[0].mxu0
        %v1768 = vadd.f32 %v456, %v1767
        %v1769 = vpop.f32.mrb[0].mxu0
        %v1770 = vpop.f32.mrb[0].mxu0
        %v1771 = vadd.f32 %v456, %v1770
        %v1772 = vpop.f32.mrb[0].mxu0
        %1773 = vmatprep.mubr.bf16.mxu0 0
        %1774 = vmatmul.mubr.bf16.gmra.mrb[0].mxu0 %v407
        %v1775 = vpop.f32.mrb[0].mxu0
        %v1776 = vadd.f32 %v456, %v1775
        %v1777 = vpop.f32.mrb[0].mxu0
        %v1778 = vpop.f32.mrb[0].mxu0
        %v1779 = vadd.f32 %v456, %v1778
        %v1780 = vpop.f32.mrb[0].mxu0
        %1781 = vmatprep.mubr.bf16.mxu0 0
        %1782 = vmatmul.mubr.bf16.gmra.mrb[0].mxu0 %v408
        %v1783 = vpop.f32.mrb[0].mxu0
        %v1784 = vadd.f32 %v456, %v1783
        %v1785 = vpop.f32.mrb[0].mxu0
        %v1786 = vpop.f32.mrb[0].mxu0
        %v1787 = vadd.f32 %v456, %v1786
        %v1788 = vpop.f32.mrb[0].mxu0
        %1789 = vmatprep.mubr.bf16.mxu0 0
        %1790 = vmatmul.mubr.bf16.gmra.mrb[0].mxu0 %v409
        %v1791 = vpop.f32.mrb[0].mxu0
        %v1792 = vadd.f32 %v456, %v1791
        %v1793 = vpop.f32.mrb[0].mxu0
        %v1794 = vpop.f32.mrb[0].mxu0
        %v1795 = vadd.f32 %v456, %v1794
        %v1796 = vpop.f32.mrb[0].mxu0
        %1797 = vmatprep.mubr.bf16.mxu0 0
        %1798 = vmatmul.mubr.bf16.gmra.mrb[0].mxu0 %v410
        %v1799 = vpop.f32.mrb[0].mxu0
        %v1800 = vadd.f32 %v456, %v1799
        %v1801 = vpop.f32.mrb[0].mxu0
        %v1802 = vpop.f32.mrb[0].mxu0
        %v1803 = vadd.f32 %v456, %v1802
        %v1804 = vpop.f32.mrb[0].mxu0
        %1805 = vdwg.mxu0
        %v1806 = vpack.c.bf16 %v627, %v623
        %v1807 = vpack.c.bf16 %v629, %v625
        %v1808 = vpack.c.bf16 %v1299, %v1296
        %v1809 = vpack.c.bf16 %v637, %v633
        %v1810 = vpack.c.bf16 %v639, %v635
        %v1811 = vpack.c.bf16 %v1307, %v1304
        %v1812 = vpack.c.bf16 %v647, %v643
        %v1813 = vpack.c.bf16 %v649, %v645
        %v1814 = vpack.c.bf16 %v1315, %v1312
        %v1815 = vpack.c.bf16 %v657, %v653
        %v1816 = vpack.c.bf16 %v659, %v655
        %v1817 = vpack.c.bf16 %v1323, %v1320
        %v1818 = vpack.c.bf16 %v667, %v663
        %v1819 = vpack.c.bf16 %v669, %v665
        %v1820 = vpack.c.bf16 %v1331, %v1328
        %v1821 = vpack.c.bf16 %v677, %v673
        %v1822 = vpack.c.bf16 %v679, %v675
        %v1823 = vpack.c.bf16 %v1339, %v1336
        %v1824 = vpack.c.bf16 %v687, %v683
        %v1825 = vpack.c.bf16 %v689, %v685
        %v1826 = vpack.c.bf16 %v1347, %v1344
        %v1827 = vpack.c.bf16 %v697, %v693
        %v1828 = vpack.c.bf16 %v699, %v695
        %v1829 = vpack.c.bf16 %v1355, %v1352
        %v1830 = vpack.c.bf16 %v707, %v703
        %v1831 = vpack.c.bf16 %v709, %v705
        %v1832 = vpack.c.bf16 %v1363, %v1360
        %v1833 = vpack.c.bf16 %v717, %v713
        %v1834 = vpack.c.bf16 %v719, %v715
        %v1835 = vpack.c.bf16 %v1371, %v1368
        %v1836 = vpack.c.bf16 %v727, %v723
        %v1837 = vpack.c.bf16 %v729, %v725
        %v1838 = vpack.c.bf16 %v1379, %v1376
        %v1839 = vpack.c.bf16 %v737, %v733
        %v1840 = vpack.c.bf16 %v739, %v735
        %v1841 = vpack.c.bf16 %v1387, %v1384
        %v1842 = vpack.c.bf16 %v747, %v743
        %v1843 = vpack.c.bf16 %v749, %v745
        %v1844 = vpack.c.bf16 %v1395, %v1392
        %v1845 = vpack.c.bf16 %v757, %v753
        %v1846 = vpack.c.bf16 %v759, %v755
        %v1847 = vpack.c.bf16 %v1403, %v1400
        %v1848 = vpack.c.bf16 %v767, %v763
        %v1849 = vpack.c.bf16 %v769, %v765
        %v1850 = vpack.c.bf16 %v1411, %v1408
        %v1851 = vpack.c.bf16 %v777, %v773
        %v1852 = vpack.c.bf16 %v779, %v775
        %v1853 = vpack.c.bf16 %v1419, %v1416
        %v1854 = vpack.c.bf16 %v787, %v783
        %v1855 = vpack.c.bf16 %v789, %v785
        %v1856 = vpack.c.bf16 %v1427, %v1424
        %v1857 = vpack.c.bf16 %v797, %v793
        %v1858 = vpack.c.bf16 %v799, %v795
        %v1859 = vpack.c.bf16 %v1435, %v1432
        %v1860 = vpack.c.bf16 %v807, %v803
        %v1861 = vpack.c.bf16 %v809, %v805
        %v1862 = vpack.c.bf16 %v1443, %v1440
        %v1863 = vpack.c.bf16 %v817, %v813
        %v1864 = vpack.c.bf16 %v819, %v815
        %v1865 = vpack.c.bf16 %v1451, %v1448
        %v1866 = vpack.c.bf16 %v827, %v823
        %v1867 = vpack.c.bf16 %v829, %v825
        %v1868 = vpack.c.bf16 %v1459, %v1456
        %v1869 = vpack.c.bf16 %v837, %v833
        %v1870 = vpack.c.bf16 %v839, %v835
        %v1871 = vpack.c.bf16 %v1467, %v1464
        %v1872 = vpack.c.bf16 %v847, %v843
        %v1873 = vpack.c.bf16 %v849, %v845
        %v1874 = vpack.c.bf16 %v1475, %v1472
        %v1875 = vpack.c.bf16 %v857, %v853
        %v1876 = vpack.c.bf16 %v859, %v855
        %v1877 = vpack.c.bf16 %v1483, %v1480
        %v1878 = vpack.c.bf16 %v867, %v863
        %v1879 = vpack.c.bf16 %v869, %v865
        %v1880 = vpack.c.bf16 %v1491, %v1488
        %v1881 = vpack.c.bf16 %v877, %v873
        %v1882 = vpack.c.bf16 %v879, %v875
        %v1883 = vpack.c.bf16 %v1499, %v1496
        %v1884 = vpack.c.bf16 %v887, %v883
        %v1885 = vpack.c.bf16 %v889, %v885
        %v1886 = vpack.c.bf16 %v1507, %v1504
        %v1887 = vpack.c.bf16 %v897, %v893
        %v1888 = vpack.c.bf16 %v899, %v895
        %v1889 = vpack.c.bf16 %v1515, %v1512
        %v1890 = vpack.c.bf16 %v907, %v903
        %v1891 = vpack.c.bf16 %v909, %v905
        %v1892 = vpack.c.bf16 %v1523, %v1520
        %v1893 = vpack.c.bf16 %v917, %v913
        %v1894 = vpack.c.bf16 %v919, %v915
        %v1895 = vpack.c.bf16 %v1531, %v1528
        %v1896 = vpack.c.bf16 %v927, %v923
        %v1897 = vpack.c.bf16 %v929, %v925
        %v1898 = vpack.c.bf16 %v1539, %v1536
        %v1899 = vpack.c.bf16 %v937, %v933
        %v1900 = vpack.c.bf16 %v939, %v935
        %v1901 = vpack.c.bf16 %v1547, %v1544
        %v1902 = vpack.c.bf16 %v947, %v943
        %v1903 = vpack.c.bf16 %v949, %v945
        %v1904 = vpack.c.bf16 %v1555, %v1552
        %v1905 = vpack.c.bf16 %v957, %v953
        %v1906 = vpack.c.bf16 %v959, %v955
        %v1907 = vpack.c.bf16 %v1563, %v1560
        %v1908 = vpack.c.bf16 %v967, %v963
        %v1909 = vpack.c.bf16 %v969, %v965
        %v1910 = vpack.c.bf16 %v1571, %v1568
        %v1911 = vpack.c.bf16 %v977, %v973
        %v1912 = vpack.c.bf16 %v979, %v975
        %v1913 = vpack.c.bf16 %v1579, %v1576
        %v1914 = vpack.c.bf16 %v987, %v983
        %v1915 = vpack.c.bf16 %v989, %v985
        %v1916 = vpack.c.bf16 %v1587, %v1584
        %v1917 = vpack.c.bf16 %v997, %v993
        %v1918 = vpack.c.bf16 %v999, %v995
        %v1919 = vpack.c.bf16 %v1595, %v1592
        %v1920 = vpack.c.bf16 %v1007, %v1003
        %v1921 = vpack.c.bf16 %v1009, %v1005
        %v1922 = vpack.c.bf16 %v1603, %v1600
        %v1923 = vpack.c.bf16 %v1017, %v1013
        %v1924 = vpack.c.bf16 %v1019, %v1015
        %v1925 = vpack.c.bf16 %v1611, %v1608
        %v1926 = vpack.c.bf16 %v1027, %v1023
        %v1927 = vpack.c.bf16 %v1029, %v1025
        %v1928 = vpack.c.bf16 %v1619, %v1616
        %v1929 = vpack.c.bf16 %v1037, %v1033
        %v1930 = vpack.c.bf16 %v1039, %v1035
        %v1931 = vpack.c.bf16 %v1627, %v1624
        %v1932 = vpack.c.bf16 %v1047, %v1043
        %v1933 = vpack.c.bf16 %v1049, %v1045
        %v1934 = vpack.c.bf16 %v1635, %v1632
        %v1935 = vpack.c.bf16 %v1057, %v1053
        %v1936 = vpack.c.bf16 %v1059, %v1055
        %v1937 = vpack.c.bf16 %v1643, %v1640
        %v1938 = vpack.c.bf16 %v1067, %v1063
        %v1939 = vpack.c.bf16 %v1069, %v1065
        %v1940 = vpack.c.bf16 %v1651, %v1648
        %v1941 = vpack.c.bf16 %v1077, %v1073
        %v1942 = vpack.c.bf16 %v1079, %v1075
        %v1943 = vpack.c.bf16 %v1659, %v1656
        %v1944 = vpack.c.bf16 %v1087, %v1083
        %v1945 = vpack.c.bf16 %v1089, %v1085
        %v1946 = vpack.c.bf16 %v1667, %v1664
        %v1947 = vpack.c.bf16 %v1097, %v1093
        %v1948 = vpack.c.bf16 %v1099, %v1095
        %v1949 = vpack.c.bf16 %v1675, %v1672
        %v1950 = vpack.c.bf16 %v1107, %v1103
        %v1951 = vpack.c.bf16 %v1109, %v1105
        %v1952 = vpack.c.bf16 %v1683, %v1680
        %v1953 = vpack.c.bf16 %v1117, %v1113
        %v1954 = vpack.c.bf16 %v1119, %v1115
        %v1955 = vpack.c.bf16 %v1691, %v1688
        %v1956 = vpack.c.bf16 %v1127, %v1123
        %v1957 = vpack.c.bf16 %v1129, %v1125
        %v1958 = vpack.c.bf16 %v1699, %v1696
        %v1959 = vpack.c.bf16 %v1137, %v1133
        %v1960 = vpack.c.bf16 %v1139, %v1135
        %v1961 = vpack.c.bf16 %v1707, %v1704
        %v1962 = vpack.c.bf16 %v1147, %v1143
        %v1963 = vpack.c.bf16 %v1149, %v1145
        %v1964 = vpack.c.bf16 %v1715, %v1712
        %v1965 = vpack.c.bf16 %v1157, %v1153
        %v1966 = vpack.c.bf16 %v1159, %v1155
        %v1967 = vpack.c.bf16 %v1723, %v1720
        %v1968 = vpack.c.bf16 %v1167, %v1163
        %v1969 = vpack.c.bf16 %v1169, %v1165
        %v1970 = vpack.c.bf16 %v1731, %v1728
        %v1971 = vpack.c.bf16 %v1177, %v1173
        %v1972 = vpack.c.bf16 %v1179, %v1175
        %v1973 = vpack.c.bf16 %v1739, %v1736
        %v1974 = vpack.c.bf16 %v1187, %v1183
        %v1975 = vpack.c.bf16 %v1189, %v1185
        %v1976 = vpack.c.bf16 %v1747, %v1744
        %v1977 = vpack.c.bf16 %v1197, %v1193
        %v1978 = vpack.c.bf16 %v1199, %v1195
        %v1979 = vpack.c.bf16 %v1755, %v1752
        %v1980 = vpack.c.bf16 %v1207, %v1203
        %v1981 = vpack.c.bf16 %v1209, %v1205
        %v1982 = vpack.c.bf16 %v1763, %v1760
        %v1983 = vpack.c.bf16 %v1217, %v1213
        %v1984 = vpack.c.bf16 %v1219, %v1215
        %v1985 = vpack.c.bf16 %v1771, %v1768
        %v1986 = vpack.c.bf16 %v1227, %v1223
        %v1987 = vpack.c.bf16 %v1229, %v1225
        %v1988 = vpack.c.bf16 %v1779, %v1776
        %v1989 = vpack.c.bf16 %v1237, %v1233
        %v1990 = vpack.c.bf16 %v1239, %v1235
        %v1991 = vpack.c.bf16 %v1787, %v1784
        %v1992 = vpack.c.bf16 %v1247, %v1243
        %v1993 = vpack.c.bf16 %v1249, %v1245
        %v1994 = vpack.c.bf16 %v1795, %v1792
        %v1995 = vpack.c.bf16 %v1257, %v1253
        %v1996 = vpack.c.bf16 %v1259, %v1255
        %v1997 = vpack.c.bf16 %v1803, %v1800
        %v2190 = vunpack.c.l.b16 %v1806
        %v2191 = vunpack.c.l.b16 %v1807
        %v2192 = vunpack.c.l.b16 %v1808
        %v2193 = vunpack.c.h.b16 %v1806
        %v2194 = vunpack.c.h.b16 %v1807
        %v2195 = vunpack.c.h.b16 %v1808
        %v2196 = vunpack.c.l.b16 %v1809
        %v2197 = vunpack.c.l.b16 %v1810
        %v2198 = vunpack.c.l.b16 %v1811
        %v2199 = vunpack.c.h.b16 %v1809
        %v2200 = vunpack.c.h.b16 %v1810
        %v2201 = vunpack.c.h.b16 %v1811
        %v2202 = vunpack.c.l.b16 %v1812
        %v2203 = vunpack.c.l.b16 %v1813
        %v2204 = vunpack.c.l.b16 %v1814
        %v2205 = vunpack.c.h.b16 %v1812
        %v2206 = vunpack.c.h.b16 %v1813
        %v2207 = vunpack.c.h.b16 %v1814
        %v2208 = vunpack.c.l.b16 %v1815
        %v2209 = vunpack.c.l.b16 %v1816
        %v2210 = vunpack.c.l.b16 %v1817
        %v2211 = vunpack.c.h.b16 %v1815
        %v2212 = vunpack.c.h.b16 %v1816
        %v2213 = vunpack.c.h.b16 %v1817
        %v2214 = vunpack.c.l.b16 %v1818
        %v2215 = vunpack.c.l.b16 %v1819
        %v2216 = vunpack.c.l.b16 %v1820
        %v2217 = vunpack.c.h.b16 %v1818
        %v2218 = vunpack.c.h.b16 %v1819
        %v2219 = vunpack.c.h.b16 %v1820
        %v2220 = vunpack.c.l.b16 %v1821
        %v2221 = vunpack.c.l.b16 %v1822
        %v2222 = vunpack.c.l.b16 %v1823
        %v2223 = vunpack.c.h.b16 %v1821
        %v2224 = vunpack.c.h.b16 %v1822
        %v2225 = vunpack.c.h.b16 %v1823
        %v2226 = vunpack.c.l.b16 %v1824
        %v2227 = vunpack.c.l.b16 %v1825
        %v2228 = vunpack.c.l.b16 %v1826
        %v2229 = vunpack.c.h.b16 %v1824
        %v2230 = vunpack.c.h.b16 %v1825
        %v2231 = vunpack.c.h.b16 %v1826
        %v2232 = vunpack.c.l.b16 %v1827
        %v2233 = vunpack.c.l.b16 %v1828
        %v2234 = vunpack.c.l.b16 %v1829
        %v2235 = vunpack.c.h.b16 %v1827
        %v2236 = vunpack.c.h.b16 %v1828
        %v2237 = vunpack.c.h.b16 %v1829
        %v2238 = vunpack.c.l.b16 %v1830
        %v2239 = vunpack.c.l.b16 %v1831
        %v2240 = vunpack.c.l.b16 %v1832
        %v2241 = vunpack.c.h.b16 %v1830
        %v2242 = vunpack.c.h.b16 %v1831
        %v2243 = vunpack.c.h.b16 %v1832
        %v2244 = vunpack.c.l.b16 %v1833
        %v2245 = vunpack.c.l.b16 %v1834
        %v2246 = vunpack.c.l.b16 %v1835
        %v2247 = vunpack.c.h.b16 %v1833
        %v2248 = vunpack.c.h.b16 %v1834
        %v2249 = vunpack.c.h.b16 %v1835
        %v2250 = vunpack.c.l.b16 %v1836
        %v2251 = vunpack.c.l.b16 %v1837
        %v2252 = vunpack.c.l.b16 %v1838
        %v2253 = vunpack.c.h.b16 %v1836
        %v2254 = vunpack.c.h.b16 %v1837
        %v2255 = vunpack.c.h.b16 %v1838
        %v2256 = vunpack.c.l.b16 %v1839
        %v2257 = vunpack.c.l.b16 %v1840
        %v2258 = vunpack.c.l.b16 %v1841
        %v2259 = vunpack.c.h.b16 %v1839
        %v2260 = vunpack.c.h.b16 %v1840
        %v2261 = vunpack.c.h.b16 %v1841
        %v2262 = vunpack.c.l.b16 %v1842
        %v2263 = vunpack.c.l.b16 %v1843
        %v2264 = vunpack.c.l.b16 %v1844
        %v2265 = vunpack.c.h.b16 %v1842
        %v2266 = vunpack.c.h.b16 %v1843
        %v2267 = vunpack.c.h.b16 %v1844
        %v2268 = vunpack.c.l.b16 %v1845
        %v2269 = vunpack.c.l.b16 %v1846
        %v2270 = vunpack.c.l.b16 %v1847
        %v2271 = vunpack.c.h.b16 %v1845
        %v2272 = vunpack.c.h.b16 %v1846
        %v2273 = vunpack.c.h.b16 %v1847
        %v2274 = vunpack.c.l.b16 %v1848
        %v2275 = vunpack.c.l.b16 %v1849
        %v2276 = vunpack.c.l.b16 %v1850
        %v2277 = vunpack.c.h.b16 %v1848
        %v2278 = vunpack.c.h.b16 %v1849
        %v2279 = vunpack.c.h.b16 %v1850
        %v2280 = vunpack.c.l.b16 %v1851
        %v2281 = vunpack.c.l.b16 %v1852
        %v2282 = vunpack.c.l.b16 %v1853
        %v2283 = vunpack.c.h.b16 %v1851
        %v2284 = vunpack.c.h.b16 %v1852
        %v2285 = vunpack.c.h.b16 %v1853
        %v2286 = vunpack.c.l.b16 %v1854
        %v2287 = vunpack.c.l.b16 %v1855
        %v2288 = vunpack.c.l.b16 %v1856
        %v2289 = vunpack.c.h.b16 %v1854
        %v2290 = vunpack.c.h.b16 %v1855
        %v2291 = vunpack.c.h.b16 %v1856
        %v2292 = vunpack.c.l.b16 %v1857
        %v2293 = vunpack.c.l.b16 %v1858
        %v2294 = vunpack.c.l.b16 %v1859
        %v2295 = vunpack.c.h.b16 %v1857
        %v2296 = vunpack.c.h.b16 %v1858
        %v2297 = vunpack.c.h.b16 %v1859
        %v2298 = vunpack.c.l.b16 %v1860
        %v2299 = vunpack.c.l.b16 %v1861
        %v2300 = vunpack.c.l.b16 %v1862
        %v2301 = vunpack.c.h.b16 %v1860
        %v2302 = vunpack.c.h.b16 %v1861
        %v2303 = vunpack.c.h.b16 %v1862
        %v2304 = vunpack.c.l.b16 %v1863
        %v2305 = vunpack.c.l.b16 %v1864
        %v2306 = vunpack.c.l.b16 %v1865
        %v2307 = vunpack.c.h.b16 %v1863
        %v2308 = vunpack.c.h.b16 %v1864
        %v2309 = vunpack.c.h.b16 %v1865
        %v2310 = vunpack.c.l.b16 %v1866
        %v2311 = vunpack.c.l.b16 %v1867
        %v2312 = vunpack.c.l.b16 %v1868
        %v2313 = vunpack.c.h.b16 %v1866
        %v2314 = vunpack.c.h.b16 %v1867
        %v2315 = vunpack.c.h.b16 %v1868
        %v2316 = vunpack.c.l.b16 %v1869
        %v2317 = vunpack.c.l.b16 %v1870
        %v2318 = vunpack.c.l.b16 %v1871
        %v2319 = vunpack.c.h.b16 %v1869
        %v2320 = vunpack.c.h.b16 %v1870
        %v2321 = vunpack.c.h.b16 %v1871
        %v2322 = vunpack.c.l.b16 %v1872
        %v2323 = vunpack.c.l.b16 %v1873
        %v2324 = vunpack.c.l.b16 %v1874
        %v2325 = vunpack.c.h.b16 %v1872
        %v2326 = vunpack.c.h.b16 %v1873
        %v2327 = vunpack.c.h.b16 %v1874
        %v2328 = vunpack.c.l.b16 %v1875
        %v2329 = vunpack.c.l.b16 %v1876
        %v2330 = vunpack.c.l.b16 %v1877
        %v2331 = vunpack.c.h.b16 %v1875
        %v2332 = vunpack.c.h.b16 %v1876
        %v2333 = vunpack.c.h.b16 %v1877
        %v2334 = vunpack.c.l.b16 %v1878
        %v2335 = vunpack.c.l.b16 %v1879
        %v2336 = vunpack.c.l.b16 %v1880
        %v2337 = vunpack.c.h.b16 %v1878
        %v2338 = vunpack.c.h.b16 %v1879
        %v2339 = vunpack.c.h.b16 %v1880
        %v2340 = vunpack.c.l.b16 %v1881
        %v2341 = vunpack.c.l.b16 %v1882
        %v2342 = vunpack.c.l.b16 %v1883
        %v2343 = vunpack.c.h.b16 %v1881
        %v2344 = vunpack.c.h.b16 %v1882
        %v2345 = vunpack.c.h.b16 %v1883
        %v2346 = vunpack.c.l.b16 %v1884
        %v2347 = vunpack.c.l.b16 %v1885
        %v2348 = vunpack.c.l.b16 %v1886
        %v2349 = vunpack.c.h.b16 %v1884
        %v2350 = vunpack.c.h.b16 %v1885
        %v2351 = vunpack.c.h.b16 %v1886
        %v2352 = vunpack.c.l.b16 %v1887
        %v2353 = vunpack.c.l.b16 %v1888
        %v2354 = vunpack.c.l.b16 %v1889
        %v2355 = vunpack.c.h.b16 %v1887
        %v2356 = vunpack.c.h.b16 %v1888
        %v2357 = vunpack.c.h.b16 %v1889
        %v2358 = vunpack.c.l.b16 %v1890
        %v2359 = vunpack.c.l.b16 %v1891
        %v2360 = vunpack.c.l.b16 %v1892
        %v2361 = vunpack.c.h.b16 %v1890
        %v2362 = vunpack.c.h.b16 %v1891
        %v2363 = vunpack.c.h.b16 %v1892
        %v2364 = vunpack.c.l.b16 %v1893
        %v2365 = vunpack.c.l.b16 %v1894
        %v2366 = vunpack.c.l.b16 %v1895
        %v2367 = vunpack.c.h.b16 %v1893
        %v2368 = vunpack.c.h.b16 %v1894
        %v2369 = vunpack.c.h.b16 %v1895
        %v2370 = vunpack.c.l.b16 %v1896
        %v2371 = vunpack.c.l.b16 %v1897
        %v2372 = vunpack.c.l.b16 %v1898
        %v2373 = vunpack.c.h.b16 %v1896
        %v2374 = vunpack.c.h.b16 %v1897
        %v2375 = vunpack.c.h.b16 %v1898
        %v2376 = vunpack.c.l.b16 %v1899
        %v2377 = vunpack.c.l.b16 %v1900
        %v2378 = vunpack.c.l.b16 %v1901
        %v2379 = vunpack.c.h.b16 %v1899
        %v2380 = vunpack.c.h.b16 %v1900
        %v2381 = vunpack.c.h.b16 %v1901
        %v2382 = vunpack.c.l.b16 %v1902
        %v2383 = vunpack.c.l.b16 %v1903
        %v2384 = vunpack.c.l.b16 %v1904
        %v2385 = vunpack.c.h.b16 %v1902
        %v2386 = vunpack.c.h.b16 %v1903
        %v2387 = vunpack.c.h.b16 %v1904
        %v2388 = vunpack.c.l.b16 %v1905
        %v2389 = vunpack.c.l.b16 %v1906
        %v2390 = vunpack.c.l.b16 %v1907
        %v2391 = vunpack.c.h.b16 %v1905
        %v2392 = vunpack.c.h.b16 %v1906
        %v2393 = vunpack.c.h.b16 %v1907
        %v2394 = vunpack.c.l.b16 %v1908
        %v2395 = vunpack.c.l.b16 %v1909
        %v2396 = vunpack.c.l.b16 %v1910
        %v2397 = vunpack.c.h.b16 %v1908
        %v2398 = vunpack.c.h.b16 %v1909
        %v2399 = vunpack.c.h.b16 %v1910
        %v2400 = vunpack.c.l.b16 %v1911
        %v2401 = vunpack.c.l.b16 %v1912
        %v2402 = vunpack.c.l.b16 %v1913
        %v2403 = vunpack.c.h.b16 %v1911
        %v2404 = vunpack.c.h.b16 %v1912
        %v2405 = vunpack.c.h.b16 %v1913
        %v2406 = vunpack.c.l.b16 %v1914
        %v2407 = vunpack.c.l.b16 %v1915
        %v2408 = vunpack.c.l.b16 %v1916
        %v2409 = vunpack.c.h.b16 %v1914
        %v2410 = vunpack.c.h.b16 %v1915
        %v2411 = vunpack.c.h.b16 %v1916
        %v2412 = vunpack.c.l.b16 %v1917
        %v2413 = vunpack.c.l.b16 %v1918
        %v2414 = vunpack.c.l.b16 %v1919
        %v2415 = vunpack.c.h.b16 %v1917
        %v2416 = vunpack.c.h.b16 %v1918
        %v2417 = vunpack.c.h.b16 %v1919
        %v2418 = vunpack.c.l.b16 %v1920
        %v2419 = vunpack.c.l.b16 %v1921
        %v2420 = vunpack.c.l.b16 %v1922
        %v2421 = vunpack.c.h.b16 %v1920
        %v2422 = vunpack.c.h.b16 %v1921
        %v2423 = vunpack.c.h.b16 %v1922
        %v2424 = vunpack.c.l.b16 %v1923
        %v2425 = vunpack.c.l.b16 %v1924
        %v2426 = vunpack.c.l.b16 %v1925
        %v2427 = vunpack.c.h.b16 %v1923
        %v2428 = vunpack.c.h.b16 %v1924
        %v2429 = vunpack.c.h.b16 %v1925
        %v2430 = vunpack.c.l.b16 %v1926
        %v2431 = vunpack.c.l.b16 %v1927
        %v2432 = vunpack.c.l.b16 %v1928
        %v2433 = vunpack.c.h.b16 %v1926
        %v2434 = vunpack.c.h.b16 %v1927
        %v2435 = vunpack.c.h.b16 %v1928
        %v2436 = vunpack.c.l.b16 %v1929
        %v2437 = vunpack.c.l.b16 %v1930
        %v2438 = vunpack.c.l.b16 %v1931
        %v2439 = vunpack.c.h.b16 %v1929
        %v2440 = vunpack.c.h.b16 %v1930
        %v2441 = vunpack.c.h.b16 %v1931
        %v2442 = vunpack.c.l.b16 %v1932
        %v2443 = vunpack.c.l.b16 %v1933
        %v2444 = vunpack.c.l.b16 %v1934
        %v2445 = vunpack.c.h.b16 %v1932
        %v2446 = vunpack.c.h.b16 %v1933
        %v2447 = vunpack.c.h.b16 %v1934
        %v2448 = vunpack.c.l.b16 %v1935
        %v2449 = vunpack.c.l.b16 %v1936
        %v2450 = vunpack.c.l.b16 %v1937
        %v2451 = vunpack.c.h.b16 %v1935
        %v2452 = vunpack.c.h.b16 %v1936
        %v2453 = vunpack.c.h.b16 %v1937
        %v2454 = vunpack.c.l.b16 %v1938
        %v2455 = vunpack.c.l.b16 %v1939
        %v2456 = vunpack.c.l.b16 %v1940
        %v2457 = vunpack.c.h.b16 %v1938
        %v2458 = vunpack.c.h.b16 %v1939
        %v2459 = vunpack.c.h.b16 %v1940
        %v2460 = vunpack.c.l.b16 %v1941
        %v2461 = vunpack.c.l.b16 %v1942
        %v2462 = vunpack.c.l.b16 %v1943
        %v2463 = vunpack.c.h.b16 %v1941
        %v2464 = vunpack.c.h.b16 %v1942
        %v2465 = vunpack.c.h.b16 %v1943
        %v2466 = vunpack.c.l.b16 %v1944
        %v2467 = vunpack.c.l.b16 %v1945
        %v2468 = vunpack.c.l.b16 %v1946
        %v2469 = vunpack.c.h.b16 %v1944
        %v2470 = vunpack.c.h.b16 %v1945
        %v2471 = vunpack.c.h.b16 %v1946
        %v2472 = vunpack.c.l.b16 %v1947
        %v2473 = vunpack.c.l.b16 %v1948
        %v2474 = vunpack.c.l.b16 %v1949
        %v2475 = vunpack.c.h.b16 %v1947
        %v2476 = vunpack.c.h.b16 %v1948
        %v2477 = vunpack.c.h.b16 %v1949
        %v2478 = vunpack.c.l.b16 %v1950
        %v2479 = vunpack.c.l.b16 %v1951
        %v2480 = vunpack.c.l.b16 %v1952
        %v2481 = vunpack.c.h.b16 %v1950
        %v2482 = vunpack.c.h.b16 %v1951
        %v2483 = vunpack.c.h.b16 %v1952
        %v2484 = vunpack.c.l.b16 %v1953
        %v2485 = vunpack.c.l.b16 %v1954
        %v2486 = vunpack.c.l.b16 %v1955
        %v2487 = vunpack.c.h.b16 %v1953
        %v2488 = vunpack.c.h.b16 %v1954
        %v2489 = vunpack.c.h.b16 %v1955
        %v2490 = vunpack.c.l.b16 %v1956
        %v2491 = vunpack.c.l.b16 %v1957
        %v2492 = vunpack.c.l.b16 %v1958
        %v2493 = vunpack.c.h.b16 %v1956
        %v2494 = vunpack.c.h.b16 %v1957
        %v2495 = vunpack.c.h.b16 %v1958
        %v2496 = vunpack.c.l.b16 %v1959
        %v2497 = vunpack.c.l.b16 %v1960
        %v2498 = vunpack.c.l.b16 %v1961
        %v2499 = vunpack.c.h.b16 %v1959
        %v2500 = vunpack.c.h.b16 %v1960
        %v2501 = vunpack.c.h.b16 %v1961
        %v2502 = vunpack.c.l.b16 %v1962
        %v2503 = vunpack.c.l.b16 %v1963
        %v2504 = vunpack.c.l.b16 %v1964
        %v2505 = vunpack.c.h.b16 %v1962
        %v2506 = vunpack.c.h.b16 %v1963
        %v2507 = vunpack.c.h.b16 %v1964
        %v2508 = vunpack.c.l.b16 %v1965
        %v2509 = vunpack.c.l.b16 %v1966
        %v2510 = vunpack.c.l.b16 %v1967
        %v2511 = vunpack.c.h.b16 %v1965
        %v2512 = vunpack.c.h.b16 %v1966
        %v2513 = vunpack.c.h.b16 %v1967
        %v2514 = vunpack.c.l.b16 %v1968
        %v2515 = vunpack.c.l.b16 %v1969
        %v2516 = vunpack.c.l.b16 %v1970
        %v2517 = vunpack.c.h.b16 %v1968
        %v2518 = vunpack.c.h.b16 %v1969
        %v2519 = vunpack.c.h.b16 %v1970
        %v2520 = vunpack.c.l.b16 %v1971
        %v2521 = vunpack.c.l.b16 %v1972
        %v2522 = vunpack.c.l.b16 %v1973
        %v2523 = vunpack.c.h.b16 %v1971
        %v2524 = vunpack.c.h.b16 %v1972
        %v2525 = vunpack.c.h.b16 %v1973
        %v2526 = vunpack.c.l.b16 %v1974
        %v2527 = vunpack.c.l.b16 %v1975
        %v2528 = vunpack.c.l.b16 %v1976
        %v2529 = vunpack.c.h.b16 %v1974
        %v2530 = vunpack.c.h.b16 %v1975
        %v2531 = vunpack.c.h.b16 %v1976
        %v2532 = vunpack.c.l.b16 %v1977
        %v2533 = vunpack.c.l.b16 %v1978
        %v2534 = vunpack.c.l.b16 %v1979
        %v2535 = vunpack.c.h.b16 %v1977
        %v2536 = vunpack.c.h.b16 %v1978
        %v2537 = vunpack.c.h.b16 %v1979
        %v2538 = vunpack.c.l.b16 %v1980
        %v2539 = vunpack.c.l.b16 %v1981
        %v2540 = vunpack.c.l.b16 %v1982
        %v2541 = vunpack.c.h.b16 %v1980
        %v2542 = vunpack.c.h.b16 %v1981
        %v2543 = vunpack.c.h.b16 %v1982
        %v2544 = vunpack.c.l.b16 %v1983
        %v2545 = vunpack.c.l.b16 %v1984
        %v2546 = vunpack.c.l.b16 %v1985
        %v2547 = vunpack.c.h.b16 %v1983
        %v2548 = vunpack.c.h.b16 %v1984
        %v2549 = vunpack.c.h.b16 %v1985
        %v2550 = vunpack.c.l.b16 %v1986
        %v2551 = vunpack.c.l.b16 %v1987
        %v2552 = vunpack.c.l.b16 %v1988
        %v2553 = vunpack.c.h.b16 %v1986
        %v2554 = vunpack.c.h.b16 %v1987
        %v2555 = vunpack.c.h.b16 %v1988
        %v2556 = vunpack.c.l.b16 %v1989
        %v2557 = vunpack.c.l.b16 %v1990
        %v2558 = vunpack.c.l.b16 %v1991
        %v2559 = vunpack.c.h.b16 %v1989
        %v2560 = vunpack.c.h.b16 %v1990
        %v2561 = vunpack.c.h.b16 %v1991
        %v2562 = vunpack.c.l.b16 %v1992
        %v2563 = vunpack.c.l.b16 %v1993
        %v2564 = vunpack.c.l.b16 %v1994
        %v2565 = vunpack.c.h.b16 %v1992
        %v2566 = vunpack.c.h.b16 %v1993
        %v2567 = vunpack.c.h.b16 %v1994
        %v2568 = vunpack.c.l.b16 %v1995
        %v2569 = vunpack.c.l.b16 %v1996
        %v2570 = vunpack.c.l.b16 %v1997
        %v2571 = vunpack.c.h.b16 %v1995
        %v2572 = vunpack.c.h.b16 %v1996
        %v2573 = vunpack.c.h.b16 %v1997
        %v2574 = vpack.c.b16 %v2191, %v2190
        %v2575 = vpack.c.b16 %v2192, %v2192
        %v2576 = vpack.c.b16 %v2194, %v2193
        %v2577 = vpack.c.b16 %v2195, %v2195
        %v2578 = vpack.c.b16 %v2197, %v2196
        %v2579 = vpack.c.b16 %v2198, %v2198
        %v2580 = vpack.c.b16 %v2200, %v2199
        %v2581 = vpack.c.b16 %v2201, %v2201
        %v2582 = vpack.c.b16 %v2203, %v2202
        %v2583 = vpack.c.b16 %v2204, %v2204
        %v2584 = vpack.c.b16 %v2206, %v2205
        %v2585 = vpack.c.b16 %v2207, %v2207
        %v2586 = vpack.c.b16 %v2209, %v2208
        %v2587 = vpack.c.b16 %v2210, %v2210
        %v2588 = vpack.c.b16 %v2212, %v2211
        %v2589 = vpack.c.b16 %v2213, %v2213
        %v2590 = vpack.c.b16 %v2215, %v2214
        %v2591 = vpack.c.b16 %v2216, %v2216
        %v2592 = vpack.c.b16 %v2218, %v2217
        %v2593 = vpack.c.b16 %v2219, %v2219
        %v2594 = vpack.c.b16 %v2221, %v2220
        %v2595 = vpack.c.b16 %v2222, %v2222
        %v2596 = vpack.c.b16 %v2224, %v2223
        %v2597 = vpack.c.b16 %v2225, %v2225
        %v2598 = vpack.c.b16 %v2227, %v2226
        %v2599 = vpack.c.b16 %v2228, %v2228
        %v2600 = vpack.c.b16 %v2230, %v2229
        %v2601 = vpack.c.b16 %v2231, %v2231
        %v2602 = vpack.c.b16 %v2233, %v2232
        %v2603 = vpack.c.b16 %v2234, %v2234
        %v2604 = vpack.c.b16 %v2236, %v2235
        %v2605 = vpack.c.b16 %v2237, %v2237
        %v2606 = vpack.c.b16 %v2239, %v2238
        %v2607 = vpack.c.b16 %v2240, %v2240
        %v2608 = vpack.c.b16 %v2242, %v2241
        %v2609 = vpack.c.b16 %v2243, %v2243
        %v2610 = vpack.c.b16 %v2245, %v2244
        %v2611 = vpack.c.b16 %v2246, %v2246
        %v2612 = vpack.c.b16 %v2248, %v2247
        %v2613 = vpack.c.b16 %v2249, %v2249
        %v2614 = vpack.c.b16 %v2251, %v2250
        %v2615 = vpack.c.b16 %v2252, %v2252
        %v2616 = vpack.c.b16 %v2254, %v2253
        %v2617 = vpack.c.b16 %v2255, %v2255
        %v2618 = vpack.c.b16 %v2257, %v2256
        %v2619 = vpack.c.b16 %v2258, %v2258
        %v2620 = vpack.c.b16 %v2260, %v2259
        %v2621 = vpack.c.b16 %v2261, %v2261
        %v2622 = vpack.c.b16 %v2263, %v2262
        %v2623 = vpack.c.b16 %v2264, %v2264
        %v2624 = vpack.c.b16 %v2266, %v2265
        %v2625 = vpack.c.b16 %v2267, %v2267
        %v2626 = vpack.c.b16 %v2269, %v2268
        %v2627 = vpack.c.b16 %v2270, %v2270
        %v2628 = vpack.c.b16 %v2272, %v2271
        %v2629 = vpack.c.b16 %v2273, %v2273
        %v2630 = vpack.c.b16 %v2275, %v2274
        %v2631 = vpack.c.b16 %v2276, %v2276
        %v2632 = vpack.c.b16 %v2278, %v2277
        %v2633 = vpack.c.b16 %v2279, %v2279
        %v2634 = vpack.c.b16 %v2281, %v2280
        %v2635 = vpack.c.b16 %v2282, %v2282
        %v2636 = vpack.c.b16 %v2284, %v2283
        %v2637 = vpack.c.b16 %v2285, %v2285
        %v2638 = vpack.c.b16 %v2287, %v2286
        %v2639 = vpack.c.b16 %v2288, %v2288
        %v2640 = vpack.c.b16 %v2290, %v2289
        %v2641 = vpack.c.b16 %v2291, %v2291
        %v2642 = vpack.c.b16 %v2293, %v2292
        %v2643 = vpack.c.b16 %v2294, %v2294
        %v2644 = vpack.c.b16 %v2296, %v2295
        %v2645 = vpack.c.b16 %v2297, %v2297
        %v2646 = vpack.c.b16 %v2299, %v2298
        %v2647 = vpack.c.b16 %v2300, %v2300
        %v2648 = vpack.c.b16 %v2302, %v2301
        %v2649 = vpack.c.b16 %v2303, %v2303
        %v2650 = vpack.c.b16 %v2305, %v2304
        %v2651 = vpack.c.b16 %v2306, %v2306
        %v2652 = vpack.c.b16 %v2308, %v2307
        %v2653 = vpack.c.b16 %v2309, %v2309
        %v2654 = vpack.c.b16 %v2311, %v2310
        %v2655 = vpack.c.b16 %v2312, %v2312
        %v2656 = vpack.c.b16 %v2314, %v2313
        %v2657 = vpack.c.b16 %v2315, %v2315
        %v2658 = vpack.c.b16 %v2317, %v2316
        %v2659 = vpack.c.b16 %v2318, %v2318
        %v2660 = vpack.c.b16 %v2320, %v2319
        %v2661 = vpack.c.b16 %v2321, %v2321
        %v2662 = vpack.c.b16 %v2323, %v2322
        %v2663 = vpack.c.b16 %v2324, %v2324
        %v2664 = vpack.c.b16 %v2326, %v2325
        %v2665 = vpack.c.b16 %v2327, %v2327
        %v2666 = vpack.c.b16 %v2329, %v2328
        %v2667 = vpack.c.b16 %v2330, %v2330
        %v2668 = vpack.c.b16 %v2332, %v2331
        %v2669 = vpack.c.b16 %v2333, %v2333
        %v2670 = vpack.c.b16 %v2335, %v2334
        %v2671 = vpack.c.b16 %v2336, %v2336
        %v2672 = vpack.c.b16 %v2338, %v2337
        %v2673 = vpack.c.b16 %v2339, %v2339
        %v2674 = vpack.c.b16 %v2341, %v2340
        %v2675 = vpack.c.b16 %v2342, %v2342
        %v2676 = vpack.c.b16 %v2344, %v2343
        %v2677 = vpack.c.b16 %v2345, %v2345
        %v2678 = vpack.c.b16 %v2347, %v2346
        %v2679 = vpack.c.b16 %v2348, %v2348
        %v2680 = vpack.c.b16 %v2350, %v2349
        %v2681 = vpack.c.b16 %v2351, %v2351
        %v2682 = vpack.c.b16 %v2353, %v2352
        %v2683 = vpack.c.b16 %v2354, %v2354
        %v2684 = vpack.c.b16 %v2356, %v2355
        %v2685 = vpack.c.b16 %v2357, %v2357
        %v2686 = vpack.c.b16 %v2359, %v2358
        %v2687 = vpack.c.b16 %v2360, %v2360
        %v2688 = vpack.c.b16 %v2362, %v2361
        %v2689 = vpack.c.b16 %v2363, %v2363
        %v2690 = vpack.c.b16 %v2365, %v2364
        %v2691 = vpack.c.b16 %v2366, %v2366
        %v2692 = vpack.c.b16 %v2368, %v2367
        %v2693 = vpack.c.b16 %v2369, %v2369
        %v2694 = vpack.c.b16 %v2371, %v2370
        %v2695 = vpack.c.b16 %v2372, %v2372
        %v2696 = vpack.c.b16 %v2374, %v2373
        %v2697 = vpack.c.b16 %v2375, %v2375
        %v2698 = vpack.c.b16 %v2377, %v2376
        %v2699 = vpack.c.b16 %v2378, %v2378
        %v2700 = vpack.c.b16 %v2380, %v2379
        %v2701 = vpack.c.b16 %v2381, %v2381
        %v2702 = vpack.c.b16 %v2383, %v2382
        %v2703 = vpack.c.b16 %v2384, %v2384
        %v2704 = vpack.c.b16 %v2386, %v2385
        %v2705 = vpack.c.b16 %v2387, %v2387
        %v2706 = vpack.c.b16 %v2389, %v2388
        %v2707 = vpack.c.b16 %v2390, %v2390
        %v2708 = vpack.c.b16 %v2392, %v2391
        %v2709 = vpack.c.b16 %v2393, %v2393
        %v2710 = vpack.c.b16 %v2395, %v2394
        %v2711 = vpack.c.b16 %v2396, %v2396
        %v2712 = vpack.c.b16 %v2398, %v2397
        %v2713 = vpack.c.b16 %v2399, %v2399
        %v2714 = vpack.c.b16 %v2401, %v2400
        %v2715 = vpack.c.b16 %v2402, %v2402
        %v2716 = vpack.c.b16 %v2404, %v2403
        %v2717 = vpack.c.b16 %v2405, %v2405
        %v2718 = vpack.c.b16 %v2407, %v2406
        %v2719 = vpack.c.b16 %v2408, %v2408
        %v2720 = vpack.c.b16 %v2410, %v2409
        %v2721 = vpack.c.b16 %v2411, %v2411
        %v2722 = vpack.c.b16 %v2413, %v2412
        %v2723 = vpack.c.b16 %v2414, %v2414
        %v2724 = vpack.c.b16 %v2416, %v2415
        %v2725 = vpack.c.b16 %v2417, %v2417
        %v2726 = vpack.c.b16 %v2419, %v2418
        %v2727 = vpack.c.b16 %v2420, %v2420
        %v2728 = vpack.c.b16 %v2422, %v2421
        %v2729 = vpack.c.b16 %v2423, %v2423
        %v2730 = vpack.c.b16 %v2425, %v2424
        %v2731 = vpack.c.b16 %v2426, %v2426
        %v2732 = vpack.c.b16 %v2428, %v2427
        %v2733 = vpack.c.b16 %v2429, %v2429
        %v2734 = vpack.c.b16 %v2431, %v2430
        %v2735 = vpack.c.b16 %v2432, %v2432
        %v2736 = vpack.c.b16 %v2434, %v2433
        %v2737 = vpack.c.b16 %v2435, %v2435
        %v2738 = vpack.c.b16 %v2437, %v2436
        %v2739 = vpack.c.b16 %v2438, %v2438
        %v2740 = vpack.c.b16 %v2440, %v2439
        %v2741 = vpack.c.b16 %v2441, %v2441
        %v2742 = vpack.c.b16 %v2443, %v2442
        %v2743 = vpack.c.b16 %v2444, %v2444
        %v2744 = vpack.c.b16 %v2446, %v2445
        %v2745 = vpack.c.b16 %v2447, %v2447
        %v2746 = vpack.c.b16 %v2449, %v2448
        %v2747 = vpack.c.b16 %v2450, %v2450
        %v2748 = vpack.c.b16 %v2452, %v2451
        %v2749 = vpack.c.b16 %v2453, %v2453
        %v2750 = vpack.c.b16 %v2455, %v2454
        %v2751 = vpack.c.b16 %v2456, %v2456
        %v2752 = vpack.c.b16 %v2458, %v2457
        %v2753 = vpack.c.b16 %v2459, %v2459
        %v2754 = vpack.c.b16 %v2461, %v2460
        %v2755 = vpack.c.b16 %v2462, %v2462
        %v2756 = vpack.c.b16 %v2464, %v2463
        %v2757 = vpack.c.b16 %v2465, %v2465
        %v2758 = vpack.c.b16 %v2467, %v2466
        %v2759 = vpack.c.b16 %v2468, %v2468
        %v2760 = vpack.c.b16 %v2470, %v2469
        %v2761 = vpack.c.b16 %v2471, %v2471
        %v2762 = vpack.c.b16 %v2473, %v2472
        %v2763 = vpack.c.b16 %v2474, %v2474
        %v2764 = vpack.c.b16 %v2476, %v2475
        %v2765 = vpack.c.b16 %v2477, %v2477
        %v2766 = vpack.c.b16 %v2479, %v2478
        %v2767 = vpack.c.b16 %v2480, %v2480
        %v2768 = vpack.c.b16 %v2482, %v2481
        %v2769 = vpack.c.b16 %v2483, %v2483
        %v2770 = vpack.c.b16 %v2485, %v2484
        %v2771 = vpack.c.b16 %v2486, %v2486
        %v2772 = vpack.c.b16 %v2488, %v2487
        %v2773 = vpack.c.b16 %v2489, %v2489
        %v2774 = vpack.c.b16 %v2491, %v2490
        %v2775 = vpack.c.b16 %v2492, %v2492
        %v2776 = vpack.c.b16 %v2494, %v2493
        %v2777 = vpack.c.b16 %v2495, %v2495
        %v2778 = vpack.c.b16 %v2497, %v2496
        %v2779 = vpack.c.b16 %v2498, %v2498
        %v2780 = vpack.c.b16 %v2500, %v2499
        %v2781 = vpack.c.b16 %v2501, %v2501
        %v2782 = vpack.c.b16 %v2503, %v2502
        %v2783 = vpack.c.b16 %v2504, %v2504
        %v2784 = vpack.c.b16 %v2506, %v2505
        %v2785 = vpack.c.b16 %v2507, %v2507
        %v2786 = vpack.c.b16 %v2509, %v2508
        %v2787 = vpack.c.b16 %v2510, %v2510
        %v2788 = vpack.c.b16 %v2512, %v2511
        %v2789 = vpack.c.b16 %v2513, %v2513
        %v2790 = vpack.c.b16 %v2515, %v2514
        %v2791 = vpack.c.b16 %v2516, %v2516
        %v2792 = vpack.c.b16 %v2518, %v2517
        %v2793 = vpack.c.b16 %v2519, %v2519
        %v2794 = vpack.c.b16 %v2521, %v2520
        %v2795 = vpack.c.b16 %v2522, %v2522
        %v2796 = vpack.c.b16 %v2524, %v2523
        %v2797 = vpack.c.b16 %v2525, %v2525
        %v2798 = vpack.c.b16 %v2527, %v2526
        %v2799 = vpack.c.b16 %v2528, %v2528
        %v2800 = vpack.c.b16 %v2530, %v2529
        %v2801 = vpack.c.b16 %v2531, %v2531
        %v2802 = vpack.c.b16 %v2533, %v2532
        %v2803 = vpack.c.b16 %v2534, %v2534
        %v2804 = vpack.c.b16 %v2536, %v2535
        %v2805 = vpack.c.b16 %v2537, %v2537
        %v2806 = vpack.c.b16 %v2539, %v2538
        %v2807 = vpack.c.b16 %v2540, %v2540
        %v2808 = vpack.c.b16 %v2542, %v2541
        %v2809 = vpack.c.b16 %v2543, %v2543
        %v2810 = vpack.c.b16 %v2545, %v2544
        %v2811 = vpack.c.b16 %v2546, %v2546
        %v2812 = vpack.c.b16 %v2548, %v2547
        %v2813 = vpack.c.b16 %v2549, %v2549
        %v2814 = vpack.c.b16 %v2551, %v2550
        %v2815 = vpack.c.b16 %v2552, %v2552
        %v2816 = vpack.c.b16 %v2554, %v2553
        %v2817 = vpack.c.b16 %v2555, %v2555
        %v2818 = vpack.c.b16 %v2557, %v2556
        %v2819 = vpack.c.b16 %v2558, %v2558
        %v2820 = vpack.c.b16 %v2560, %v2559
        %v2821 = vpack.c.b16 %v2561, %v2561
        %v2822 = vpack.c.b16 %v2563, %v2562
        %v2823 = vpack.c.b16 %v2564, %v2564
        %v2824 = vpack.c.b16 %v2566, %v2565
        %v2825 = vpack.c.b16 %v2567, %v2567
        %v2826 = vpack.c.b16 %v2569, %v2568
        %v2827 = vpack.c.b16 %v2570, %v2570
        %v2828 = vpack.c.b16 %v2572, %v2571
        %v2829 = vpack.c.b16 %v2573, %v2573
        %3086 = vst [vmem:[%s215] sm:$0xff] %v2574
        %3087 = vst [vmem:[%s215 + $0x8] sm:$0xf] %v2575
        %3088 = vst [vmem:[%s215 + $0xc] sm:$0xff] %v2576
        %3089 = vst [vmem:[%s215 + $0x14] sm:$0xf] %v2577
        %3090 = vst [vmem:[%s215 + $0x18] sm:$0xff] %v2578
        %3091 = vst [vmem:[%s215 + $0x20] sm:$0xf] %v2579
        %3092 = vst [vmem:[%s215 + $0x24] sm:$0xff] %v2580
        %3093 = vst [vmem:[%s215 + $0x2c] sm:$0xf] %v2581
        %3094 = vst [vmem:[%s215 + $0x30] sm:$0xff] %v2582
        %3095 = vst [vmem:[%s215 + $0x38] sm:$0xf] %v2583
        %3096 = vst [vmem:[%s215 + $0x3c] sm:$0xff] %v2584
        %3097 = vst [vmem:[%s215 + $0x44] sm:$0xf] %v2585
        %3098 = vst [vmem:[%s215 + $0x48] sm:$0xff] %v2586
        %3099 = vst [vmem:[%s215 + $0x50] sm:$0xf] %v2587
        %3100 = vst [vmem:[%s215 + $0x54] sm:$0xff] %v2588
        %3101 = vst [vmem:[%s215 + $0x5c] sm:$0xf] %v2589
        %3102 = vst [vmem:[%s215 + $0x60] sm:$0xff] %v2590
        %3103 = vst [vmem:[%s215 + $0x68] sm:$0xf] %v2591
        %3104 = vst [vmem:[%s215 + $0x6c] sm:$0xff] %v2592
        %3105 = vst [vmem:[%s215 + $0x74] sm:$0xf] %v2593
        %3106 = vst [vmem:[%s215 + $0x78] sm:$0xff] %v2594
        %3107 = vst [vmem:[%s215 + $0x80] sm:$0xf] %v2595
        %3108 = vst [vmem:[%s215 + $0x84] sm:$0xff] %v2596
        %3109 = vst [vmem:[%s215 + $0x8c] sm:$0xf] %v2597
        %3110 = vst [vmem:[%s215 + $0x90] sm:$0xff] %v2598
        %3111 = vst [vmem:[%s215 + $0x98] sm:$0xf] %v2599
        %3112 = vst [vmem:[%s215 + $0x9c] sm:$0xff] %v2600
        %3113 = vst [vmem:[%s215 + $0xa4] sm:$0xf] %v2601
        %3114 = vst [vmem:[%s215 + $0xa8] sm:$0xff] %v2602
        %3115 = vst [vmem:[%s215 + $0xb0] sm:$0xf] %v2603
        %3116 = vst [vmem:[%s215 + $0xb4] sm:$0xff] %v2604
        %3117 = vst [vmem:[%s215 + $0xbc] sm:$0xf] %v2605
        %3118 = vst [vmem:[%s215 + $0xc0] sm:$0xff] %v2606
        %3119 = vst [vmem:[%s215 + $0xc8] sm:$0xf] %v2607
        %3120 = vst [vmem:[%s215 + $0xcc] sm:$0xff] %v2608
        %3121 = vst [vmem:[%s215 + $0xd4] sm:$0xf] %v2609
        %3122 = vst [vmem:[%s215 + $0xd8] sm:$0xff] %v2610
        %3123 = vst [vmem:[%s215 + $0xe0] sm:$0xf] %v2611
        %3124 = vst [vmem:[%s215 + $0xe4] sm:$0xff] %v2612
        %3125 = vst [vmem:[%s215 + $0xec] sm:$0xf] %v2613
        %3126 = vst [vmem:[%s215 + $0xf0] sm:$0xff] %v2614
        %3127 = vst [vmem:[%s215 + $0xf8] sm:$0xf] %v2615
        %3128 = vst [vmem:[%s215 + $0xfc] sm:$0xff] %v2616
        %3129 = vst [vmem:[%s215 + $0x104] sm:$0xf] %v2617
        %3130 = vst [vmem:[%s215 + $0x108] sm:$0xff] %v2618
        %3131 = vst [vmem:[%s215 + $0x110] sm:$0xf] %v2619
        %3132 = vst [vmem:[%s215 + $0x114] sm:$0xff] %v2620
        %3133 = vst [vmem:[%s215 + $0x11c] sm:$0xf] %v2621
        %3134 = vst [vmem:[%s215 + $0x120] sm:$0xff] %v2622
        %3135 = vst [vmem:[%s215 + $0x128] sm:$0xf] %v2623
        %3136 = vst [vmem:[%s215 + $0x12c] sm:$0xff] %v2624
        %3137 = vst [vmem:[%s215 + $0x134] sm:$0xf] %v2625
        %3138 = vst [vmem:[%s215 + $0x138] sm:$0xff] %v2626
        %3139 = vst [vmem:[%s215 + $0x140] sm:$0xf] %v2627
        %3140 = vst [vmem:[%s215 + $0x144] sm:$0xff] %v2628
        %3141 = vst [vmem:[%s215 + $0x14c] sm:$0xf] %v2629
        %3142 = vst [vmem:[%s215 + $0x150] sm:$0xff] %v2630
        %3143 = vst [vmem:[%s215 + $0x158] sm:$0xf] %v2631
        %3144 = vst [vmem:[%s215 + $0x15c] sm:$0xff] %v2632
        %3145 = vst [vmem:[%s215 + $0x164] sm:$0xf] %v2633
        %3146 = vst [vmem:[%s215 + $0x168] sm:$0xff] %v2634
        %3147 = vst [vmem:[%s215 + $0x170] sm:$0xf] %v2635
        %3148 = vst [vmem:[%s215 + $0x174] sm:$0xff] %v2636
        %3149 = vst [vmem:[%s215 + $0x17c] sm:$0xf] %v2637
        %3150 = vst [vmem:[%s215 + $0x180] sm:$0xff] %v2638
        %3151 = vst [vmem:[%s215 + $0x188] sm:$0xf] %v2639
        %3152 = vst [vmem:[%s215 + $0x18c] sm:$0xff] %v2640
        %3153 = vst [vmem:[%s215 + $0x194] sm:$0xf] %v2641
        %3154 = vst [vmem:[%s215 + $0x198] sm:$0xff] %v2642
        %3155 = vst [vmem:[%s215 + $0x1a0] sm:$0xf] %v2643
        %3156 = vst [vmem:[%s215 + $0x1a4] sm:$0xff] %v2644
        %3157 = vst [vmem:[%s215 + $0x1ac] sm:$0xf] %v2645
        %3158 = vst [vmem:[%s215 + $0x1b0] sm:$0xff] %v2646
        %3159 = vst [vmem:[%s215 + $0x1b8] sm:$0xf] %v2647
        %3160 = vst [vmem:[%s215 + $0x1bc] sm:$0xff] %v2648
        %3161 = vst [vmem:[%s215 + $0x1c4] sm:$0xf] %v2649
        %3162 = vst [vmem:[%s215 + $0x1c8] sm:$0xff] %v2650
        %3163 = vst [vmem:[%s215 + $0x1d0] sm:$0xf] %v2651
        %3164 = vst [vmem:[%s215 + $0x1d4] sm:$0xff] %v2652
        %3165 = vst [vmem:[%s215 + $0x1dc] sm:$0xf] %v2653
        %3166 = vst [vmem:[%s215 + $0x1e0] sm:$0xff] %v2654
        %3167 = vst [vmem:[%s215 + $0x1e8] sm:$0xf] %v2655
        %3168 = vst [vmem:[%s215 + $0x1ec] sm:$0xff] %v2656
        %3169 = vst [vmem:[%s215 + $0x1f4] sm:$0xf] %v2657
        %3170 = vst [vmem:[%s215 + $0x1f8] sm:$0xff] %v2658
        %3171 = vst [vmem:[%s215 + $0x200] sm:$0xf] %v2659
        %3172 = vst [vmem:[%s215 + $0x204] sm:$0xff] %v2660
        %3173 = vst [vmem:[%s215 + $0x20c] sm:$0xf] %v2661
        %3174 = vst [vmem:[%s215 + $0x210] sm:$0xff] %v2662
        %3175 = vst [vmem:[%s215 + $0x218] sm:$0xf] %v2663
        %3176 = vst [vmem:[%s215 + $0x21c] sm:$0xff] %v2664
        %3177 = vst [vmem:[%s215 + $0x224] sm:$0xf] %v2665
        %3178 = vst [vmem:[%s215 + $0x228] sm:$0xff] %v2666
        %3179 = vst [vmem:[%s215 + $0x230] sm:$0xf] %v2667
        %3180 = vst [vmem:[%s215 + $0x234] sm:$0xff] %v2668
        %3181 = vst [vmem:[%s215 + $0x23c] sm:$0xf] %v2669
        %3182 = vst [vmem:[%s215 + $0x240] sm:$0xff] %v2670
        %3183 = vst [vmem:[%s215 + $0x248] sm:$0xf] %v2671
        %3184 = vst [vmem:[%s215 + $0x24c] sm:$0xff] %v2672
        %3185 = vst [vmem:[%s215 + $0x254] sm:$0xf] %v2673
        %3186 = vst [vmem:[%s215 + $0x258] sm:$0xff] %v2674
        %3187 = vst [vmem:[%s215 + $0x260] sm:$0xf] %v2675
        %3188 = vst [vmem:[%s215 + $0x264] sm:$0xff] %v2676
        %3189 = vst [vmem:[%s215 + $0x26c] sm:$0xf] %v2677
        %3190 = vst [vmem:[%s215 + $0x270] sm:$0xff] %v2678
        %3191 = vst [vmem:[%s215 + $0x278] sm:$0xf] %v2679
        %3192 = vst [vmem:[%s215 + $0x27c] sm:$0xff] %v2680
        %3193 = vst [vmem:[%s215 + $0x284] sm:$0xf] %v2681
        %3194 = vst [vmem:[%s215 + $0x288] sm:$0xff] %v2682
        %3195 = vst [vmem:[%s215 + $0x290] sm:$0xf] %v2683
        %3196 = vst [vmem:[%s215 + $0x294] sm:$0xff] %v2684
        %3197 = vst [vmem:[%s215 + $0x29c] sm:$0xf] %v2685
        %3198 = vst [vmem:[%s215 + $0x2a0] sm:$0xff] %v2686
        %3199 = vst [vmem:[%s215 + $0x2a8] sm:$0xf] %v2687
        %3200 = vst [vmem:[%s215 + $0x2ac] sm:$0xff] %v2688
        %3201 = vst [vmem:[%s215 + $0x2b4] sm:$0xf] %v2689
        %3202 = vst [vmem:[%s215 + $0x2b8] sm:$0xff] %v2690
        %3203 = vst [vmem:[%s215 + $0x2c0] sm:$0xf] %v2691
        %3204 = vst [vmem:[%s215 + $0x2c4] sm:$0xff] %v2692
        %3205 = vst [vmem:[%s215 + $0x2cc] sm:$0xf] %v2693
        %3206 = vst [vmem:[%s215 + $0x2d0] sm:$0xff] %v2694
        %3207 = vst [vmem:[%s215 + $0x2d8] sm:$0xf] %v2695
        %3208 = vst [vmem:[%s215 + $0x2dc] sm:$0xff] %v2696
        %3209 = vst [vmem:[%s215 + $0x2e4] sm:$0xf] %v2697
        %3210 = vst [vmem:[%s215 + $0x2e8] sm:$0xff] %v2698
        %3211 = vst [vmem:[%s215 + $0x2f0] sm:$0xf] %v2699
        %3212 = vst [vmem:[%s215 + $0x2f4] sm:$0xff] %v2700
        %3213 = vst [vmem:[%s215 + $0x2fc] sm:$0xf] %v2701
        %3214 = vst [vmem:[%s215 + $0x300] sm:$0xff] %v2702
        %3215 = vst [vmem:[%s215 + $0x308] sm:$0xf] %v2703
        %3216 = vst [vmem:[%s215 + $0x30c] sm:$0xff] %v2704
        %3217 = vst [vmem:[%s215 + $0x314] sm:$0xf] %v2705
        %3218 = vst [vmem:[%s215 + $0x318] sm:$0xff] %v2706
        %3219 = vst [vmem:[%s215 + $0x320] sm:$0xf] %v2707
        %3220 = vst [vmem:[%s215 + $0x324] sm:$0xff] %v2708
        %3221 = vst [vmem:[%s215 + $0x32c] sm:$0xf] %v2709
        %3222 = vst [vmem:[%s215 + $0x330] sm:$0xff] %v2710
        %3223 = vst [vmem:[%s215 + $0x338] sm:$0xf] %v2711
        %3224 = vst [vmem:[%s215 + $0x33c] sm:$0xff] %v2712
        %3225 = vst [vmem:[%s215 + $0x344] sm:$0xf] %v2713
        %3226 = vst [vmem:[%s215 + $0x348] sm:$0xff] %v2714
        %3227 = vst [vmem:[%s215 + $0x350] sm:$0xf] %v2715
        %3228 = vst [vmem:[%s215 + $0x354] sm:$0xff] %v2716
        %3229 = vst [vmem:[%s215 + $0x35c] sm:$0xf] %v2717
        %3230 = vst [vmem:[%s215 + $0x360] sm:$0xff] %v2718
        %3231 = vst [vmem:[%s215 + $0x368] sm:$0xf] %v2719
        %3232 = vst [vmem:[%s215 + $0x36c] sm:$0xff] %v2720
        %3233 = vst [vmem:[%s215 + $0x374] sm:$0xf] %v2721
        %3234 = vst [vmem:[%s215 + $0x378] sm:$0xff] %v2722
        %3235 = vst [vmem:[%s215 + $0x380] sm:$0xf] %v2723
        %3236 = vst [vmem:[%s215 + $0x384] sm:$0xff] %v2724
        %3237 = vst [vmem:[%s215 + $0x38c] sm:$0xf] %v2725
        %3238 = vst [vmem:[%s215 + $0x390] sm:$0xff] %v2726
        %3239 = vst [vmem:[%s215 + $0x398] sm:$0xf] %v2727
        %3240 = vst [vmem:[%s215 + $0x39c] sm:$0xff] %v2728
        %3241 = vst [vmem:[%s215 + $0x3a4] sm:$0xf] %v2729
        %3242 = vst [vmem:[%s215 + $0x3a8] sm:$0xff] %v2730
        %3243 = vst [vmem:[%s215 + $0x3b0] sm:$0xf] %v2731
        %3244 = vst [vmem:[%s215 + $0x3b4] sm:$0xff] %v2732
        %3245 = vst [vmem:[%s215 + $0x3bc] sm:$0xf] %v2733
        %3246 = vst [vmem:[%s215 + $0x3c0] sm:$0xff] %v2734
        %3247 = vst [vmem:[%s215 + $0x3c8] sm:$0xf] %v2735
        %3248 = vst [vmem:[%s215 + $0x3cc] sm:$0xff] %v2736
        %3249 = vst [vmem:[%s215 + $0x3d4] sm:$0xf] %v2737
        %3250 = vst [vmem:[%s215 + $0x3d8] sm:$0xff] %v2738
        %3251 = vst [vmem:[%s215 + $0x3e0] sm:$0xf] %v2739
        %3252 = vst [vmem:[%s215 + $0x3e4] sm:$0xff] %v2740
        %3253 = vst [vmem:[%s215 + $0x3ec] sm:$0xf] %v2741
        %3254 = vst [vmem:[%s215 + $0x3f0] sm:$0xff] %v2742
        %3255 = vst [vmem:[%s215 + $0x3f8] sm:$0xf] %v2743
        %3256 = vst [vmem:[%s215 + $0x3fc] sm:$0xff] %v2744
        %3257 = vst [vmem:[%s215 + $0x404] sm:$0xf] %v2745
        %3258 = vst [vmem:[%s215 + $0x408] sm:$0xff] %v2746
        %3259 = vst [vmem:[%s215 + $0x410] sm:$0xf] %v2747
        %3260 = vst [vmem:[%s215 + $0x414] sm:$0xff] %v2748
        %3261 = vst [vmem:[%s215 + $0x41c] sm:$0xf] %v2749
        %3262 = vst [vmem:[%s215 + $0x420] sm:$0xff] %v2750
        %3263 = vst [vmem:[%s215 + $0x428] sm:$0xf] %v2751
        %3264 = vst [vmem:[%s215 + $0x42c] sm:$0xff] %v2752
        %3265 = vst [vmem:[%s215 + $0x434] sm:$0xf] %v2753
        %3266 = vst [vmem:[%s215 + $0x438] sm:$0xff] %v2754
        %3267 = vst [vmem:[%s215 + $0x440] sm:$0xf] %v2755
        %3268 = vst [vmem:[%s215 + $0x444] sm:$0xff] %v2756
        %3269 = vst [vmem:[%s215 + $0x44c] sm:$0xf] %v2757
        %3270 = vst [vmem:[%s215 + $0x450] sm:$0xff] %v2758
        %3271 = vst [vmem:[%s215 + $0x458] sm:$0xf] %v2759
        %3272 = vst [vmem:[%s215 + $0x45c] sm:$0xff] %v2760
        %3273 = vst [vmem:[%s215 + $0x464] sm:$0xf] %v2761
        %3274 = vst [vmem:[%s215 + $0x468] sm:$0xff] %v2762
        %3275 = vst [vmem:[%s215 + $0x470] sm:$0xf] %v2763
        %3276 = vst [vmem:[%s215 + $0x474] sm:$0xff] %v2764
        %3277 = vst [vmem:[%s215 + $0x47c] sm:$0xf] %v2765
        %3278 = vst [vmem:[%s215 + $0x480] sm:$0xff] %v2766
        %3279 = vst [vmem:[%s215 + $0x488] sm:$0xf] %v2767
        %3280 = vst [vmem:[%s215 + $0x48c] sm:$0xff] %v2768
        %3281 = vst [vmem:[%s215 + $0x494] sm:$0xf] %v2769
        %3282 = vst [vmem:[%s215 + $0x498] sm:$0xff] %v2770
        %3283 = vst [vmem:[%s215 + $0x4a0] sm:$0xf] %v2771
        %3284 = vst [vmem:[%s215 + $0x4a4] sm:$0xff] %v2772
        %3285 = vst [vmem:[%s215 + $0x4ac] sm:$0xf] %v2773
        %3286 = vst [vmem:[%s215 + $0x4b0] sm:$0xff] %v2774
        %3287 = vst [vmem:[%s215 + $0x4b8] sm:$0xf] %v2775
        %3288 = vst [vmem:[%s215 + $0x4bc] sm:$0xff] %v2776
        %3289 = vst [vmem:[%s215 + $0x4c4] sm:$0xf] %v2777
        %3290 = vst [vmem:[%s215 + $0x4c8] sm:$0xff] %v2778
        %3291 = vst [vmem:[%s215 + $0x4d0] sm:$0xf] %v2779
        %3292 = vst [vmem:[%s215 + $0x4d4] sm:$0xff] %v2780
        %3293 = vst [vmem:[%s215 + $0x4dc] sm:$0xf] %v2781
        %3294 = vst [vmem:[%s215 + $0x4e0] sm:$0xff] %v2782
        %3295 = vst [vmem:[%s215 + $0x4e8] sm:$0xf] %v2783
        %3296 = vst [vmem:[%s215 + $0x4ec] sm:$0xff] %v2784
        %3297 = vst [vmem:[%s215 + $0x4f4] sm:$0xf] %v2785
        %3298 = vst [vmem:[%s215 + $0x4f8] sm:$0xff] %v2786
        %3299 = vst [vmem:[%s215 + $0x500] sm:$0xf] %v2787
        %3300 = vst [vmem:[%s215 + $0x504] sm:$0xff] %v2788
        %3301 = vst [vmem:[%s215 + $0x50c] sm:$0xf] %v2789
        %3302 = vst [vmem:[%s215 + $0x510] sm:$0xff] %v2790
        %3303 = vst [vmem:[%s215 + $0x518] sm:$0xf] %v2791
        %3304 = vst [vmem:[%s215 + $0x51c] sm:$0xff] %v2792
        %3305 = vst [vmem:[%s215 + $0x524] sm:$0xf] %v2793
        %3306 = vst [vmem:[%s215 + $0x528] sm:$0xff] %v2794
        %3307 = vst [vmem:[%s215 + $0x530] sm:$0xf] %v2795
        %3308 = vst [vmem:[%s215 + $0x534] sm:$0xff] %v2796
        %3309 = vst [vmem:[%s215 + $0x53c] sm:$0xf] %v2797
        %3310 = vst [vmem:[%s215 + $0x540] sm:$0xff] %v2798
        %3311 = vst [vmem:[%s215 + $0x548] sm:$0xf] %v2799
        %3312 = vst [vmem:[%s215 + $0x54c] sm:$0xff] %v2800
        %3313 = vst [vmem:[%s215 + $0x554] sm:$0xf] %v2801
        %3314 = vst [vmem:[%s215 + $0x558] sm:$0xff] %v2802
        %3315 = vst [vmem:[%s215 + $0x560] sm:$0xf] %v2803
        %3316 = vst [vmem:[%s215 + $0x564] sm:$0xff] %v2804
        %3317 = vst [vmem:[%s215 + $0x56c] sm:$0xf] %v2805
        %3318 = vst [vmem:[%s215 + $0x570] sm:$0xff] %v2806
        %3319 = vst [vmem:[%s215 + $0x578] sm:$0xf] %v2807
        %3320 = vst [vmem:[%s215 + $0x57c] sm:$0xff] %v2808
        %3321 = vst [vmem:[%s215 + $0x584] sm:$0xf] %v2809
        %3322 = vst [vmem:[%s215 + $0x588] sm:$0xff] %v2810
        %3323 = vst [vmem:[%s215 + $0x590] sm:$0xf] %v2811
        %3324 = vst [vmem:[%s215 + $0x594] sm:$0xff] %v2812
        %3325 = vst [vmem:[%s215 + $0x59c] sm:$0xf] %v2813
        %3326 = vst [vmem:[%s215 + $0x5a0] sm:$0xff] %v2814
        %3327 = vst [vmem:[%s215 + $0x5a8] sm:$0xf] %v2815
        %3328 = vst [vmem:[%s215 + $0x5ac] sm:$0xff] %v2816
        %3329 = vst [vmem:[%s215 + $0x5b4] sm:$0xf] %v2817
        %3330 = vst [vmem:[%s215 + $0x5b8] sm:$0xff] %v2818
        %3331 = vst [vmem:[%s215 + $0x5c0] sm:$0xf] %v2819
        %3332 = vst [vmem:[%s215 + $0x5c4] sm:$0xff] %v2820
        %3333 = vst [vmem:[%s215 + $0x5cc] sm:$0xf] %v2821
        %3334 = vst [vmem:[%s215 + $0x5d0] sm:$0xff] %v2822
        %3335 = vst [vmem:[%s215 + $0x5d8] sm:$0xf] %v2823
        %3336 = vst [vmem:[%s215 + $0x5dc] sm:$0xff] %v2824
        %3337 = vst [vmem:[%s215 + $0x5e4] sm:$0xf] %v2825
        %3338 = vst [vmem:[%s215 + $0x5e8] sm:$0xff] %v2826
        %3339 = vst [vmem:[%s215 + $0x5f0] sm:$0xf] %v2827
        %3340 = vst [vmem:[%s215 + $0x5f4] sm:$0xff] %v2828
        %3341 = vst [vmem:[%s215 + $0x5fc] sm:$0xf] %v2829
        %s3342 = sand.u32 %s97, 1
        %s3343 = scalar_lea.sflag [#allocation4], %s3342
        %s3344 = sand.u32 %s97, 1
        %s3345 = smul.addr %s3344, 1536
        %s3346 = scalar_lea.vmem [#allocation8], %s3345
        // Predicated region
        $region45: #{tpu_custom_call.1} parent=31 // pred_check
          %p3347 = pneg %p107
        $region46: #{tpu_custom_call.1} parent=31 // pred_check_branch
          %3349 = sbr.rel (%p3347) target = $region48
        $region47: #{tpu_custom_call.1} parent=31 // pred_region
          %s3350 = smul.u32 128, %s21
          %s3352 = ssub.s32 24576, 24576
          %3353 = vsyncadd %s3343, %s3352
          %s3354 = smul.addr %s3350, 3
          %s3355 = smul.addr %s3354, 64
          %s3356 = scalar_lea.hbm %s3, %s3355
          %s3357 = sshll.u32 %s3346, 4
          %s3358 = int_to_ptr.vmem [resolvable:$true] %s3357
          %3363 = dma.vmem_to_hbm [thread:$0]  %s3358, 24576, %s3356, %s3343, 192, 192, 12
        $region48: #{tpu_custom_call.1} parent=31 // pred_fallthru
          _
      $region32: #{tpu_custom_call.1} parent=5 // pred_fallthru
        _
      %p3364 = scmp.le.s32.totalorder 2, %s16
      // Predicated region
      $region49: #{tpu_custom_call.1} parent=5 // pred_check
        %p3365 = pneg %p3364
      $region50: #{tpu_custom_call.1} parent=5 // pred_check_branch
        %3367 = sbr.rel (%p3365) target = $region52
      $region51: #{tpu_custom_call.1} parent=5 // pred_region
        %s3368 = ssub.s32 %s16, 2
        // Predicated region
        $region53: #{tpu_custom_call.1} parent=51 // pred_check
          %p3369 = pneg %p113
        $region54: #{tpu_custom_call.1} parent=51 // pred_check_branch
          %3371 = sbr.rel (%p3369) target = $region56
        $region55: #{tpu_custom_call.1} parent=51 // pred_region
          %s3372 = sand.u32 %s98, 1
          %s3373 = scalar_lea.sflag [#allocation4], %s3372
          %s3374 = sand.u32 %s98, 1
          %s3375 = smul.addr %s3374, 1536
          %s3376 = scalar_lea.vmem [#allocation8], %s3375
          %3377 = dma.done %s3373, 24576
        $region56: #{tpu_custom_call.1} parent=51 // pred_fallthru
          _
      $region52: #{tpu_custom_call.1} parent=5 // pred_fallthru
        _
    $region6: #{tpu_custom_call.1} parent=1 // loop_footer
      %s20 = sadd.s32 1, %s16
    $region7: #{tpu_custom_call.1} parent=1 // loop_footer_branch
      %15 = sbr.rel target = $region3
    $region8: #{tpu_custom_call.1} parent=1 // loop_exit
      _
    %3378 = vsyncpa [#allocation3], 1
    %s3379 = scalar_lea.sflag [#allocation3], 1
    %3380 = vsyncpa %s3379, 1
    %3381 = vsyncpa [#allocation6], 1
    %3382 = vsyncpa [#allocation4], 1
    %s3383 = scalar_lea.sflag [#allocation4], 1
    %3384 = vsyncpa %s3383, 1

</llo_original>
